<compile_context>
chip_gen: v7x
topology: tpu7x:2x2x1
jax: 0.10.0
libtpu: 0.0.40
codegen_flags: <defaults>
</compile_context>

<pallas_src>
import functools
import math

import jax
import jax.numpy as jnp
from jax.experimental import pallas as pl
from jax.experimental.pallas import tpu as pltpu

HIDDEN = 32
NUM_CLASSES = 11


# ----------------------------------------------------------------------------
# Pallas kernels
# ----------------------------------------------------------------------------
def _conv_matmul_kernel(w_ref, p_ref, b_ref, o_ref, *, relu, scale):
    # out(Cout, M) = W(Cout, K) @ P(K, M); bias / BN-scale / relu fused epilogue.
    y = jnp.dot(w_ref[...], p_ref[...], preferred_element_type=jnp.float32)
    y = (y + b_ref[...]) * scale
    if relu:
        y = jnp.maximum(y, 0.0)
    o_ref[...] = y


def conv_matmul(wm, p, b, *, relu, scale=1.0):
    """Lane-dense conv-as-matmul.  wm:(Cout,K) bf16, p:(K,M) bf16, b:(Cout,1)."""
    Cout, K = wm.shape
    _, M = p.shape
    kernel = functools.partial(_conv_matmul_kernel, relu=relu, scale=scale)
    return pl.pallas_call(
        kernel,
        out_shape=jax.ShapeDtypeStruct((Cout, M), jnp.float32),
        grid=(1,),
        in_specs=[pl.BlockSpec((Cout, K), lambda i: (0, 0)),
                  pl.BlockSpec((K, M), lambda i: (0, 0)),
                  pl.BlockSpec((Cout, 1), lambda i: (0, 0))],
        out_specs=pl.BlockSpec((Cout, M), lambda i: (0, 0)),
    )(wm, p, b)
    # TODO(synk): if batch grows, tile M (multiples of 128) with a "parallel"
    # grid axis to stay under v7x's 64 MiB VMEM and overlap DMA/compute.


def _bilstm_layer_kernel(seq_ref, wih_ref, whh_ref, b_ref, out_ref, *, T, B, H):
    # One full bidirectional LSTM layer.  grid=(2,) over direction; the whole
    # T-step recurrence is unrolled inside a single grid step.
    is_fwd = (pl.program_id(0) == 0).astype(jnp.float32)

    seq = seq_ref[...]                                   # (T*B, D), time-major
    # time-reversed copy (reverse blocks of B rows); arithmetic blend keeps
    # all memory accesses static.
    rev = jnp.concatenate(
        [seq[(T - 1 - s) * B:(T - s) * B, :] for s in range(T)], axis=0)
    xs = is_fwd * seq + (1.0 - is_fwd) * rev             # processing order

    # Input projection for all T steps at once (+ b_ih + b_hh).
    gx = jnp.dot(xs, wih_ref[0], preferred_element_type=jnp.float32) + b_ref[0]
    whh = whh_ref[0]                                     # (H, 4H)

    h = jnp.zeros((B, H), jnp.float32)
    c = jnp.zeros((B, H), jnp.float32)
    hs = []
    for s in range(T):                                   # unrolled recurrence
        g = gx[s * B:(s + 1) * B, :] + jnp.dot(
            h, whh, preferred_element_type=jnp.float32)
        i = jax.nn.sigmoid(g[:, 0 * H:1 * H])
        f = jax.nn.sigmoid(g[:, 1 * H:2 * H])
        gg = jnp.tanh(g[:, 2 * H:3 * H])
        o = jax.nn.sigmoid(g[:, 3 * H:4 * H])
        c = f * c + i * gg
        h = o * jnp.tanh(c)
        hs.append(h)

    out_fwd = jnp.concatenate(hs, axis=0)                # original time order, d=0
    out_bwd = jnp.concatenate(hs[::-1], axis=0)          # original time order, d=1
    out_ref[0] = is_fwd * out_fwd + (1.0 - is_fwd) * out_bwd


def bilstm_layer(seq2d, wih, whh, bias, T, B, H):
    """seq2d:(T*B,D); wih:(2,D,4H); whh:(2,H,4H); bias:(2,1,4H) -> (2,T*B,H)."""
    D = seq2d.shape[1]
    kernel = functools.partial(_bilstm_layer_kernel, T=T, B=B, H=H)
    return pl.pallas_call(
        kernel,
        out_shape=jax.ShapeDtypeStruct((2, T * B, H), jnp.float32),
        grid=(2,),
        in_specs=[pl.BlockSpec((T * B, D), lambda d: (0, 0)),
                  pl.BlockSpec((1, D, 4 * H), lambda d: (d, 0, 0)),
                  pl.BlockSpec((1, H, 4 * H), lambda d: (d, 0, 0)),
                  pl.BlockSpec((1, 1, 4 * H), lambda d: (d, 0, 0))],
        out_specs=pl.BlockSpec((1, T * B, H), lambda d: (d, 0, 0)),
        compiler_params=pltpu.CompilerParams(
            dimension_semantics=("parallel",)),   # 2 directions -> 2 TCs on v7x
    )(seq2d, wih, whh, bias)


def _linear_softmax_kernel(x_ref, w_ref, b_ref, sm_ref, lsm_ref):
    logits = jnp.dot(x_ref[...], w_ref[...],
                     preferred_element_type=jnp.float32) + b_ref[...]
    m = jnp.max(logits, axis=1, keepdims=True)
    z = logits - m
    e = jnp.exp(z)
    s = jnp.sum(e, axis=1, keepdims=True)
    sm_ref[...] = e / s
    lsm_ref[...] = z - jnp.log(s)


def linear_softmax(x, w, b):
    """Fused Linear + Softmax(dim=1) + LogSoftmax(dim=1)."""
    M, K = x.shape
    N = w.shape[1]
    return pl.pallas_call(
        _linear_softmax_kernel,
        out_shape=(jax.ShapeDtypeStruct((M, N), jnp.float32),
                   jax.ShapeDtypeStruct((M, N), jnp.float32)),
        grid=(1,),
        in_specs=[pl.BlockSpec((M, K), lambda i: (0, 0)),
                  pl.BlockSpec((K, N), lambda i: (0, 0)),
                  pl.BlockSpec((1, N), lambda i: (0, 0))],
        out_specs=(pl.BlockSpec((M, N), lambda i: (0, 0)),
                   pl.BlockSpec((M, N), lambda i: (0, 0))),
    )(x, w, b)


# ----------------------------------------------------------------------------
# Glue (im2col patch extraction, parameter setup, layout plumbing)
# ----------------------------------------------------------------------------
def im2col_cm(x_cm, kh, kw, sh, sw):
    """Channel-major im2col: (Cin,B,H,W) -> (Cin*kh*kw, B*Ho*Wo).

    K ordering (c, i, j) matches torch weight.reshape(Cout, Cin*kh*kw)."""
    C, B, H, W = x_cm.shape
    Ho = (H - kh) // sh + 1
    Wo = (W - kw) // sw + 1
    cols = [x_cm[:, :, i:i + sh * Ho:sh, j:j + sw * Wo:sw]
            for i in range(kh) for j in range(kw)]
    p = jnp.stack(cols, axis=1)                          # (C, kh*kw, B, Ho, Wo)
    return p.reshape(C * kh * kw, B * Ho * Wo), Ho, Wo


def conv2d_cm(x_cm, wm, b, kh, kw, stride, *, relu, scale=1.0):
    """Channel-major conv.  x_cm:(Cin,B,H,W) -> (Cout,B,Ho,Wo)."""
    Cout = wm.shape[0]
    _, B, _, _ = x_cm.shape
    p, Ho, Wo = im2col_cm(x_cm, kh, kw, stride, stride)
    y = conv_matmul(wm, p.astype(jnp.bfloat16), b, relu=relu, scale=scale)
    return y.reshape(Cout, B, Ho, Wo)


def xavier_uniform(key, shape, fan_in, fan_out, gain):
    bound = gain * math.sqrt(6.0 / (fan_in + fan_out))
    return jax.random.uniform(key, shape, jnp.float32, -bound, bound)


def init_params(key):
    gain = math.sqrt(2.0)
    keys = jax.random.split(key, 32)
    kit = iter(keys)
    p = {}

    def conv_params(k, cout, cin, kh, kw):
        w = xavier_uniform(k, (cout, cin, kh, kw),
                           cin * kh * kw, cout * kh * kw, gain)
        wm = w.reshape(cout, cin * kh * kw).astype(jnp.bfloat16)   # MXU-ready
        b = jnp.full((cout, 1), 0.1, jnp.float32)
        return wm, b

    p["w1"], p["b1"] = conv_params(next(kit), 10, 1, 3, 3)
    p["w2"], p["b2"] = conv_params(next(kit), 20, 10, 3, 3)
    p["w3"], p["b3"] = conv_params(next(kit), 25, 20, 2, 2)

    # LSTM: 3 layers, bidirectional, input 125, hidden 32, torch default init.
    H = HIDDEN
    k = 1.0 / math.sqrt(H)
    lstm = []
    for layer in range(3):
        d_in = 125 if layer == 0 else 2 * H
        wih, whh, bias = [], [], []
        for _ in range(2):                                # forward, backward
            w_ih = jax.random.uniform(next(kit), (4 * H, d_in), jnp.float32, -k, k)
            w_hh = jax.random.uniform(next(kit), (4 * H, H), jnp.float32, -k, k)
            b_ih = jax.random.uniform(next(kit), (4 * H,), jnp.float32, -k, k)
            b_hh = jax.random.uniform(next(kit), (4 * H,), jnp.float32, -k, k)
            wih.append(w_ih.T)                            # (D, 4H)
            whh.append(w_hh.T)                            # (H, 4H)
            bias.append((b_ih + b_hh).reshape(1, 4 * H))
        lstm.append({"wih": jnp.stack(wih), "whh": jnp.stack(whh),
                     "b": jnp.stack(bias)})
    p["lstm"] = lstm

    wl = xavier_uniform(next(kit), (NUM_CLASSES, 2 * H), 2 * H, NUM_CLASSES, gain)
    p["wl"] = wl.T                                        # (64, 11)
    p["bl"] = jnp.full((1, NUM_CLASSES), 0.1, jnp.float32)
    return p


def net_forward(params, x):
    B = x.shape[0]
    H = HIDDEN

    # --- conv front-end, channel-major (C, B, H, W) activations -------------
    x_cm = jnp.transpose(x, (1, 0, 2, 3))                 # (1, B, 34, 34)
    y = conv2d_cm(x_cm, params["w1"], params["b1"], 3, 3, 1, relu=True)
    y = conv2d_cm(y, params["w2"], params["b2"], 3, 3, 1, relu=True)

    # MaxPool2d((3,3), stride 3): wrapper-side reshape+max (the standalone
    # 9-lane-load / 1-lane-store Pallas pool kernel was removed per review).
    C2, _, Hh, Ww = y.shape
    y = y.reshape(C2, B, Hh // 3, 3, Ww // 3, 3).max(axis=(3, 5))

    # Dropout2d -> identity (inference).
    # conv3 + eval-mode BatchNorm2d (mean=0, var=1, gamma=1, beta=0) folded in
    # as a scalar scale, + relu.
    bn_scale = 1.0 / math.sqrt(1.0 + 1e-5)
    y = conv2d_cm(y, params["w3"], params["b3"], 2, 2, 2, relu=True,
                  scale=bn_scale)                         # (25, B, 5, 5)
    # Dropout2d -> identity (inference).

    # torch: permute(0,3,2,1) + reshape(B, T, 125).  Here we go straight to the
    # time-major (T*B, 125) layout used by the LSTM kernels: rows (t=w, b),
    # features (h, c).
    C3, _, Hs, Ws = y.shape
    T = Ws
    seq = jnp.transpose(y, (3, 1, 2, 0)).reshape(T * B, Hs * C3)

    # --- 3-layer bidirectional LSTM (zero initial h/c), one call per layer --
    for lp in params["lstm"]:
        out = bilstm_layer(seq, lp["wih"], lp["whh"], lp["b"], T, B, H)
        seq = jnp.transpose(out, (1, 0, 2)).reshape(T * B, 2 * H)

    # restore torch's batch-major row order before the classifier
    flat = seq.reshape(T, B, 2 * H).transpose(1, 0, 2).reshape(B * T, 2 * H)

    # --- fused Linear + Softmax / LogSoftmax ---------------------------------
    return linear_softmax(flat, params["wl"], params["bl"])


if __name__ == "__main__":
    key = jax.random.PRNGKey(0)
    pkey, xkey = jax.random.split(key)
    params = init_params(pkey)
    # 34x34 single-channel images: conv/pool pipeline yields 5x5 spatial,
    # giving lstm_input_size = 5*25 = 125 and sequence length T = 5.
    x = jax.random.normal(xkey, (2, 1, 34, 34), jnp.float32)
    fwd = jax.jit(net_forward)
    softmax_out, log_softmax_out = fwd(params, x)
    jax.block_until_ready((softmax_out, log_softmax_out))
    assert softmax_out.shape == (2 * 5, 11)
    assert log_softmax_out.shape == (2 * 5, 11)
    print("KERNEL_OK")
</pallas_src>

<mosaic_0001>
module attributes {stable_mosaic.version = 11 : i64} {
  func.func @_conv_matmul_kernel(%arg0: i32, %arg1: memref<10x9xbf16, #tpu.memory_space<vmem>>, %arg2: memref<9x2048xbf16, #tpu.memory_space<vmem>>, %arg3: memref<10x1xf32, #tpu.memory_space<vmem>>, %arg4: memref<10x2048xf32, #tpu.memory_space<vmem>>) attributes {dimension_semantics = [#tpu.dimension_semantics<arbitrary>], iteration_bounds = array<i64: 1>, scalar_prefetch = 0 : i64, scratch_operands = 0 : i64, tpu.core_type = #tpu.core_type<tc>, window_params = [{pipeline_mode = #tpu.pipeline_mode<synchronous>, transform_indices = @transform_0, window_bounds = array<i64: 10, 9>}, {pipeline_mode = #tpu.pipeline_mode<synchronous>, transform_indices = @transform_1, window_bounds = array<i64: 9, 2048>}, {pipeline_mode = #tpu.pipeline_mode<synchronous>, transform_indices = @transform_2, window_bounds = array<i64: 10, 1>}, {pipeline_mode = #tpu.pipeline_mode<synchronous>, transform_indices = @transform_3, window_bounds = array<i64: 10, 2048>}]} {
    %c0 = arith.constant 0 : index
    %c0_0 = arith.constant 0 : index
    %0 = vector.load %arg1[%c0, %c0_0] : memref<10x9xbf16, #tpu.memory_space<vmem>>, vector<10x9xbf16>
    %c0_1 = arith.constant 0 : index
    %c0_2 = arith.constant 0 : index
    %1 = vector.load %arg2[%c0_1, %c0_2] : memref<9x2048xbf16, #tpu.memory_space<vmem>>, vector<9x2048xbf16>
    %cst = arith.constant dense<0.000000e+00> : vector<10x2048xf32>
    %2 = tpu.matmul %0, %1, %cst {dimension_numbers = #tpu.dot_dimension_numbers<[1], [0], [0], [1], [0, 0, 1, 1], [], []>} : vector<10x9xbf16>, vector<9x2048xbf16>, vector<10x2048xf32> -> vector<10x2048xf32>
    %c0_3 = arith.constant 0 : index
    %c0_4 = arith.constant 0 : index
    %3 = vector.load %arg3[%c0_3, %c0_4] : memref<10x1xf32, #tpu.memory_space<vmem>>, vector<10x1xf32>
    %4 = vector.broadcast %3 : vector<10x1xf32> to vector<10x2048xf32>
    %5 = arith.addf %2, %4 : vector<10x2048xf32>
    %cst_5 = arith.constant 1.000000e+00 : f32
    %6 = vector.broadcast %cst_5 : f32 to vector<10x2048xf32>
    %7 = arith.mulf %5, %6 : vector<10x2048xf32>
    %cst_6 = arith.constant 0.000000e+00 : f32
    %8 = vector.broadcast %cst_6 : f32 to vector<10x2048xf32>
    %9 = arith.maximumf %7, %8 : vector<10x2048xf32>
    %c0_7 = arith.constant 0 : index
    %c0_8 = arith.constant 0 : index
    %10 = vector.load %arg4[%c0_7, %c0_8] : memref<10x2048xf32, #tpu.memory_space<vmem>>, vector<10x2048xf32>
    tpu.vector_store %arg4[%c0_7, %c0_8], %9 {strides = array<i32>} : memref<10x2048xf32, #tpu.memory_space<vmem>>, vector<10x2048xf32>,
    return
  }
  func.func @transform_0(%arg0: i32) -> (i32, i32) {
    %c0_i32 = arith.constant 0 : i32
    %c0_i32_0 = arith.constant 0 : i32
    %c0_i32_1 = arith.constant 0 : i32
    return %c0_i32, %c0_i32_0 : i32, i32
  }
  func.func @transform_1(%arg0: i32) -> (i32, i32) {
    %c0_i32 = arith.constant 0 : i32
    %c0_i32_0 = arith.constant 0 : i32
    %c0_i32_1 = arith.constant 0 : i32
    return %c0_i32, %c0_i32_0 : i32, i32
  }
  func.func @transform_2(%arg0: i32) -> (i32, i32) {
    %c0_i32 = arith.constant 0 : i32
    %c0_i32_0 = arith.constant 0 : i32
    %c0_i32_1 = arith.constant 0 : i32
    return %c0_i32, %c0_i32_0 : i32, i32
  }
  func.func @transform_3(%arg0: i32) -> (i32, i32) {
    %c0_i32 = arith.constant 0 : i32
    %c0_i32_0 = arith.constant 0 : i32
    %c0_i32_1 = arith.constant 0 : i32
    return %c0_i32, %c0_i32_0 : i32, i32
  }
}

module attributes {stable_mosaic.version = 11 : i64} {
  func.func @_conv_matmul_kernel(%arg0: i32, %arg1: memref<20x90xbf16, #tpu.memory_space<vmem>>, %arg2: memref<90x1800xbf16, #tpu.memory_space<vmem>>, %arg3: memref<20x1xf32, #tpu.memory_space<vmem>>, %arg4: memref<20x1800xf32, #tpu.memory_space<vmem>>) attributes {dimension_semantics = [#tpu.dimension_semantics<arbitrary>], iteration_bounds = array<i64: 1>, scalar_prefetch = 0 : i64, scratch_operands = 0 : i64, tpu.core_type = #tpu.core_type<tc>, window_params = [{pipeline_mode = #tpu.pipeline_mode<synchronous>, transform_indices = @transform_0, window_bounds = array<i64: 20, 90>}, {pipeline_mode = #tpu.pipeline_mode<synchronous>, transform_indices = @transform_1, window_bounds = array<i64: 90, 1800>}, {pipeline_mode = #tpu.pipeline_mode<synchronous>, transform_indices = @transform_2, window_bounds = array<i64: 20, 1>}, {pipeline_mode = #tpu.pipeline_mode<synchronous>, transform_indices = @transform_3, window_bounds = array<i64: 20, 1800>}]} {
    %c0 = arith.constant 0 : index
    %c0_0 = arith.constant 0 : index
    %0 = vector.load %arg1[%c0, %c0_0] : memref<20x90xbf16, #tpu.memory_space<vmem>>, vector<20x90xbf16>
    %c0_1 = arith.constant 0 : index
    %c0_2 = arith.constant 0 : index
    %1 = vector.load %arg2[%c0_1, %c0_2] : memref<90x1800xbf16, #tpu.memory_space<vmem>>, vector<90x1800xbf16>
    %cst = arith.constant dense<0.000000e+00> : vector<20x1800xf32>
    %2 = tpu.matmul %0, %1, %cst {dimension_numbers = #tpu.dot_dimension_numbers<[1], [0], [0], [1], [0, 0, 1, 1], [], []>} : vector<20x90xbf16>, vector<90x1800xbf16>, vector<20x1800xf32> -> vector<20x1800xf32>
    %c0_3 = arith.constant 0 : index
    %c0_4 = arith.constant 0 : index
    %3 = vector.load %arg3[%c0_3, %c0_4] : memref<20x1xf32, #tpu.memory_space<vmem>>, vector<20x1xf32>
    %4 = vector.broadcast %3 : vector<20x1xf32> to vector<20x1800xf32>
    %5 = arith.addf %2, %4 : vector<20x1800xf32>
    %cst_5 = arith.constant 1.000000e+00 : f32
    %6 = vector.broadcast %cst_5 : f32 to vector<20x1800xf32>
    %7 = arith.mulf %5, %6 : vector<20x1800xf32>
    %cst_6 = arith.constant 0.000000e+00 : f32
    %8 = vector.broadcast %cst_6 : f32 to vector<20x1800xf32>
    %9 = arith.maximumf %7, %8 : vector<20x1800xf32>
    %c0_7 = arith.constant 0 : index
    %c0_8 = arith.constant 0 : index
    %10 = vector.load %arg4[%c0_7, %c0_8] : memref<20x1800xf32, #tpu.memory_space<vmem>>, vector<20x1800xf32>
    tpu.vector_store %arg4[%c0_7, %c0_8], %9 {strides = array<i32>} : memref<20x1800xf32, #tpu.memory_space<vmem>>, vector<20x1800xf32>,
    return
  }
  func.func @transform_0(%arg0: i32) -> (i32, i32) {
    %c0_i32 = arith.constant 0 : i32
    %c0_i32_0 = arith.constant 0 : i32
    %c0_i32_1 = arith.constant 0 : i32
    return %c0_i32, %c0_i32_0 : i32, i32
  }
  func.func @transform_1(%arg0: i32) -> (i32, i32) {
    %c0_i32 = arith.constant 0 : i32
    %c0_i32_0 = arith.constant 0 : i32
    %c0_i32_1 = arith.constant 0 : i32
    return %c0_i32, %c0_i32_0 : i32, i32
  }
  func.func @transform_2(%arg0: i32) -> (i32, i32) {
    %c0_i32 = arith.constant 0 : i32
    %c0_i32_0 = arith.constant 0 : i32
    %c0_i32_1 = arith.constant 0 : i32
    return %c0_i32, %c0_i32_0 : i32, i32
  }
  func.func @transform_3(%arg0: i32) -> (i32, i32) {
    %c0_i32 = arith.constant 0 : i32
    %c0_i32_0 = arith.constant 0 : i32
    %c0_i32_1 = arith.constant 0 : i32
    return %c0_i32, %c0_i32_0 : i32, i32
  }
}

module attributes {stable_mosaic.version = 11 : i64} {
  func.func @_conv_matmul_kernel(%arg0: i32, %arg1: memref<25x80xbf16, #tpu.memory_space<vmem>>, %arg2: memref<80x50xbf16, #tpu.memory_space<vmem>>, %arg3: memref<25x1xf32, #tpu.memory_space<vmem>>, %arg4: memref<25x50xf32, #tpu.memory_space<vmem>>) attributes {dimension_semantics = [#tpu.dimension_semantics<arbitrary>], iteration_bounds = array<i64: 1>, scalar_prefetch = 0 : i64, scratch_operands = 0 : i64, tpu.core_type = #tpu.core_type<tc>, window_params = [{pipeline_mode = #tpu.pipeline_mode<synchronous>, transform_indices = @transform_0, window_bounds = array<i64: 25, 80>}, {pipeline_mode = #tpu.pipeline_mode<synchronous>, transform_indices = @transform_1, window_bounds = array<i64: 80, 50>}, {pipeline_mode = #tpu.pipeline_mode<synchronous>, transform_indices = @transform_2, window_bounds = array<i64: 25, 1>}, {pipeline_mode = #tpu.pipeline_mode<synchronous>, transform_indices = @transform_3, window_bounds = array<i64: 25, 50>}]} {
    %c0 = arith.constant 0 : index
    %c0_0 = arith.constant 0 : index
    %0 = vector.load %arg1[%c0, %c0_0] : memref<25x80xbf16, #tpu.memory_space<vmem>>, vector<25x80xbf16>
    %c0_1 = arith.constant 0 : index
    %c0_2 = arith.constant 0 : index
    %1 = vector.load %arg2[%c0_1, %c0_2] : memref<80x50xbf16, #tpu.memory_space<vmem>>, vector<80x50xbf16>
    %cst = arith.constant dense<0.000000e+00> : vector<25x50xf32>
    %2 = tpu.matmul %0, %1, %cst {dimension_numbers = #tpu.dot_dimension_numbers<[1], [0], [0], [1], [0, 0, 1, 1], [], []>} : vector<25x80xbf16>, vector<80x50xbf16>, vector<25x50xf32> -> vector<25x50xf32>
    %c0_3 = arith.constant 0 : index
    %c0_4 = arith.constant 0 : index
    %3 = vector.load %arg3[%c0_3, %c0_4] : memref<25x1xf32, #tpu.memory_space<vmem>>, vector<25x1xf32>
    %4 = vector.broadcast %3 : vector<25x1xf32> to vector<25x50xf32>
    %5 = arith.addf %2, %4 : vector<25x50xf32>
    %cst_5 = arith.constant 0.999994993 : f32
    %6 = vector.broadcast %cst_5 : f32 to vector<25x50xf32>
    %7 = arith.mulf %5, %6 : vector<25x50xf32>
    %cst_6 = arith.constant 0.000000e+00 : f32
    %8 = vector.broadcast %cst_6 : f32 to vector<25x50xf32>
    %9 = arith.maximumf %7, %8 : vector<25x50xf32>
    %c0_7 = arith.constant 0 : index
    %c0_8 = arith.constant 0 : index
    %10 = vector.load %arg4[%c0_7, %c0_8] : memref<25x50xf32, #tpu.memory_space<vmem>>, vector<25x50xf32>
    tpu.vector_store %arg4[%c0_7, %c0_8], %9 {strides = array<i32>} : memref<25x50xf32, #tpu.memory_space<vmem>>, vector<25x50xf32>,
    return
  }
  func.func @transform_0(%arg0: i32) -> (i32, i32) {
    %c0_i32 = arith.constant 0 : i32
    %c0_i32_0 = arith.constant 0 : i32
    %c0_i32_1 = arith.constant 0 : i32
    return %c0_i32, %c0_i32_0 : i32, i32
  }
  func.func @transform_1(%arg0: i32) -> (i32, i32) {
    %c0_i32 = arith.constant 0 : i32
    %c0_i32_0 = arith.constant 0 : i32
    %c0_i32_1 = arith.constant 0 : i32
    return %c0_i32, %c0_i32_0 : i32, i32
  }
  func.func @transform_2(%arg0: i32) -> (i32, i32) {
    %c0_i32 = arith.constant 0 : i32
    %c0_i32_0 = arith.constant 0 : i32
    %c0_i32_1 = arith.constant 0 : i32
    return %c0_i32, %c0_i32_0 : i32, i32
  }
  func.func @transform_3(%arg0: i32) -> (i32, i32) {
    %c0_i32 = arith.constant 0 : i32
    %c0_i32_0 = arith.constant 0 : i32
    %c0_i32_1 = arith.constant 0 : i32
    return %c0_i32, %c0_i32_0 : i32, i32
  }
}

module attributes {stable_mosaic.version = 11 : i64} {
  func.func @_bilstm_layer_kernel(%arg0: i32, %arg1: memref<10x64xf32, #tpu.memory_space<vmem>>, %arg2: memref<1x64x128xf32, #tpu.memory_space<vmem>>, %arg3: memref<1x32x128xf32, #tpu.memory_space<vmem>>, %arg4: memref<1x1x128xf32, #tpu.memory_space<vmem>>, %arg5: memref<1x10x32xf32, #tpu.memory_space<vmem>>) attributes {dimension_semantics = [#tpu.dimension_semantics<parallel>], iteration_bounds = array<i64: 2>, scalar_prefetch = 0 : i64, scratch_operands = 0 : i64, tpu.core_type = #tpu.core_type<tc>, window_params = [{pipeline_mode = #tpu.pipeline_mode<synchronous>, transform_indices = @transform_0, window_bounds = array<i64: 10, 64>}, {transform_indices = @transform_1, window_bounds = array<i64: 1, 64, 128>}, {transform_indices = @transform_2, window_bounds = array<i64: 1, 32, 128>}, {transform_indices = @transform_3, window_bounds = array<i64: 1, 1, 128>}, {transform_indices = @transform_4, window_bounds = array<i64: 1, 10, 32>}]} {
    %c0_i32 = arith.constant 0 : i32
    %0 = arith.cmpi eq, %arg0, %c0_i32 : i32
    %1 = arith.extui %0 : i1 to i32
    %2 = arith.sitofp %1 : i32 to f32
    %c0 = arith.constant 0 : index
    %c0_0 = arith.constant 0 : index
    %3 = vector.load %arg1[%c0, %c0_0] : memref<10x64xf32, #tpu.memory_space<vmem>>, vector<10x64xf32>
    %4 = vector.extract_strided_slice %3 {offsets = [8, 0], sizes = [2, 64], strides = [1, 1]} : vector<10x64xf32> to vector<2x64xf32>
    %5 = vector.extract_strided_slice %3 {offsets = [6, 0], sizes = [2, 64], strides = [1, 1]} : vector<10x64xf32> to vector<2x64xf32>
    %6 = vector.extract_strided_slice %3 {offsets = [4, 0], sizes = [2, 64], strides = [1, 1]} : vector<10x64xf32> to vector<2x64xf32>
    %7 = vector.extract_strided_slice %3 {offsets = [2, 0], sizes = [2, 64], strides = [1, 1]} : vector<10x64xf32> to vector<2x64xf32>
    %8 = vector.extract_strided_slice %3 {offsets = [0, 0], sizes = [2, 64], strides = [1, 1]} : vector<10x64xf32> to vector<2x64xf32>
    %9 = tpu.concatenate %4, %5, %6, %7, %8 in 0 : vector<2x64xf32>, vector<2x64xf32>, vector<2x64xf32>, vector<2x64xf32>, vector<2x64xf32> -> vector<10x64xf32>
    %10 = vector.broadcast %2 : f32 to vector<10x64xf32>
    %11 = arith.mulf %10, %3 : vector<10x64xf32>
    %cst = arith.constant 1.000000e+00 : f32
    %12 = arith.subf %cst, %2 : f32
    %13 = vector.broadcast %12 : f32 to vector<10x64xf32>
    %14 = arith.mulf %13, %9 : vector<10x64xf32>
    %15 = arith.addf %11, %14 : vector<10x64xf32>
    %c0_1 = arith.constant 0 : index
    %c0_2 = arith.constant 0 : index
    %c0_3 = arith.constant 0 : index
    %16 = vector.load %arg2[%c0_1, %c0_2, %c0_3] : memref<1x64x128xf32, #tpu.memory_space<vmem>>, vector<1x64x128xf32>
    %17 = vector.shape_cast %16 : vector<1x64x128xf32> to vector<64x128xf32>
    %cst_4 = arith.constant dense<0.000000e+00> : vector<10x128xf32>
    %18 = tpu.matmul %15, %17, %cst_4 {dimension_numbers = #tpu.dot_dimension_numbers<[1], [0], [0], [1], [0, 0, 1, 1], [], []>} : vector<10x64xf32>, vector<64x128xf32>, vector<10x128xf32> -> vector<10x128xf32>
    %c0_5 = arith.constant 0 : index
    %c0_6 = arith.constant 0 : index
    %c0_7 = arith.constant 0 : index
    %19 = vector.load %arg4[%c0_5, %c0_6, %c0_7] : memref<1x1x128xf32, #tpu.memory_space<vmem>>, vector<1x1x128xf32>
    %20 = vector.shape_cast %19 : vector<1x1x128xf32> to vector<1x128xf32>
    %21 = vector.broadcast %20 : vector<1x128xf32> to vector<10x128xf32>
    %22 = arith.addf %18, %21 : vector<10x128xf32>
    %c0_8 = arith.constant 0 : index
    %c0_9 = arith.constant 0 : index
    %c0_10 = arith.constant 0 : index
    %23 = vector.load %arg3[%c0_8, %c0_9, %c0_10] : memref<1x32x128xf32, #tpu.memory_space<vmem>>, vector<1x32x128xf32>
    %24 = vector.shape_cast %23 : vector<1x32x128xf32> to vector<32x128xf32>
    %cst_11 = arith.constant 0.000000e+00 : f32
    %25 = vector.broadcast %cst_11 : f32 to vector<2x32xf32>
    %cst_12 = arith.constant 0.000000e+00 : f32
    %26 = vector.broadcast %cst_12 : f32 to vector<2x32xf32>
    %27 = vector.extract_strided_slice %22 {offsets = [0, 0], sizes = [2, 128], strides = [1, 1]} : vector<10x128xf32> to vector<2x128xf32>
    %cst_13 = arith.constant dense<0.000000e+00> : vector<2x128xf32>
    %28 = tpu.matmul %25, %24, %cst_13 {dimension_numbers = #tpu.dot_dimension_numbers<[1], [0], [0], [1], [0, 0, 1, 1], [], []>} : vector<2x32xf32>, vector<32x128xf32>, vector<2x128xf32> -> vector<2x128xf32>
    %29 = arith.addf %27, %28 : vector<2x128xf32>
    %30 = vector.extract_strided_slice %29 {offsets = [0, 0], sizes = [2, 32], strides = [1, 1]} : vector<2x128xf32> to vector<2x32xf32>
    %31 = arith.negf %30 : vector<2x32xf32>
    %32 = math.exp %31 : vector<2x32xf32>
    %cst_14 = arith.constant 1.000000e+00 : f32
    %33 = vector.broadcast %cst_14 : f32 to vector<2x32xf32>
    %34 = arith.addf %33, %32 : vector<2x32xf32>
    %35 = arith.divf %33, %34 : vector<2x32xf32>
    %36 = vector.extract_strided_slice %29 {offsets = [0, 32], sizes = [2, 32], strides = [1, 1]} : vector<2x128xf32> to vector<2x32xf32>
    %37 = arith.negf %36 : vector<2x32xf32>
    %38 = math.exp %37 : vector<2x32xf32>
    %cst_15 = arith.constant 1.000000e+00 : f32
    %39 = vector.broadcast %cst_15 : f32 to vector<2x32xf32>
    %40 = arith.addf %39, %38 : vector<2x32xf32>
    %41 = arith.divf %39, %40 : vector<2x32xf32>
    %42 = vector.extract_strided_slice %29 {offsets = [0, 64], sizes = [2, 32], strides = [1, 1]} : vector<2x128xf32> to vector<2x32xf32>
    %43 = math.tanh %42 : vector<2x32xf32>
    %44 = vector.extract_strided_slice %29 {offsets = [0, 96], sizes = [2, 32], strides = [1, 1]} : vector<2x128xf32> to vector<2x32xf32>
    %45 = arith.negf %44 : vector<2x32xf32>
    %46 = math.exp %45 : vector<2x32xf32>
    %cst_16 = arith.constant 1.000000e+00 : f32
    %47 = vector.broadcast %cst_16 : f32 to vector<2x32xf32>
    %48 = arith.addf %47, %46 : vector<2x32xf32>
    %49 = arith.divf %47, %48 : vector<2x32xf32>
    %50 = arith.mulf %41, %26 : vector<2x32xf32>
    %51 = arith.mulf %35, %43 : vector<2x32xf32>
    %52 = arith.addf %50, %51 : vector<2x32xf32>
    %53 = math.tanh %52 : vector<2x32xf32>
    %54 = arith.mulf %49, %53 : vector<2x32xf32>
    %55 = vector.extract_strided_slice %22 {offsets = [2, 0], sizes = [2, 128], strides = [1, 1]} : vector<10x128xf32> to vector<2x128xf32>
    %cst_17 = arith.constant dense<0.000000e+00> : vector<2x128xf32>
    %56 = tpu.matmul %54, %24, %cst_17 {dimension_numbers = #tpu.dot_dimension_numbers<[1], [0], [0], [1], [0, 0, 1, 1], [], []>} : vector<2x32xf32>, vector<32x128xf32>, vector<2x128xf32> -> vector<2x128xf32>
    %57 = arith.addf %55, %56 : vector<2x128xf32>
    %58 = vector.extract_strided_slice %57 {offsets = [0, 0], sizes = [2, 32], strides = [1, 1]} : vector<2x128xf32> to vector<2x32xf32>
    %59 = arith.negf %58 : vector<2x32xf32>
    %60 = math.exp %59 : vector<2x32xf32>
    %cst_18 = arith.constant 1.000000e+00 : f32
    %61 = vector.broadcast %cst_18 : f32 to vector<2x32xf32>
    %62 = arith.addf %61, %60 : vector<2x32xf32>
    %63 = arith.divf %61, %62 : vector<2x32xf32>
    %64 = vector.extract_strided_slice %57 {offsets = [0, 32], sizes = [2, 32], strides = [1, 1]} : vector<2x128xf32> to vector<2x32xf32>
    %65 = arith.negf %64 : vector<2x32xf32>
    %66 = math.exp %65 : vector<2x32xf32>
    %cst_19 = arith.constant 1.000000e+00 : f32
    %67 = vector.broadcast %cst_19 : f32 to vector<2x32xf32>
    %68 = arith.addf %67, %66 : vector<2x32xf32>
    %69 = arith.divf %67, %68 : vector<2x32xf32>
    %70 = vector.extract_strided_slice %57 {offsets = [0, 64], sizes = [2, 32], strides = [1, 1]} : vector<2x128xf32> to vector<2x32xf32>
    %71 = math.tanh %70 : vector<2x32xf32>
    %72 = vector.extract_strided_slice %57 {offsets = [0, 96], sizes = [2, 32], strides = [1, 1]} : vector<2x128xf32> to vector<2x32xf32>
    %73 = arith.negf %72 : vector<2x32xf32>
    %74 = math.exp %73 : vector<2x32xf32>
    %cst_20 = arith.constant 1.000000e+00 : f32
    %75 = vector.broadcast %cst_20 : f32 to vector<2x32xf32>
    %76 = arith.addf %75, %74 : vector<2x32xf32>
    %77 = arith.divf %75, %76 : vector<2x32xf32>
    %78 = arith.mulf %69, %52 : vector<2x32xf32>
    %79 = arith.mulf %63, %71 : vector<2x32xf32>
    %80 = arith.addf %78, %79 : vector<2x32xf32>
    %81 = math.tanh %80 : vector<2x32xf32>
    %82 = arith.mulf %77, %81 : vector<2x32xf32>
    %83 = vector.extract_strided_slice %22 {offsets = [4, 0], sizes = [2, 128], strides = [1, 1]} : vector<10x128xf32> to vector<2x128xf32>
    %cst_21 = arith.constant dense<0.000000e+00> : vector<2x128xf32>
    %84 = tpu.matmul %82, %24, %cst_21 {dimension_numbers = #tpu.dot_dimension_numbers<[1], [0], [0], [1], [0, 0, 1, 1], [], []>} : vector<2x32xf32>, vector<32x128xf32>, vector<2x128xf32> -> vector<2x128xf32>
    %85 = arith.addf %83, %84 : vector<2x128xf32>
    %86 = vector.extract_strided_slice %85 {offsets = [0, 0], sizes = [2, 32], strides = [1, 1]} : vector<2x128xf32> to vector<2x32xf32>
    %87 = arith.negf %86 : vector<2x32xf32>
    %88 = math.exp %87 : vector<2x32xf32>
    %cst_22 = arith.constant 1.000000e+00 : f32
    %89 = vector.broadcast %cst_22 : f32 to vector<2x32xf32>
    %90 = arith.addf %89, %88 : vector<2x32xf32>
    %91 = arith.divf %89, %90 : vector<2x32xf32>
    %92 = vector.extract_strided_slice %85 {offsets = [0, 32], sizes = [2, 32], strides = [1, 1]} : vector<2x128xf32> to vector<2x32xf32>
    %93 = arith.negf %92 : vector<2x32xf32>
    %94 = math.exp %93 : vector<2x32xf32>
    %cst_23 = arith.constant 1.000000e+00 : f32
    %95 = vector.broadcast %cst_23 : f32 to vector<2x32xf32>
    %96 = arith.addf %95, %94 : vector<2x32xf32>
    %97 = arith.divf %95, %96 : vector<2x32xf32>
    %98 = vector.extract_strided_slice %85 {offsets = [0, 64], sizes = [2, 32], strides = [1, 1]} : vector<2x128xf32> to vector<2x32xf32>
    %99 = math.tanh %98 : vector<2x32xf32>
    %100 = vector.extract_strided_slice %85 {offsets = [0, 96], sizes = [2, 32], strides = [1, 1]} : vector<2x128xf32> to vector<2x32xf32>
    %101 = arith.negf %100 : vector<2x32xf32>
    %102 = math.exp %101 : vector<2x32xf32>
    %cst_24 = arith.constant 1.000000e+00 : f32
    %103 = vector.broadcast %cst_24 : f32 to vector<2x32xf32>
    %104 = arith.addf %103, %102 : vector<2x32xf32>
    %105 = arith.divf %103, %104 : vector<2x32xf32>
    %106 = arith.mulf %97, %80 : vector<2x32xf32>
    %107 = arith.mulf %91, %99 : vector<2x32xf32>
    %108 = arith.addf %106, %107 : vector<2x32xf32>
    %109 = math.tanh %108 : vector<2x32xf32>
    %110 = arith.mulf %105, %109 : vector<2x32xf32>
    %111 = vector.extract_strided_slice %22 {offsets = [6, 0], sizes = [2, 128], strides = [1, 1]} : vector<10x128xf32> to vector<2x128xf32>
    %cst_25 = arith.constant dense<0.000000e+00> : vector<2x128xf32>
    %112 = tpu.matmul %110, %24, %cst_25 {dimension_numbers = #tpu.dot_dimension_numbers<[1], [0], [0], [1], [0, 0, 1, 1], [], []>} : vector<2x32xf32>, vector<32x128xf32>, vector<2x128xf32> -> vector<2x128xf32>
    %113 = arith.addf %111, %112 : vector<2x128xf32>
    %114 = vector.extract_strided_slice %113 {offsets = [0, 0], sizes = [2, 32], strides = [1, 1]} : vector<2x128xf32> to vector<2x32xf32>
    %115 = arith.negf %114 : vector<2x32xf32>
    %116 = math.exp %115 : vector<2x32xf32>
    %cst_26 = arith.constant 1.000000e+00 : f32
    %117 = vector.broadcast %cst_26 : f32 to vector<2x32xf32>
    %118 = arith.addf %117, %116 : vector<2x32xf32>
    %119 = arith.divf %117, %118 : vector<2x32xf32>
    %120 = vector.extract_strided_slice %113 {offsets = [0, 32], sizes = [2, 32], strides = [1, 1]} : vector<2x128xf32> to vector<2x32xf32>
    %121 = arith.negf %120 : vector<2x32xf32>
    %122 = math.exp %121 : vector<2x32xf32>
    %cst_27 = arith.constant 1.000000e+00 : f32
    %123 = vector.broadcast %cst_27 : f32 to vector<2x32xf32>
    %124 = arith.addf %123, %122 : vector<2x32xf32>
    %125 = arith.divf %123, %124 : vector<2x32xf32>
    %126 = vector.extract_strided_slice %113 {offsets = [0, 64], sizes = [2, 32], strides = [1, 1]} : vector<2x128xf32> to vector<2x32xf32>
    %127 = math.tanh %126 : vector<2x32xf32>
    %128 = vector.extract_strided_slice %113 {offsets = [0, 96], sizes = [2, 32], strides = [1, 1]} : vector<2x128xf32> to vector<2x32xf32>
    %129 = arith.negf %128 : vector<2x32xf32>
    %130 = math.exp %129 : vector<2x32xf32>
    %cst_28 = arith.constant 1.000000e+00 : f32
    %131 = vector.broadcast %cst_28 : f32 to vector<2x32xf32>
    %132 = arith.addf %131, %130 : vector<2x32xf32>
    %133 = arith.divf %131, %132 : vector<2x32xf32>
    %134 = arith.mulf %125, %108 : vector<2x32xf32>
    %135 = arith.mulf %119, %127 : vector<2x32xf32>
    %136 = arith.addf %134, %135 : vector<2x32xf32>
    %137 = math.tanh %136 : vector<2x32xf32>
    %138 = arith.mulf %133, %137 : vector<2x32xf32>
    %139 = vector.extract_strided_slice %22 {offsets = [8, 0], sizes = [2, 128], strides = [1, 1]} : vector<10x128xf32> to vector<2x128xf32>
    %cst_29 = arith.constant dense<0.000000e+00> : vector<2x128xf32>
    %140 = tpu.matmul %138, %24, %cst_29 {dimension_numbers = #tpu.dot_dimension_numbers<[1], [0], [0], [1], [0, 0, 1, 1], [], []>} : vector<2x32xf32>, vector<32x128xf32>, vector<2x128xf32> -> vector<2x128xf32>
    %141 = arith.addf %139, %140 : vector<2x128xf32>
    %142 = vector.extract_strided_slice %141 {offsets = [0, 0], sizes = [2, 32], strides = [1, 1]} : vector<2x128xf32> to vector<2x32xf32>
    %143 = arith.negf %142 : vector<2x32xf32>
    %144 = math.exp %143 : vector<2x32xf32>
    %cst_30 = arith.constant 1.000000e+00 : f32
    %145 = vector.broadcast %cst_30 : f32 to vector<2x32xf32>
    %146 = arith.addf %145, %144 : vector<2x32xf32>
    %147 = arith.divf %145, %146 : vector<2x32xf32>
    %148 = vector.extract_strided_slice %141 {offsets = [0, 32], sizes = [2, 32], strides = [1, 1]} : vector<2x128xf32> to vector<2x32xf32>
    %149 = arith.negf %148 : vector<2x32xf32>
    %150 = math.exp %149 : vector<2x32xf32>
    %cst_31 = arith.constant 1.000000e+00 : f32
    %151 = vector.broadcast %cst_31 : f32 to vector<2x32xf32>
    %152 = arith.addf %151, %150 : vector<2x32xf32>
    %153 = arith.divf %151, %152 : vector<2x32xf32>
    %154 = vector.extract_strided_slice %141 {offsets = [0, 64], sizes = [2, 32], strides = [1, 1]} : vector<2x128xf32> to vector<2x32xf32>
    %155 = math.tanh %154 : vector<2x32xf32>
    %156 = vector.extract_strided_slice %141 {offsets = [0, 96], sizes = [2, 32], strides = [1, 1]} : vector<2x128xf32> to vector<2x32xf32>
    %157 = arith.negf %156 : vector<2x32xf32>
    %158 = math.exp %157 : vector<2x32xf32>
    %cst_32 = arith.constant 1.000000e+00 : f32
    %159 = vector.broadcast %cst_32 : f32 to vector<2x32xf32>
    %160 = arith.addf %159, %158 : vector<2x32xf32>
    %161 = arith.divf %159, %160 : vector<2x32xf32>
    %162 = arith.mulf %153, %136 : vector<2x32xf32>
    %163 = arith.mulf %147, %155 : vector<2x32xf32>
    %164 = arith.addf %162, %163 : vector<2x32xf32>
    %165 = math.tanh %164 : vector<2x32xf32>
    %166 = arith.mulf %161, %165 : vector<2x32xf32>
    %167 = tpu.concatenate %54, %82, %110, %138, %166 in 0 : vector<2x32xf32>, vector<2x32xf32>, vector<2x32xf32>, vector<2x32xf32>, vector<2x32xf32> -> vector<10x32xf32>
    %168 = tpu.concatenate %166, %138, %110, %82, %54 in 0 : vector<2x32xf32>, vector<2x32xf32>, vector<2x32xf32>, vector<2x32xf32>, vector<2x32xf32> -> vector<10x32xf32>
    %169 = vector.broadcast %2 : f32 to vector<10x32xf32>
    %170 = arith.mulf %169, %167 : vector<10x32xf32>
    %cst_33 = arith.constant 1.000000e+00 : f32
    %171 = arith.subf %cst_33, %2 : f32
    %172 = vector.broadcast %171 : f32 to vector<10x32xf32>
    %173 = arith.mulf %172, %168 : vector<10x32xf32>
    %174 = arith.addf %170, %173 : vector<10x32xf32>
    %c0_34 = arith.constant 0 : index
    %c0_35 = arith.constant 0 : index
    %c0_36 = arith.constant 0 : index
    %175 = vector.load %arg5[%c0_34, %c0_35, %c0_36] : memref<1x10x32xf32, #tpu.memory_space<vmem>>, vector<1x10x32xf32>
    %176 = vector.shape_cast %175 : vector<1x10x32xf32> to vector<10x32xf32>
    %177 = vector.shape_cast %174 : vector<10x32xf32> to vector<1x10x32xf32>
    tpu.vector_store %arg5[%c0_34, %c0_35, %c0_36], %177 {strides = array<i32>} : memref<1x10x32xf32, #tpu.memory_space<vmem>>, vector<1x10x32xf32>,
    return
  }
  func.func @transform_0(%arg0: i32) -> (i32, i32) {
    %c0_i32 = arith.constant 0 : i32
    %c0_i32_0 = arith.constant 0 : i32
    %c0_i32_1 = arith.constant 0 : i32
    return %c0_i32, %c0_i32_0 : i32, i32
  }
  func.func @transform_1(%arg0: i32) -> (i32, i32, i32) {
    %c0_i32 = arith.constant 0 : i32
    %c0_i32_0 = arith.constant 0 : i32
    %c0_i32_1 = arith.constant 0 : i32
    return %arg0, %c0_i32, %c0_i32_0 : i32, i32, i32
  }
  func.func @transform_2(%arg0: i32) -> (i32, i32, i32) {
    %c0_i32 = arith.constant 0 : i32
    %c0_i32_0 = arith.constant 0 : i32
    %c0_i32_1 = arith.constant 0 : i32
    return %arg0, %c0_i32, %c0_i32_0 : i32, i32, i32
  }
  func.func @transform_3(%arg0: i32) -> (i32, i32, i32) {
    %c0_i32 = arith.constant 0 : i32
    %c0_i32_0 = arith.constant 0 : i32
    %c0_i32_1 = arith.constant 0 : i32
    return %arg0, %c0_i32, %c0_i32_0 : i32, i32, i32
  }
  func.func @transform_4(%arg0: i32) -> (i32, i32, i32) {
    %c0_i32 = arith.constant 0 : i32
    %c0_i32_0 = arith.constant 0 : i32
    %c0_i32_1 = arith.constant 0 : i32
    return %arg0, %c0_i32, %c0_i32_0 : i32, i32, i32
  }
}

module attributes {stable_mosaic.version = 11 : i64} {
  func.func @_bilstm_layer_kernel(%arg0: i32, %arg1: memref<10x125xf32, #tpu.memory_space<vmem>>, %arg2: memref<1x125x128xf32, #tpu.memory_space<vmem>>, %arg3: memref<1x32x128xf32, #tpu.memory_space<vmem>>, %arg4: memref<1x1x128xf32, #tpu.memory_space<vmem>>, %arg5: memref<1x10x32xf32, #tpu.memory_space<vmem>>) attributes {dimension_semantics = [#tpu.dimension_semantics<parallel>], iteration_bounds = array<i64: 2>, scalar_prefetch = 0 : i64, scratch_operands = 0 : i64, tpu.core_type = #tpu.core_type<tc>, window_params = [{pipeline_mode = #tpu.pipeline_mode<synchronous>, transform_indices = @transform_0, window_bounds = array<i64: 10, 125>}, {transform_indices = @transform_1, window_bounds = array<i64: 1, 125, 128>}, {transform_indices = @transform_2, window_bounds = array<i64: 1, 32, 128>}, {transform_indices = @transform_3, window_bounds = array<i64: 1, 1, 128>}, {transform_indices = @transform_4, window_bounds = array<i64: 1, 10, 32>}]} {
    %c0_i32 = arith.constant 0 : i32
    %0 = arith.cmpi eq, %arg0, %c0_i32 : i32
    %1 = arith.extui %0 : i1 to i32
    %2 = arith.sitofp %1 : i32 to f32
    %c0 = arith.constant 0 : index
    %c0_0 = arith.constant 0 : index
    %3 = vector.load %arg1[%c0, %c0_0] : memref<10x125xf32, #tpu.memory_space<vmem>>, vector<10x125xf32>
    %4 = vector.extract_strided_slice %3 {offsets = [8, 0], sizes = [2, 125], strides = [1, 1]} : vector<10x125xf32> to vector<2x125xf32>
    %5 = vector.extract_strided_slice %3 {offsets = [6, 0], sizes = [2, 125], strides = [1, 1]} : vector<10x125xf32> to vector<2x125xf32>
    %6 = vector.extract_strided_slice %3 {offsets = [4, 0], sizes = [2, 125], strides = [1, 1]} : vector<10x125xf32> to vector<2x125xf32>
    %7 = vector.extract_strided_slice %3 {offsets = [2, 0], sizes = [2, 125], strides = [1, 1]} : vector<10x125xf32> to vector<2x125xf32>
    %8 = vector.extract_strided_slice %3 {offsets = [0, 0], sizes = [2, 125], strides = [1, 1]} : vector<10x125xf32> to vector<2x125xf32>
    %9 = tpu.concatenate %4, %5, %6, %7, %8 in 0 : vector<2x125xf32>, vector<2x125xf32>, vector<2x125xf32>, vector<2x125xf32>, vector<2x125xf32> -> vector<10x125xf32>
    %10 = vector.broadcast %2 : f32 to vector<10x125xf32>
    %11 = arith.mulf %10, %3 : vector<10x125xf32>
    %cst = arith.constant 1.000000e+00 : f32
    %12 = arith.subf %cst, %2 : f32
    %13 = vector.broadcast %12 : f32 to vector<10x125xf32>
    %14 = arith.mulf %13, %9 : vector<10x125xf32>
    %15 = arith.addf %11, %14 : vector<10x125xf32>
    %c0_1 = arith.constant 0 : index
    %c0_2 = arith.constant 0 : index
    %c0_3 = arith.constant 0 : index
    %16 = vector.load %arg2[%c0_1, %c0_2, %c0_3] : memref<1x125x128xf32, #tpu.memory_space<vmem>>, vector<1x125x128xf32>
    %17 = vector.shape_cast %16 : vector<1x125x128xf32> to vector<125x128xf32>
    %cst_4 = arith.constant dense<0.000000e+00> : vector<10x128xf32>
    %18 = tpu.matmul %15, %17, %cst_4 {dimension_numbers = #tpu.dot_dimension_numbers<[1], [0], [0], [1], [0, 0, 1, 1], [], []>} : vector<10x125xf32>, vector<125x128xf32>, vector<10x128xf32> -> vector<10x128xf32>
    %c0_5 = arith.constant 0 : index
    %c0_6 = arith.constant 0 : index
    %c0_7 = arith.constant 0 : index
    %19 = vector.load %arg4[%c0_5, %c0_6, %c0_7] : memref<1x1x128xf32, #tpu.memory_space<vmem>>, vector<1x1x128xf32>
    %20 = vector.shape_cast %19 : vector<1x1x128xf32> to vector<1x128xf32>
    %21 = vector.broadcast %20 : vector<1x128xf32> to vector<10x128xf32>
    %22 = arith.addf %18, %21 : vector<10x128xf32>
    %c0_8 = arith.constant 0 : index
    %c0_9 = arith.constant 0 : index
    %c0_10 = arith.constant 0 : index
    %23 = vector.load %arg3[%c0_8, %c0_9, %c0_10] : memref<1x32x128xf32, #tpu.memory_space<vmem>>, vector<1x32x128xf32>
    %24 = vector.shape_cast %23 : vector<1x32x128xf32> to vector<32x128xf32>
    %cst_11 = arith.constant 0.000000e+00 : f32
    %25 = vector.broadcast %cst_11 : f32 to vector<2x32xf32>
    %cst_12 = arith.constant 0.000000e+00 : f32
    %26 = vector.broadcast %cst_12 : f32 to vector<2x32xf32>
    %27 = vector.extract_strided_slice %22 {offsets = [0, 0], sizes = [2, 128], strides = [1, 1]} : vector<10x128xf32> to vector<2x128xf32>
    %cst_13 = arith.constant dense<0.000000e+00> : vector<2x128xf32>
    %28 = tpu.matmul %25, %24, %cst_13 {dimension_numbers = #tpu.dot_dimension_numbers<[1], [0], [0], [1], [0, 0, 1, 1], [], []>} : vector<2x32xf32>, vector<32x128xf32>, vector<2x128xf32> -> vector<2x128xf32>
    %29 = arith.addf %27, %28 : vector<2x128xf32>
    %30 = vector.extract_strided_slice %29 {offsets = [0, 0], sizes = [2, 32], strides = [1, 1]} : vector<2x128xf32> to vector<2x32xf32>
    %31 = arith.negf %30 : vector<2x32xf32>
    %32 = math.exp %31 : vector<2x32xf32>
    %cst_14 = arith.constant 1.000000e+00 : f32
    %33 = vector.broadcast %cst_14 : f32 to vector<2x32xf32>
    %34 = arith.addf %33, %32 : vector<2x32xf32>
    %35 = arith.divf %33, %34 : vector<2x32xf32>
    %36 = vector.extract_strided_slice %29 {offsets = [0, 32], sizes = [2, 32], strides = [1, 1]} : vector<2x128xf32> to vector<2x32xf32>
    %37 = arith.negf %36 : vector<2x32xf32>
    %38 = math.exp %37 : vector<2x32xf32>
    %cst_15 = arith.constant 1.000000e+00 : f32
    %39 = vector.broadcast %cst_15 : f32 to vector<2x32xf32>
    %40 = arith.addf %39, %38 : vector<2x32xf32>
    %41 = arith.divf %39, %40 : vector<2x32xf32>
    %42 = vector.extract_strided_slice %29 {offsets = [0, 64], sizes = [2, 32], strides = [1, 1]} : vector<2x128xf32> to vector<2x32xf32>
    %43 = math.tanh %42 : vector<2x32xf32>
    %44 = vector.extract_strided_slice %29 {offsets = [0, 96], sizes = [2, 32], strides = [1, 1]} : vector<2x128xf32> to vector<2x32xf32>
    %45 = arith.negf %44 : vector<2x32xf32>
    %46 = math.exp %45 : vector<2x32xf32>
    %cst_16 = arith.constant 1.000000e+00 : f32
    %47 = vector.broadcast %cst_16 : f32 to vector<2x32xf32>
    %48 = arith.addf %47, %46 : vector<2x32xf32>
    %49 = arith.divf %47, %48 : vector<2x32xf32>
    %50 = arith.mulf %41, %26 : vector<2x32xf32>
    %51 = arith.mulf %35, %43 : vector<2x32xf32>
    %52 = arith.addf %50, %51 : vector<2x32xf32>
    %53 = math.tanh %52 : vector<2x32xf32>
    %54 = arith.mulf %49, %53 : vector<2x32xf32>
    %55 = vector.extract_strided_slice %22 {offsets = [2, 0], sizes = [2, 128], strides = [1, 1]} : vector<10x128xf32> to vector<2x128xf32>
    %cst_17 = arith.constant dense<0.000000e+00> : vector<2x128xf32>
    %56 = tpu.matmul %54, %24, %cst_17 {dimension_numbers = #tpu.dot_dimension_numbers<[1], [0], [0], [1], [0, 0, 1, 1], [], []>} : vector<2x32xf32>, vector<32x128xf32>, vector<2x128xf32> -> vector<2x128xf32>
    %57 = arith.addf %55, %56 : vector<2x128xf32>
    %58 = vector.extract_strided_slice %57 {offsets = [0, 0], sizes = [2, 32], strides = [1, 1]} : vector<2x128xf32> to vector<2x32xf32>
    %59 = arith.negf %58 : vector<2x32xf32>
    %60 = math.exp %59 : vector<2x32xf32>
    %cst_18 = arith.constant 1.000000e+00 : f32
    %61 = vector.broadcast %cst_18 : f32 to vector<2x32xf32>
    %62 = arith.addf %61, %60 : vector<2x32xf32>
    %63 = arith.divf %61, %62 : vector<2x32xf32>
    %64 = vector.extract_strided_slice %57 {offsets = [0, 32], sizes = [2, 32], strides = [1, 1]} : vector<2x128xf32> to vector<2x32xf32>
    %65 = arith.negf %64 : vector<2x32xf32>
    %66 = math.exp %65 : vector<2x32xf32>
    %cst_19 = arith.constant 1.000000e+00 : f32
    %67 = vector.broadcast %cst_19 : f32 to vector<2x32xf32>
    %68 = arith.addf %67, %66 : vector<2x32xf32>
    %69 = arith.divf %67, %68 : vector<2x32xf32>
    %70 = vector.extract_strided_slice %57 {offsets = [0, 64], sizes = [2, 32], strides = [1, 1]} : vector<2x128xf32> to vector<2x32xf32>
    %71 = math.tanh %70 : vector<2x32xf32>
    %72 = vector.extract_strided_slice %57 {offsets = [0, 96], sizes = [2, 32], strides = [1, 1]} : vector<2x128xf32> to vector<2x32xf32>
    %73 = arith.negf %72 : vector<2x32xf32>
    %74 = math.exp %73 : vector<2x32xf32>
    %cst_20 = arith.constant 1.000000e+00 : f32
    %75 = vector.broadcast %cst_20 : f32 to vector<2x32xf32>
    %76 = arith.addf %75, %74 : vector<2x32xf32>
    %77 = arith.divf %75, %76 : vector<2x32xf32>
    %78 = arith.mulf %69, %52 : vector<2x32xf32>
    %79 = arith.mulf %63, %71 : vector<2x32xf32>
    %80 = arith.addf %78, %79 : vector<2x32xf32>
    %81 = math.tanh %80 : vector<2x32xf32>
    %82 = arith.mulf %77, %81 : vector<2x32xf32>
    %83 = vector.extract_strided_slice %22 {offsets = [4, 0], sizes = [2, 128], strides = [1, 1]} : vector<10x128xf32> to vector<2x128xf32>
    %cst_21 = arith.constant dense<0.000000e+00> : vector<2x128xf32>
    %84 = tpu.matmul %82, %24, %cst_21 {dimension_numbers = #tpu.dot_dimension_numbers<[1], [0], [0], [1], [0, 0, 1, 1], [], []>} : vector<2x32xf32>, vector<32x128xf32>, vector<2x128xf32> -> vector<2x128xf32>
    %85 = arith.addf %83, %84 : vector<2x128xf32>
    %86 = vector.extract_strided_slice %85 {offsets = [0, 0], sizes = [2, 32], strides = [1, 1]} : vector<2x128xf32> to vector<2x32xf32>
    %87 = arith.negf %86 : vector<2x32xf32>
    %88 = math.exp %87 : vector<2x32xf32>
    %cst_22 = arith.constant 1.000000e+00 : f32
    %89 = vector.broadcast %cst_22 : f32 to vector<2x32xf32>
    %90 = arith.addf %89, %88 : vector<2x32xf32>
    %91 = arith.divf %89, %90 : vector<2x32xf32>
    %92 = vector.extract_strided_slice %85 {offsets = [0, 32], sizes = [2, 32], strides = [1, 1]} : vector<2x128xf32> to vector<2x32xf32>
    %93 = arith.negf %92 : vector<2x32xf32>
    %94 = math.exp %93 : vector<2x32xf32>
    %cst_23 = arith.constant 1.000000e+00 : f32
    %95 = vector.broadcast %cst_23 : f32 to vector<2x32xf32>
    %96 = arith.addf %95, %94 : vector<2x32xf32>
    %97 = arith.divf %95, %96 : vector<2x32xf32>
    %98 = vector.extract_strided_slice %85 {offsets = [0, 64], sizes = [2, 32], strides = [1, 1]} : vector<2x128xf32> to vector<2x32xf32>
    %99 = math.tanh %98 : vector<2x32xf32>
    %100 = vector.extract_strided_slice %85 {offsets = [0, 96], sizes = [2, 32], strides = [1, 1]} : vector<2x128xf32> to vector<2x32xf32>
    %101 = arith.negf %100 : vector<2x32xf32>
    %102 = math.exp %101 : vector<2x32xf32>
    %cst_24 = arith.constant 1.000000e+00 : f32
    %103 = vector.broadcast %cst_24 : f32 to vector<2x32xf32>
    %104 = arith.addf %103, %102 : vector<2x32xf32>
    %105 = arith.divf %103, %104 : vector<2x32xf32>
    %106 = arith.mulf %97, %80 : vector<2x32xf32>
    %107 = arith.mulf %91, %99 : vector<2x32xf32>
    %108 = arith.addf %106, %107 : vector<2x32xf32>
    %109 = math.tanh %108 : vector<2x32xf32>
    %110 = arith.mulf %105, %109 : vector<2x32xf32>
    %111 = vector.extract_strided_slice %22 {offsets = [6, 0], sizes = [2, 128], strides = [1, 1]} : vector<10x128xf32> to vector<2x128xf32>
    %cst_25 = arith.constant dense<0.000000e+00> : vector<2x128xf32>
    %112 = tpu.matmul %110, %24, %cst_25 {dimension_numbers = #tpu.dot_dimension_numbers<[1], [0], [0], [1], [0, 0, 1, 1], [], []>} : vector<2x32xf32>, vector<32x128xf32>, vector<2x128xf32> -> vector<2x128xf32>
    %113 = arith.addf %111, %112 : vector<2x128xf32>
    %114 = vector.extract_strided_slice %113 {offsets = [0, 0], sizes = [2, 32], strides = [1, 1]} : vector<2x128xf32> to vector<2x32xf32>
    %115 = arith.negf %114 : vector<2x32xf32>
    %116 = math.exp %115 : vector<2x32xf32>
    %cst_26 = arith.constant 1.000000e+00 : f32
    %117 = vector.broadcast %cst_26 : f32 to vector<2x32xf32>
    %118 = arith.addf %117, %116 : vector<2x32xf32>
    %119 = arith.divf %117, %118 : vector<2x32xf32>
    %120 = vector.extract_strided_slice %113 {offsets = [0, 32], sizes = [2, 32], strides = [1, 1]} : vector<2x128xf32> to vector<2x32xf32>
    %121 = arith.negf %120 : vector<2x32xf32>
    %122 = math.exp %121 : vector<2x32xf32>
    %cst_27 = arith.constant 1.000000e+00 : f32
    %123 = vector.broadcast %cst_27 : f32 to vector<2x32xf32>
    %124 = arith.addf %123, %122 : vector<2x32xf32>
    %125 = arith.divf %123, %124 : vector<2x32xf32>
    %126 = vector.extract_strided_slice %113 {offsets = [0, 64], sizes = [2, 32], strides = [1, 1]} : vector<2x128xf32> to vector<2x32xf32>
    %127 = math.tanh %126 : vector<2x32xf32>
    %128 = vector.extract_strided_slice %113 {offsets = [0, 96], sizes = [2, 32], strides = [1, 1]} : vector<2x128xf32> to vector<2x32xf32>
    %129 = arith.negf %128 : vector<2x32xf32>
    %130 = math.exp %129 : vector<2x32xf32>
    %cst_28 = arith.constant 1.000000e+00 : f32
    %131 = vector.broadcast %cst_28 : f32 to vector<2x32xf32>
    %132 = arith.addf %131, %130 : vector<2x32xf32>
    %133 = arith.divf %131, %132 : vector<2x32xf32>
    %134 = arith.mulf %125, %108 : vector<2x32xf32>
    %135 = arith.mulf %119, %127 : vector<2x32xf32>
    %136 = arith.addf %134, %135 : vector<2x32xf32>
    %137 = math.tanh %136 : vector<2x32xf32>
    %138 = arith.mulf %133, %137 : vector<2x32xf32>
    %139 = vector.extract_strided_slice %22 {offsets = [8, 0], sizes = [2, 128], strides = [1, 1]} : vector<10x128xf32> to vector<2x128xf32>
    %cst_29 = arith.constant dense<0.000000e+00> : vector<2x128xf32>
    %140 = tpu.matmul %138, %24, %cst_29 {dimension_numbers = #tpu.dot_dimension_numbers<[1], [0], [0], [1], [0, 0, 1, 1], [], []>} : vector<2x32xf32>, vector<32x128xf32>, vector<2x128xf32> -> vector<2x128xf32>
    %141 = arith.addf %139, %140 : vector<2x128xf32>
    %142 = vector.extract_strided_slice %141 {offsets = [0, 0], sizes = [2, 32], strides = [1, 1]} : vector<2x128xf32> to vector<2x32xf32>
    %143 = arith.negf %142 : vector<2x32xf32>
    %144 = math.exp %143 : vector<2x32xf32>
    %cst_30 = arith.constant 1.000000e+00 : f32
    %145 = vector.broadcast %cst_30 : f32 to vector<2x32xf32>
    %146 = arith.addf %145, %144 : vector<2x32xf32>
    %147 = arith.divf %145, %146 : vector<2x32xf32>
    %148 = vector.extract_strided_slice %141 {offsets = [0, 32], sizes = [2, 32], strides = [1, 1]} : vector<2x128xf32> to vector<2x32xf32>
    %149 = arith.negf %148 : vector<2x32xf32>
    %150 = math.exp %149 : vector<2x32xf32>
    %cst_31 = arith.constant 1.000000e+00 : f32
    %151 = vector.broadcast %cst_31 : f32 to vector<2x32xf32>
    %152 = arith.addf %151, %150 : vector<2x32xf32>
    %153 = arith.divf %151, %152 : vector<2x32xf32>
    %154 = vector.extract_strided_slice %141 {offsets = [0, 64], sizes = [2, 32], strides = [1, 1]} : vector<2x128xf32> to vector<2x32xf32>
    %155 = math.tanh %154 : vector<2x32xf32>
    %156 = vector.extract_strided_slice %141 {offsets = [0, 96], sizes = [2, 32], strides = [1, 1]} : vector<2x128xf32> to vector<2x32xf32>
    %157 = arith.negf %156 : vector<2x32xf32>
    %158 = math.exp %157 : vector<2x32xf32>
    %cst_32 = arith.constant 1.000000e+00 : f32
    %159 = vector.broadcast %cst_32 : f32 to vector<2x32xf32>
    %160 = arith.addf %159, %158 : vector<2x32xf32>
    %161 = arith.divf %159, %160 : vector<2x32xf32>
    %162 = arith.mulf %153, %136 : vector<2x32xf32>
    %163 = arith.mulf %147, %155 : vector<2x32xf32>
    %164 = arith.addf %162, %163 : vector<2x32xf32>
    %165 = math.tanh %164 : vector<2x32xf32>
    %166 = arith.mulf %161, %165 : vector<2x32xf32>
    %167 = tpu.concatenate %54, %82, %110, %138, %166 in 0 : vector<2x32xf32>, vector<2x32xf32>, vector<2x32xf32>, vector<2x32xf32>, vector<2x32xf32> -> vector<10x32xf32>
    %168 = tpu.concatenate %166, %138, %110, %82, %54 in 0 : vector<2x32xf32>, vector<2x32xf32>, vector<2x32xf32>, vector<2x32xf32>, vector<2x32xf32> -> vector<10x32xf32>
    %169 = vector.broadcast %2 : f32 to vector<10x32xf32>
    %170 = arith.mulf %169, %167 : vector<10x32xf32>
    %cst_33 = arith.constant 1.000000e+00 : f32
    %171 = arith.subf %cst_33, %2 : f32
    %172 = vector.broadcast %171 : f32 to vector<10x32xf32>
    %173 = arith.mulf %172, %168 : vector<10x32xf32>
    %174 = arith.addf %170, %173 : vector<10x32xf32>
    %c0_34 = arith.constant 0 : index
    %c0_35 = arith.constant 0 : index
    %c0_36 = arith.constant 0 : index
    %175 = vector.load %arg5[%c0_34, %c0_35, %c0_36] : memref<1x10x32xf32, #tpu.memory_space<vmem>>, vector<1x10x32xf32>
    %176 = vector.shape_cast %175 : vector<1x10x32xf32> to vector<10x32xf32>
    %177 = vector.shape_cast %174 : vector<10x32xf32> to vector<1x10x32xf32>
    tpu.vector_store %arg5[%c0_34, %c0_35, %c0_36], %177 {strides = array<i32>} : memref<1x10x32xf32, #tpu.memory_space<vmem>>, vector<1x10x32xf32>,
    return
  }
  func.func @transform_0(%arg0: i32) -> (i32, i32) {
    %c0_i32 = arith.constant 0 : i32
    %c0_i32_0 = arith.constant 0 : i32
    %c0_i32_1 = arith.constant 0 : i32
    return %c0_i32, %c0_i32_0 : i32, i32
  }
  func.func @transform_1(%arg0: i32) -> (i32, i32, i32) {
    %c0_i32 = arith.constant 0 : i32
    %c0_i32_0 = arith.constant 0 : i32
    %c0_i32_1 = arith.constant 0 : i32
    return %arg0, %c0_i32, %c0_i32_0 : i32, i32, i32
  }
  func.func @transform_2(%arg0: i32) -> (i32, i32, i32) {
    %c0_i32 = arith.constant 0 : i32
    %c0_i32_0 = arith.constant 0 : i32
    %c0_i32_1 = arith.constant 0 : i32
    return %arg0, %c0_i32, %c0_i32_0 : i32, i32, i32
  }
  func.func @transform_3(%arg0: i32) -> (i32, i32, i32) {
    %c0_i32 = arith.constant 0 : i32
    %c0_i32_0 = arith.constant 0 : i32
    %c0_i32_1 = arith.constant 0 : i32
    return %arg0, %c0_i32, %c0_i32_0 : i32, i32, i32
  }
  func.func @transform_4(%arg0: i32) -> (i32, i32, i32) {
    %c0_i32 = arith.constant 0 : i32
    %c0_i32_0 = arith.constant 0 : i32
    %c0_i32_1 = arith.constant 0 : i32
    return %arg0, %c0_i32, %c0_i32_0 : i32, i32, i32
  }
}

module attributes {stable_mosaic.version = 11 : i64} {
  func.func @_linear_softmax_kernel(%arg0: i32, %arg1: memref<10x64xf32, #tpu.memory_space<vmem>>, %arg2: memref<64x11xf32, #tpu.memory_space<vmem>>, %arg3: memref<1x11xf32, #tpu.memory_space<vmem>>, %arg4: memref<10x11xf32, #tpu.memory_space<vmem>>, %arg5: memref<10x11xf32, #tpu.memory_space<vmem>>) attributes {dimension_semantics = [#tpu.dimension_semantics<arbitrary>], iteration_bounds = array<i64: 1>, scalar_prefetch = 0 : i64, scratch_operands = 0 : i64, tpu.core_type = #tpu.core_type<tc>, window_params = [{pipeline_mode = #tpu.pipeline_mode<synchronous>, transform_indices = @transform_0, window_bounds = array<i64: 10, 64>}, {pipeline_mode = #tpu.pipeline_mode<synchronous>, transform_indices = @transform_1, window_bounds = array<i64: 64, 11>}, {pipeline_mode = #tpu.pipeline_mode<synchronous>, transform_indices = @transform_2, window_bounds = array<i64: 1, 11>}, {pipeline_mode = #tpu.pipeline_mode<synchronous>, transform_indices = @transform_3, window_bounds = array<i64: 10, 11>}, {pipeline_mode = #tpu.pipeline_mode<synchronous>, transform_indices = @transform_4, window_bounds = array<i64: 10, 11>}]} {
    %c0 = arith.constant 0 : index
    %c0_0 = arith.constant 0 : index
    %0 = vector.load %arg1[%c0, %c0_0] : memref<10x64xf32, #tpu.memory_space<vmem>>, vector<10x64xf32>
    %c0_1 = arith.constant 0 : index
    %c0_2 = arith.constant 0 : index
    %1 = vector.load %arg2[%c0_1, %c0_2] : memref<64x11xf32, #tpu.memory_space<vmem>>, vector<64x11xf32>
    %cst = arith.constant dense<0.000000e+00> : vector<10x11xf32>
    %2 = tpu.matmul %0, %1, %cst {dimension_numbers = #tpu.dot_dimension_numbers<[1], [0], [0], [1], [0, 0, 1, 1], [], []>} : vector<10x64xf32>, vector<64x11xf32>, vector<10x11xf32> -> vector<10x11xf32>
    %c0_3 = arith.constant 0 : index
    %c0_4 = arith.constant 0 : index
    %3 = vector.load %arg3[%c0_3, %c0_4] : memref<1x11xf32, #tpu.memory_space<vmem>>, vector<1x11xf32>
    %4 = vector.broadcast %3 : vector<1x11xf32> to vector<10x11xf32>
    %5 = arith.addf %2, %4 : vector<10x11xf32>
    %cst_5 = arith.constant dense<0xFF800000> : vector<10xf32>
    %6 = vector.multi_reduction <maximumf>, %5, %cst_5 [1] : vector<10x11xf32> to vector<10xf32>
    %7 = vector.shape_cast %6 : vector<10xf32> to vector<10x1xf32>
    %8 = vector.broadcast %7 : vector<10x1xf32> to vector<10x11xf32>
    %9 = arith.subf %5, %8 : vector<10x11xf32>
    %10 = math.exp %9 : vector<10x11xf32>
    %cst_6 = arith.constant dense<0.000000e+00> : vector<10xf32>
    %11 = vector.multi_reduction <add>, %10, %cst_6 [1] : vector<10x11xf32> to vector<10xf32>
    %12 = vector.shape_cast %11 : vector<10xf32> to vector<10x1xf32>
    %13 = vector.broadcast %12 : vector<10x1xf32> to vector<10x11xf32>
    %14 = arith.divf %10, %13 : vector<10x11xf32>
    %c0_7 = arith.constant 0 : index
    %c0_8 = arith.constant 0 : index
    %15 = vector.load %arg4[%c0_7, %c0_8] : memref<10x11xf32, #tpu.memory_space<vmem>>, vector<10x11xf32>
    tpu.vector_store %arg4[%c0_7, %c0_8], %14 {strides = array<i32>} : memref<10x11xf32, #tpu.memory_space<vmem>>, vector<10x11xf32>,
    %16 = math.log %12 : vector<10x1xf32>
    %17 = vector.broadcast %16 : vector<10x1xf32> to vector<10x11xf32>
    %18 = arith.subf %9, %17 : vector<10x11xf32>
    %c0_9 = arith.constant 0 : index
    %c0_10 = arith.constant 0 : index
    %19 = vector.load %arg5[%c0_9, %c0_10] : memref<10x11xf32, #tpu.memory_space<vmem>>, vector<10x11xf32>
    tpu.vector_store %arg5[%c0_9, %c0_10], %18 {strides = array<i32>} : memref<10x11xf32, #tpu.memory_space<vmem>>, vector<10x11xf32>,
    return
  }
  func.func @transform_0(%arg0: i32) -> (i32, i32) {
    %c0_i32 = arith.constant 0 : i32
    %c0_i32_0 = arith.constant 0 : i32
    %c0_i32_1 = arith.constant 0 : i32
    return %c0_i32, %c0_i32_0 : i32, i32
  }
  func.func @transform_1(%arg0: i32) -> (i32, i32) {
    %c0_i32 = arith.constant 0 : i32
    %c0_i32_0 = arith.constant 0 : i32
    %c0_i32_1 = arith.constant 0 : i32
    return %c0_i32, %c0_i32_0 : i32, i32
  }
  func.func @transform_2(%arg0: i32) -> (i32, i32) {
    %c0_i32 = arith.constant 0 : i32
    %c0_i32_0 = arith.constant 0 : i32
    %c0_i32_1 = arith.constant 0 : i32
    return %c0_i32, %c0_i32_0 : i32, i32
  }
  func.func @transform_3(%arg0: i32) -> (i32, i32) {
    %c0_i32 = arith.constant 0 : i32
    %c0_i32_0 = arith.constant 0 : i32
    %c0_i32_1 = arith.constant 0 : i32
    return %c0_i32, %c0_i32_0 : i32, i32
  }
  func.func @transform_4(%arg0: i32) -> (i32, i32) {
    %c0_i32 = arith.constant 0 : i32
    %c0_i32_0 = arith.constant 0 : i32
    %c0_i32_1 = arith.constant 0 : i32
    return %c0_i32, %c0_i32_0 : i32, i32
  }
}

</mosaic_0001>

<llo_original>
// kernel: net_forward.7
$region0: #{net_forward.7}
  #allocation0 [shape = 'u32[]', space=smem, size = 0x4, offset = 0x4, fixed_abs, tag = 'smem constant byte address 0x4 - core index']
  #allocation1 [shape = 'u32[144,128]{1,0:T(1,128)}', space=vmem, size = 0x12000, scoped, tag = 'internal scratch']
  %s0 = inlined_call_operand.hbm [shape: bf16[10,9], index: 0, kind: input, shape index: {}]
  %s1 = inlined_call_operand.vmem [shape: bf16[9,2048], index: 1, kind: input, shape index: {}]
  %s2 = inlined_call_operand.vmem [shape: f32[10,1], index: 2, kind: input, shape index: {}]
  %s3 = inlined_call_operand.vmem [shape: f32[10,2048], index: 3, kind: output, shape index: {}]
  %s4 = sld [smem:[#allocation0]]
  $region26: #{net_forward.7} parent=0
    _
  %s6 = ssub.s32 1, %s4
  %s7 = scalar_select 0, %s6, %s4
  $region1: #{net_forward.7} parent=0
    #allocation2 [shape = 'u8[4096]{0}', space=vmem, size = 0x1000, scoped, tag = 'input window, operand 0, single buffered']
    #allocation3 [shape = 's32[1]{0}', space=sflag, size = 0x4, scoped, tag = 'scoped memory for net_forward.7']
    %8 = vsyncpa [#allocation3], 0
    // Predicated region
    $region2: #{net_forward.7} parent=1 // pred_check
      _
    $region3: #{net_forward.7} parent=1 // pred_check_branch
      %10 = sbr.rel (0) target = $region5
    $region4: #{net_forward.7} parent=1 // pred_region
      %s12 = ssub.s32 128, 128
      %13 = vsyncadd [#allocation3], %s12
      %s14 = sshll.u32 [#allocation2], 4
      %s15 = int_to_ptr.vmem [resolvable:$true] %s14
      %20 = dma.hbm_to_vmem [thread:$0]  %s0, 128, %s15, [#allocation3], 64, 64, 4
    $region5: #{net_forward.7} parent=1 // pred_fallthru
      _
    // Predicated region
    $region6: #{net_forward.7} parent=1 // pred_check
      _
    $region7: #{net_forward.7} parent=1 // pred_check_branch
      %22 = sbr.rel (0) target = $region9
    $region8: #{net_forward.7} parent=1 // pred_region
      _
    $region9: #{net_forward.7} parent=1 // pred_fallthru
      _
    // Predicated region
    $region10: #{net_forward.7} parent=1 // pred_check
      _
    $region11: #{net_forward.7} parent=1 // pred_check_branch
      %24 = sbr.rel (0) target = $region13
    $region12: #{net_forward.7} parent=1 // pred_region
      _
    $region13: #{net_forward.7} parent=1 // pred_fallthru
      _
    // Predicated region
    $region14: #{net_forward.7} parent=1 // pred_check
      _
    $region15: #{net_forward.7} parent=1 // pred_check_branch
      %26 = sbr.rel (0) target = $region17
    $region16: #{net_forward.7} parent=1 // pred_region
      %27 = dma.done [#allocation3], 128
    $region17: #{net_forward.7} parent=1 // pred_fallthru
      _
    %v29 = vld [vmem:[#allocation2] sm:$0xf]
    %v30 = vld [vmem:[#allocation2 + $0x4] sm:$0x1]
    %v31 = vld [vmem:[%s1] sm:$0xff]
    %v32 = vld [vmem:[%s1 + $0x8] sm:$0xff]
    %v33 = vld [vmem:[%s1 + $0x10] sm:$0xff]
    %v34 = vld [vmem:[%s1 + $0x18] sm:$0xff]
    %v35 = vld [vmem:[%s1 + $0x20] sm:$0xff]
    %v36 = vld [vmem:[%s1 + $0x28] sm:$0xff]
    %v37 = vld [vmem:[%s1 + $0x30] sm:$0xff]
    %v38 = vld [vmem:[%s1 + $0x38] sm:$0xff]
    %v39 = vld [vmem:[%s1 + $0x40] sm:$0x11]
    %v40 = vld [vmem:[%s1 + $0x48] sm:$0x11]
    %v41 = vld [vmem:[%s1 + $0x50] sm:$0x11]
    %v42 = vld [vmem:[%s1 + $0x58] sm:$0x11]
    %v43 = vld [vmem:[%s1 + $0x60] sm:$0x11]
    %v44 = vld [vmem:[%s1 + $0x68] sm:$0x11]
    %v45 = vld [vmem:[%s1 + $0x70] sm:$0x11]
    %v46 = vld [vmem:[%s1 + $0x78] sm:$0x11]
    %v47 = vld [vmem:[%s2] sm:$0xff]
    %v48 = vld [vmem:[%s2 + $0x8] sm:$0x3]
    %50 = vset.pattern.permute.xlu0 0
    %51 = vperm.xlu0 %50, %v47
    %v52 = vpop.permute.xlu0 %51
    %55 = vset.pattern.permute.xlu0 0
    %56 = vperm.xlu0 %55, %v48
    %v57 = vpop.permute.xlu0 %56
    %v61 = vunpack.c.l.b16 %v29
    %v62 = vunpack.c.l.b16 %v30
    %v63 = vpack.c.b16 %v62, %v61
    %v80 = vunpack.c.l.b16 %v31
    %v81 = vunpack.c.h.b16 %v31
    %v82 = vunpack.c.l.b16 %v32
    %v83 = vunpack.c.h.b16 %v32
    %v84 = vunpack.c.l.b16 %v33
    %v85 = vunpack.c.h.b16 %v33
    %v86 = vunpack.c.l.b16 %v34
    %v87 = vunpack.c.h.b16 %v34
    %v88 = vunpack.c.l.b16 %v35
    %v89 = vunpack.c.h.b16 %v35
    %v90 = vunpack.c.l.b16 %v36
    %v91 = vunpack.c.h.b16 %v36
    %v92 = vunpack.c.l.b16 %v37
    %v93 = vunpack.c.h.b16 %v37
    %v94 = vunpack.c.l.b16 %v38
    %v95 = vunpack.c.h.b16 %v38
    %v96 = vunpack.c.l.b16 %v39
    %v97 = vunpack.c.h.b16 %v39
    %v98 = vunpack.c.l.b16 %v40
    %v99 = vunpack.c.h.b16 %v40
    %v100 = vunpack.c.l.b16 %v41
    %v101 = vunpack.c.h.b16 %v41
    %v102 = vunpack.c.l.b16 %v42
    %v103 = vunpack.c.h.b16 %v42
    %v104 = vunpack.c.l.b16 %v43
    %v105 = vunpack.c.h.b16 %v43
    %v106 = vunpack.c.l.b16 %v44
    %v107 = vunpack.c.h.b16 %v44
    %v108 = vunpack.c.l.b16 %v45
    %v109 = vunpack.c.h.b16 %v45
    %v110 = vunpack.c.l.b16 %v46
    %v111 = vunpack.c.h.b16 %v46
    %v112 = vpack.c.b16 %v96, %v80
    %v113 = vpack.c.b16 %v97, %v81
    %v114 = vpack.c.b16 %v98, %v82
    %v115 = vpack.c.b16 %v99, %v83
    %v116 = vpack.c.b16 %v100, %v84
    %v117 = vpack.c.b16 %v101, %v85
    %v118 = vpack.c.b16 %v102, %v86
    %v119 = vpack.c.b16 %v103, %v87
    %v120 = vpack.c.b16 %v104, %v88
    %v121 = vpack.c.b16 %v105, %v89
    %v122 = vpack.c.b16 %v106, %v90
    %v123 = vpack.c.b16 %v107, %v91
    %v124 = vpack.c.b16 %v108, %v92
    %v125 = vpack.c.b16 %v109, %v93
    %v126 = vpack.c.b16 %v110, %v94
    %v127 = vpack.c.b16 %v111, %v95
    %vm128 = vcmask 72704
    %v130 = vsel %vm128, %v63, 0
    %vm132 = vcmask 1043456
    %vm133 = vcmask 1044480
    %v134 = vsel %vm132, 4294967295, 65535
    %v135 = vsel %vm133, %v134, 0
    %v137 = vand.u32 %v112, %v135
    %v140 = vand.u32 %v113, %v135
    %v143 = vand.u32 %v114, %v135
    %v146 = vand.u32 %v115, %v135
    %v149 = vand.u32 %v116, %v135
    %v152 = vand.u32 %v117, %v135
    %v155 = vand.u32 %v118, %v135
    %v158 = vand.u32 %v119, %v135
    %v161 = vand.u32 %v120, %v135
    %v164 = vand.u32 %v121, %v135
    %v167 = vand.u32 %v122, %v135
    %v170 = vand.u32 %v123, %v135
    %v173 = vand.u32 %v124, %v135
    %v176 = vand.u32 %v125, %v135
    %v179 = vand.u32 %v126, %v135
    %v182 = vand.u32 %v127, %v135
    %184 = vmatprep.subr.bf16.mxu0 %v140
    %185 = vmatpush1.bf16.msra.mxu0 %v137
    %186 = vmatprep.subr.bf16.mxu0 0
    %187 = vmatpush1.bf16.msra.mxu0 0
    %188 = vmatprep.subr.bf16.mxu0 0
    %189 = vmatpush1.bf16.msra.mxu0 0
    %190 = vmatprep.subr.bf16.mxu0 0
    %191 = vmatpush1.bf16.msra.mxu0 0
    %192 = vmatprep.subr.bf16.mxu0 0
    %193 = vmatpush1.bf16.msra.mxu0 0
    %194 = vmatprep.subr.bf16.mxu0 0
    %195 = vmatpush1.bf16.msra.mxu0 0
    %196 = vmatprep.subr.bf16.mxu0 0
    %197 = vmatpush1.bf16.msra.mxu0 0
    %198 = vmatprep.subr.bf16.mxu0 0
    %199 = vmatpush1.bf16.msra.mxu0 0
    %200 = vmatprep.subr.bf16.mxu0 0
    %201 = vmatpush1.bf16.msra.mxu0 0
    %202 = vmatprep.subr.bf16.mxu0 0
    %203 = vmatpush1.bf16.msra.mxu0 0
    %204 = vmatprep.subr.bf16.mxu0 0
    %205 = vmatpush1.bf16.msra.mxu0 0
    %206 = vmatprep.subr.bf16.mxu0 0
    %207 = vmatpush1.bf16.msra.mxu0 0
    %208 = vmatprep.subr.bf16.mxu0 0
    %209 = vmatpush1.bf16.msra.mxu0 0
    %210 = vmatprep.subr.bf16.mxu0 0
    %211 = vmatpush1.bf16.msra.mxu0 0
    %212 = vmatprep.subr.bf16.mxu0 0
    %213 = vmatpush1.bf16.msra.mxu0 0
    %214 = vmatprep.subr.bf16.mxu0 0
    %215 = vmatpush1.bf16.msra.mxu0 0
    %216 = vmatprep.mubr.bf16.mxu0 0
    %217 = vmatmul.mubr.bf16.gmra.mrb[0].mxu0 %v130
    %v218 = vpop.f32.mrb[0].mxu0
    %v219 = vadd.f32 %v52, %v218
    %v220 = vpop.f32.mrb[0].mxu0
    %v221 = vadd.f32 %v52, %v220
    %v222 = vpop.f32.mrb[0].mxu0
    %v223 = vadd.f32 %v57, %v222
    %v224 = vpop.f32.mrb[0].mxu0
    %v225 = vadd.f32 %v57, %v224
    %226 = vdwg.mxu0
    %227 = vmatprep.subr.bf16.mxu0 %v146
    %228 = vmatpush1.bf16.msra.mxu0 %v143
    %229 = vmatprep.subr.bf16.mxu0 0
    %230 = vmatpush1.bf16.msra.mxu0 0
    %231 = vmatprep.subr.bf16.mxu0 0
    %232 = vmatpush1.bf16.msra.mxu0 0
    %233 = vmatprep.subr.bf16.mxu0 0
    %234 = vmatpush1.bf16.msra.mxu0 0
    %235 = vmatprep.subr.bf16.mxu0 0
    %236 = vmatpush1.bf16.msra.mxu0 0
    %237 = vmatprep.subr.bf16.mxu0 0
    %238 = vmatpush1.bf16.msra.mxu0 0
    %239 = vmatprep.subr.bf16.mxu0 0
    %240 = vmatpush1.bf16.msra.mxu0 0
    %241 = vmatprep.subr.bf16.mxu0 0
    %242 = vmatpush1.bf16.msra.mxu0 0
    %243 = vmatprep.subr.bf16.mxu0 0
    %244 = vmatpush1.bf16.msra.mxu0 0
    %245 = vmatprep.subr.bf16.mxu0 0
    %246 = vmatpush1.bf16.msra.mxu0 0
    %247 = vmatprep.subr.bf16.mxu0 0
    %248 = vmatpush1.bf16.msra.mxu0 0
    %249 = vmatprep.subr.bf16.mxu0 0
    %250 = vmatpush1.bf16.msra.mxu0 0
    %251 = vmatprep.subr.bf16.mxu0 0
    %252 = vmatpush1.bf16.msra.mxu0 0
    %253 = vmatprep.subr.bf16.mxu0 0
    %254 = vmatpush1.bf16.msra.mxu0 0
    %255 = vmatprep.subr.bf16.mxu0 0
    %256 = vmatpush1.bf16.msra.mxu0 0
    %257 = vmatprep.subr.bf16.mxu0 0
    %258 = vmatpush1.bf16.msra.mxu0 0
    %259 = vmatprep.mubr.bf16.mxu0 0
    %260 = vmatmul.mubr.bf16.gmra.mrb[0].mxu0 %v130
    %v261 = vpop.f32.mrb[0].mxu0
    %v262 = vadd.f32 %v52, %v261
    %v263 = vpop.f32.mrb[0].mxu0
    %v264 = vadd.f32 %v52, %v263
    %v265 = vpop.f32.mrb[0].mxu0
    %v266 = vadd.f32 %v57, %v265
    %v267 = vpop.f32.mrb[0].mxu0
    %v268 = vadd.f32 %v57, %v267
    %269 = vdwg.mxu0
    %270 = vmatprep.subr.bf16.mxu0 %v152
    %271 = vmatpush1.bf16.msra.mxu0 %v149
    %272 = vmatprep.subr.bf16.mxu0 0
    %273 = vmatpush1.bf16.msra.mxu0 0
    %274 = vmatprep.subr.bf16.mxu0 0
    %275 = vmatpush1.bf16.msra.mxu0 0
    %276 = vmatprep.subr.bf16.mxu0 0
    %277 = vmatpush1.bf16.msra.mxu0 0
    %278 = vmatprep.subr.bf16.mxu0 0
    %279 = vmatpush1.bf16.msra.mxu0 0
    %280 = vmatprep.subr.bf16.mxu0 0
    %281 = vmatpush1.bf16.msra.mxu0 0
    %282 = vmatprep.subr.bf16.mxu0 0
    %283 = vmatpush1.bf16.msra.mxu0 0
    %284 = vmatprep.subr.bf16.mxu0 0
    %285 = vmatpush1.bf16.msra.mxu0 0
    %286 = vmatprep.subr.bf16.mxu0 0
    %287 = vmatpush1.bf16.msra.mxu0 0
    %288 = vmatprep.subr.bf16.mxu0 0
    %289 = vmatpush1.bf16.msra.mxu0 0
    %290 = vmatprep.subr.bf16.mxu0 0
    %291 = vmatpush1.bf16.msra.mxu0 0
    %292 = vmatprep.subr.bf16.mxu0 0
    %293 = vmatpush1.bf16.msra.mxu0 0
    %294 = vmatprep.subr.bf16.mxu0 0
    %295 = vmatpush1.bf16.msra.mxu0 0
    %296 = vmatprep.subr.bf16.mxu0 0
    %297 = vmatpush1.bf16.msra.mxu0 0
    %298 = vmatprep.subr.bf16.mxu0 0
    %299 = vmatpush1.bf16.msra.mxu0 0
    %300 = vmatprep.subr.bf16.mxu0 0
    %301 = vmatpush1.bf16.msra.mxu0 0
    %302 = vmatprep.mubr.bf16.mxu0 0
    %303 = vmatmul.mubr.bf16.gmra.mrb[0].mxu0 %v130
    %v304 = vpop.f32.mrb[0].mxu0
    %v305 = vadd.f32 %v52, %v304
    %v306 = vpop.f32.mrb[0].mxu0
    %v307 = vadd.f32 %v52, %v306
    %v308 = vpop.f32.mrb[0].mxu0
    %v309 = vadd.f32 %v57, %v308
    %v310 = vpop.f32.mrb[0].mxu0
    %v311 = vadd.f32 %v57, %v310
    %312 = vdwg.mxu0
    %313 = vmatprep.subr.bf16.mxu0 %v158
    %314 = vmatpush1.bf16.msra.mxu0 %v155
    %315 = vmatprep.subr.bf16.mxu0 0
    %316 = vmatpush1.bf16.msra.mxu0 0
    %317 = vmatprep.subr.bf16.mxu0 0
    %318 = vmatpush1.bf16.msra.mxu0 0
    %319 = vmatprep.subr.bf16.mxu0 0
    %320 = vmatpush1.bf16.msra.mxu0 0
    %321 = vmatprep.subr.bf16.mxu0 0
    %322 = vmatpush1.bf16.msra.mxu0 0
    %323 = vmatprep.subr.bf16.mxu0 0
    %324 = vmatpush1.bf16.msra.mxu0 0
    %325 = vmatprep.subr.bf16.mxu0 0
    %326 = vmatpush1.bf16.msra.mxu0 0
    %327 = vmatprep.subr.bf16.mxu0 0
    %328 = vmatpush1.bf16.msra.mxu0 0
    %329 = vmatprep.subr.bf16.mxu0 0
    %330 = vmatpush1.bf16.msra.mxu0 0
    %331 = vmatprep.subr.bf16.mxu0 0
    %332 = vmatpush1.bf16.msra.mxu0 0
    %333 = vmatprep.subr.bf16.mxu0 0
    %334 = vmatpush1.bf16.msra.mxu0 0
    %335 = vmatprep.subr.bf16.mxu0 0
    %336 = vmatpush1.bf16.msra.mxu0 0
    %337 = vmatprep.subr.bf16.mxu0 0
    %338 = vmatpush1.bf16.msra.mxu0 0
    %339 = vmatprep.subr.bf16.mxu0 0
    %340 = vmatpush1.bf16.msra.mxu0 0
    %341 = vmatprep.subr.bf16.mxu0 0
    %342 = vmatpush1.bf16.msra.mxu0 0
    %343 = vmatprep.subr.bf16.mxu0 0
    %344 = vmatpush1.bf16.msra.mxu0 0
    %345 = vmatprep.mubr.bf16.mxu0 0
    %346 = vmatmul.mubr.bf16.gmra.mrb[0].mxu0 %v130
    %v347 = vpop.f32.mrb[0].mxu0
    %v348 = vadd.f32 %v52, %v347
    %v349 = vpop.f32.mrb[0].mxu0
    %v350 = vadd.f32 %v52, %v349
    %v351 = vpop.f32.mrb[0].mxu0
    %v352 = vadd.f32 %v57, %v351
    %v353 = vpop.f32.mrb[0].mxu0
    %v354 = vadd.f32 %v57, %v353
    %355 = vdwg.mxu0
    %356 = vmatprep.subr.bf16.mxu0 %v164
    %357 = vmatpush1.bf16.msra.mxu0 %v161
    %358 = vmatprep.subr.bf16.mxu0 0
    %359 = vmatpush1.bf16.msra.mxu0 0
    %360 = vmatprep.subr.bf16.mxu0 0
    %361 = vmatpush1.bf16.msra.mxu0 0
    %362 = vmatprep.subr.bf16.mxu0 0
    %363 = vmatpush1.bf16.msra.mxu0 0
    %364 = vmatprep.subr.bf16.mxu0 0
    %365 = vmatpush1.bf16.msra.mxu0 0
    %366 = vmatprep.subr.bf16.mxu0 0
    %367 = vmatpush1.bf16.msra.mxu0 0
    %368 = vmatprep.subr.bf16.mxu0 0
    %369 = vmatpush1.bf16.msra.mxu0 0
    %370 = vmatprep.subr.bf16.mxu0 0
    %371 = vmatpush1.bf16.msra.mxu0 0
    %372 = vmatprep.subr.bf16.mxu0 0
    %373 = vmatpush1.bf16.msra.mxu0 0
    %374 = vmatprep.subr.bf16.mxu0 0
    %375 = vmatpush1.bf16.msra.mxu0 0
    %376 = vmatprep.subr.bf16.mxu0 0
    %377 = vmatpush1.bf16.msra.mxu0 0
    %378 = vmatprep.subr.bf16.mxu0 0
    %379 = vmatpush1.bf16.msra.mxu0 0
    %380 = vmatprep.subr.bf16.mxu0 0
    %381 = vmatpush1.bf16.msra.mxu0 0
    %382 = vmatprep.subr.bf16.mxu0 0
    %383 = vmatpush1.bf16.msra.mxu0 0
    %384 = vmatprep.subr.bf16.mxu0 0
    %385 = vmatpush1.bf16.msra.mxu0 0
    %386 = vmatprep.subr.bf16.mxu0 0
    %387 = vmatpush1.bf16.msra.mxu0 0
    %388 = vmatprep.mubr.bf16.mxu0 0
    %389 = vmatmul.mubr.bf16.gmra.mrb[0].mxu0 %v130
    %v390 = vpop.f32.mrb[0].mxu0
    %v391 = vadd.f32 %v52, %v390
    %v392 = vpop.f32.mrb[0].mxu0
    %v393 = vadd.f32 %v52, %v392
    %v394 = vpop.f32.mrb[0].mxu0
    %v395 = vadd.f32 %v57, %v394
    %v396 = vpop.f32.mrb[0].mxu0
    %v397 = vadd.f32 %v57, %v396
    %398 = vdwg.mxu0
    %399 = vmatprep.subr.bf16.mxu0 %v170
    %400 = vmatpush1.bf16.msra.mxu0 %v167
    %401 = vmatprep.subr.bf16.mxu0 0
    %402 = vmatpush1.bf16.msra.mxu0 0
    %403 = vmatprep.subr.bf16.mxu0 0
    %404 = vmatpush1.bf16.msra.mxu0 0
    %405 = vmatprep.subr.bf16.mxu0 0
    %406 = vmatpush1.bf16.msra.mxu0 0
    %407 = vmatprep.subr.bf16.mxu0 0
    %408 = vmatpush1.bf16.msra.mxu0 0
    %409 = vmatprep.subr.bf16.mxu0 0
    %410 = vmatpush1.bf16.msra.mxu0 0
    %411 = vmatprep.subr.bf16.mxu0 0
    %412 = vmatpush1.bf16.msra.mxu0 0
    %413 = vmatprep.subr.bf16.mxu0 0
    %414 = vmatpush1.bf16.msra.mxu0 0
    %415 = vmatprep.subr.bf16.mxu0 0
    %416 = vmatpush1.bf16.msra.mxu0 0
    %417 = vmatprep.subr.bf16.mxu0 0
    %418 = vmatpush1.bf16.msra.mxu0 0
    %419 = vmatprep.subr.bf16.mxu0 0
    %420 = vmatpush1.bf16.msra.mxu0 0
    %421 = vmatprep.subr.bf16.mxu0 0
    %422 = vmatpush1.bf16.msra.mxu0 0
    %423 = vmatprep.subr.bf16.mxu0 0
    %424 = vmatpush1.bf16.msra.mxu0 0
    %425 = vmatprep.subr.bf16.mxu0 0
    %426 = vmatpush1.bf16.msra.mxu0 0
    %427 = vmatprep.subr.bf16.mxu0 0
    %428 = vmatpush1.bf16.msra.mxu0 0
    %429 = vmatprep.subr.bf16.mxu0 0
    %430 = vmatpush1.bf16.msra.mxu0 0
    %431 = vmatprep.mubr.bf16.mxu0 0
    %432 = vmatmul.mubr.bf16.gmra.mrb[0].mxu0 %v130
    %v433 = vpop.f32.mrb[0].mxu0
    %v434 = vadd.f32 %v52, %v433
    %v435 = vpop.f32.mrb[0].mxu0
    %v436 = vadd.f32 %v52, %v435
    %v437 = vpop.f32.mrb[0].mxu0
    %v438 = vadd.f32 %v57, %v437
    %v439 = vpop.f32.mrb[0].mxu0
    %v440 = vadd.f32 %v57, %v439
    %441 = vdwg.mxu0
    %442 = vmatprep.subr.bf16.mxu0 %v176
    %443 = vmatpush1.bf16.msra.mxu0 %v173
    %444 = vmatprep.subr.bf16.mxu0 0
    %445 = vmatpush1.bf16.msra.mxu0 0
    %446 = vmatprep.subr.bf16.mxu0 0
    %447 = vmatpush1.bf16.msra.mxu0 0
    %448 = vmatprep.subr.bf16.mxu0 0
    %449 = vmatpush1.bf16.msra.mxu0 0
    %450 = vmatprep.subr.bf16.mxu0 0
    %451 = vmatpush1.bf16.msra.mxu0 0
    %452 = vmatprep.subr.bf16.mxu0 0
    %453 = vmatpush1.bf16.msra.mxu0 0
    %454 = vmatprep.subr.bf16.mxu0 0
    %455 = vmatpush1.bf16.msra.mxu0 0
    %456 = vmatprep.subr.bf16.mxu0 0
    %457 = vmatpush1.bf16.msra.mxu0 0
    %458 = vmatprep.subr.bf16.mxu0 0
    %459 = vmatpush1.bf16.msra.mxu0 0
    %460 = vmatprep.subr.bf16.mxu0 0
    %461 = vmatpush1.bf16.msra.mxu0 0
    %462 = vmatprep.subr.bf16.mxu0 0
    %463 = vmatpush1.bf16.msra.mxu0 0
    %464 = vmatprep.subr.bf16.mxu0 0
    %465 = vmatpush1.bf16.msra.mxu0 0
    %466 = vmatprep.subr.bf16.mxu0 0
    %467 = vmatpush1.bf16.msra.mxu0 0
    %468 = vmatprep.subr.bf16.mxu0 0
    %469 = vmatpush1.bf16.msra.mxu0 0
    %470 = vmatprep.subr.bf16.mxu0 0
    %471 = vmatpush1.bf16.msra.mxu0 0
    %472 = vmatprep.subr.bf16.mxu0 0
    %473 = vmatpush1.bf16.msra.mxu0 0
    %474 = vmatprep.mubr.bf16.mxu0 0
    %475 = vmatmul.mubr.bf16.gmra.mrb[0].mxu0 %v130
    %v476 = vpop.f32.mrb[0].mxu0
    %v477 = vadd.f32 %v52, %v476
    %v478 = vpop.f32.mrb[0].mxu0
    %v479 = vadd.f32 %v52, %v478
    %v480 = vpop.f32.mrb[0].mxu0
    %v481 = vadd.f32 %v57, %v480
    %v482 = vpop.f32.mrb[0].mxu0
    %v483 = vadd.f32 %v57, %v482
    %484 = vdwg.mxu0
    %485 = vmatprep.subr.bf16.mxu0 %v182
    %486 = vmatpush1.bf16.msra.mxu0 %v179
    %487 = vmatprep.subr.bf16.mxu0 0
    %488 = vmatpush1.bf16.msra.mxu0 0
    %489 = vmatprep.subr.bf16.mxu0 0
    %490 = vmatpush1.bf16.msra.mxu0 0
    %491 = vmatprep.subr.bf16.mxu0 0
    %492 = vmatpush1.bf16.msra.mxu0 0
    %493 = vmatprep.subr.bf16.mxu0 0
    %494 = vmatpush1.bf16.msra.mxu0 0
    %495 = vmatprep.subr.bf16.mxu0 0
    %496 = vmatpush1.bf16.msra.mxu0 0
    %497 = vmatprep.subr.bf16.mxu0 0
    %498 = vmatpush1.bf16.msra.mxu0 0
    %499 = vmatprep.subr.bf16.mxu0 0
    %500 = vmatpush1.bf16.msra.mxu0 0
    %501 = vmatprep.subr.bf16.mxu0 0
    %502 = vmatpush1.bf16.msra.mxu0 0
    %503 = vmatprep.subr.bf16.mxu0 0
    %504 = vmatpush1.bf16.msra.mxu0 0
    %505 = vmatprep.subr.bf16.mxu0 0
    %506 = vmatpush1.bf16.msra.mxu0 0
    %507 = vmatprep.subr.bf16.mxu0 0
    %508 = vmatpush1.bf16.msra.mxu0 0
    %509 = vmatprep.subr.bf16.mxu0 0
    %510 = vmatpush1.bf16.msra.mxu0 0
    %511 = vmatprep.subr.bf16.mxu0 0
    %512 = vmatpush1.bf16.msra.mxu0 0
    %513 = vmatprep.subr.bf16.mxu0 0
    %514 = vmatpush1.bf16.msra.mxu0 0
    %515 = vmatprep.subr.bf16.mxu0 0
    %516 = vmatpush1.bf16.msra.mxu0 0
    %517 = vmatprep.mubr.bf16.mxu0 0
    %518 = vmatmul.mubr.bf16.gmra.mrb[0].mxu0 %v130
    %v519 = vpop.f32.mrb[0].mxu0
    %v520 = vadd.f32 %v52, %v519
    %v521 = vpop.f32.mrb[0].mxu0
    %v522 = vadd.f32 %v52, %v521
    %v523 = vpop.f32.mrb[0].mxu0
    %v524 = vadd.f32 %v57, %v523
    %v525 = vpop.f32.mrb[0].mxu0
    %v526 = vadd.f32 %v57, %v525
    %527 = vdwg.mxu0
    %v528 = vmax.f32 %v219, 0.0
    %v529 = vmax.f32 %v221, 0.0
    %v530 = vmax.f32 %v262, 0.0
    %v531 = vmax.f32 %v264, 0.0
    %v532 = vmax.f32 %v305, 0.0
    %v533 = vmax.f32 %v307, 0.0
    %v534 = vmax.f32 %v348, 0.0
    %v535 = vmax.f32 %v350, 0.0
    %v536 = vmax.f32 %v391, 0.0
    %v537 = vmax.f32 %v393, 0.0
    %v538 = vmax.f32 %v434, 0.0
    %v539 = vmax.f32 %v436, 0.0
    %v540 = vmax.f32 %v477, 0.0
    %v541 = vmax.f32 %v479, 0.0
    %v542 = vmax.f32 %v520, 0.0
    %v543 = vmax.f32 %v522, 0.0
    %v544 = vmax.f32 %v223, 0.0
    %v545 = vmax.f32 %v225, 0.0
    %v546 = vmax.f32 %v266, 0.0
    %v547 = vmax.f32 %v268, 0.0
    %v548 = vmax.f32 %v309, 0.0
    %v549 = vmax.f32 %v311, 0.0
    %v550 = vmax.f32 %v352, 0.0
    %v551 = vmax.f32 %v354, 0.0
    %v552 = vmax.f32 %v395, 0.0
    %v553 = vmax.f32 %v397, 0.0
    %v554 = vmax.f32 %v438, 0.0
    %v555 = vmax.f32 %v440, 0.0
    %v556 = vmax.f32 %v481, 0.0
    %v557 = vmax.f32 %v483, 0.0
    %v558 = vmax.f32 %v524, 0.0
    %v559 = vmax.f32 %v526, 0.0
    %560 = vst [vmem:[%s3] sm:$0xff] %v528
    %561 = vst [vmem:[%s3 + $0x8] sm:$0xff] %v529
    %562 = vst [vmem:[%s3 + $0x10] sm:$0xff] %v530
    %563 = vst [vmem:[%s3 + $0x18] sm:$0xff] %v531
    %564 = vst [vmem:[%s3 + $0x20] sm:$0xff] %v532
    %565 = vst [vmem:[%s3 + $0x28] sm:$0xff] %v533
    %566 = vst [vmem:[%s3 + $0x30] sm:$0xff] %v534
    %567 = vst [vmem:[%s3 + $0x38] sm:$0xff] %v535
    %568 = vst [vmem:[%s3 + $0x40] sm:$0xff] %v536
    %569 = vst [vmem:[%s3 + $0x48] sm:$0xff] %v537
    %570 = vst [vmem:[%s3 + $0x50] sm:$0xff] %v538
    %571 = vst [vmem:[%s3 + $0x58] sm:$0xff] %v539
    %572 = vst [vmem:[%s3 + $0x60] sm:$0xff] %v540
    %573 = vst [vmem:[%s3 + $0x68] sm:$0xff] %v541
    %574 = vst [vmem:[%s3 + $0x70] sm:$0xff] %v542
    %575 = vst [vmem:[%s3 + $0x78] sm:$0xff] %v543
    %576 = vst [vmem:[%s3 + $0x80] sm:$0x3] %v544
    %577 = vst [vmem:[%s3 + $0x88] sm:$0x3] %v545
    %578 = vst [vmem:[%s3 + $0x90] sm:$0x3] %v546
    %579 = vst [vmem:[%s3 + $0x98] sm:$0x3] %v547
    %580 = vst [vmem:[%s3 + $0xa0] sm:$0x3] %v548
    %581 = vst [vmem:[%s3 + $0xa8] sm:$0x3] %v549
    %582 = vst [vmem:[%s3 + $0xb0] sm:$0x3] %v550
    %583 = vst [vmem:[%s3 + $0xb8] sm:$0x3] %v551
    %584 = vst [vmem:[%s3 + $0xc0] sm:$0x3] %v552
    %585 = vst [vmem:[%s3 + $0xc8] sm:$0x3] %v553
    %586 = vst [vmem:[%s3 + $0xd0] sm:$0x3] %v554
    %587 = vst [vmem:[%s3 + $0xd8] sm:$0x3] %v555
    %588 = vst [vmem:[%s3 + $0xe0] sm:$0x3] %v556
    %589 = vst [vmem:[%s3 + $0xe8] sm:$0x3] %v557
    %590 = vst [vmem:[%s3 + $0xf0] sm:$0x3] %v558
    %591 = vst [vmem:[%s3 + $0xf8] sm:$0x3] %v559
    // Predicated region
    $region18: #{net_forward.7} parent=1 // pred_check
      _
    $region19: #{net_forward.7} parent=1 // pred_check_branch
      %593 = sbr.rel (0) target = $region21
    $region20: #{net_forward.7} parent=1 // pred_region
      _
    $region21: #{net_forward.7} parent=1 // pred_fallthru
      _
    // Predicated region
    $region22: #{net_forward.7} parent=1 // pred_check
      _
    $region23: #{net_forward.7} parent=1 // pred_check_branch
      %595 = sbr.rel (0) target = $region25
    $region24: #{net_forward.7} parent=1 // pred_region
      _
    $region25: #{net_forward.7} parent=1 // pred_fallthru
      _
    %596 = vsyncpa [#allocation3], 1

// kernel: net_forward.8
$region0: #{net_forward.8}
  #allocation0 [shape = 'u32[]', space=smem, size = 0x4, offset = 0x4, fixed_abs, tag = 'smem constant byte address 0x4 - core index']
  #allocation1 [shape = 'u32[144,128]{1,0:T(1,128)}', space=vmem, size = 0x12000, scoped, tag = 'internal scratch']
  %s0 = inlined_call_operand.vmem [shape: bf16[20,90], index: 0, kind: input, shape index: {}]
  %s1 = inlined_call_operand.vmem [shape: bf16[90,1800], index: 1, kind: input, shape index: {}]
  %s2 = inlined_call_operand.vmem [shape: f32[20,1], index: 2, kind: input, shape index: {}]
  %s3 = inlined_call_operand.vmem [shape: f32[20,1800], index: 3, kind: output, shape index: {}]
  %s4 = sld [smem:[#allocation0]]
  $region22: #{net_forward.8} parent=0
    _
  %s6 = ssub.s32 1, %s4
  %s7 = scalar_select 0, %s6, %s4
  // Predicated region
  $region2: #{net_forward.8} parent=0 // pred_check
    _
  $region3: #{net_forward.8} parent=0 // pred_check_branch
    %9 = sbr.rel (0) target = $region5
  $region4: #{net_forward.8} parent=0 // pred_region
    _
  $region5: #{net_forward.8} parent=0 // pred_fallthru
    _
  // Predicated region
  $region6: #{net_forward.8} parent=0 // pred_check
    _
  $region7: #{net_forward.8} parent=0 // pred_check_branch
    %11 = sbr.rel (0) target = $region9
  $region8: #{net_forward.8} parent=0 // pred_region
    _
  $region9: #{net_forward.8} parent=0 // pred_fallthru
    _
  // Predicated region
  $region10: #{net_forward.8} parent=0 // pred_check
    _
  $region11: #{net_forward.8} parent=0 // pred_check_branch
    %13 = sbr.rel (0) target = $region13
  $region12: #{net_forward.8} parent=0 // pred_region
    _
  $region13: #{net_forward.8} parent=0 // pred_fallthru
    _
  %v15 = vld [vmem:[%s0] sm:$0xf]
  %v16 = vld [vmem:[%s0 + $0x4] sm:$0xf]
  %v17 = vld [vmem:[%s0 + $0x8] sm:$0x3]
  %v18 = vld [vmem:[%s1] sm:$0xff]
  %v19 = vld [vmem:[%s1 + $0x8] sm:$0xff]
  %v20 = vld [vmem:[%s1 + $0x10] sm:$0xff]
  %v21 = vld [vmem:[%s1 + $0x18] sm:$0xff]
  %v22 = vld [vmem:[%s1 + $0x20] sm:$0xff]
  %v23 = vld [vmem:[%s1 + $0x28] sm:$0xff]
  %v24 = vld [vmem:[%s1 + $0x30] sm:$0xff]
  %v25 = vld [vmem:[%s1 + $0x38] sm:$0xf]
  %v26 = vld [vmem:[%s1 + $0x3c] sm:$0xff]
  %v27 = vld [vmem:[%s1 + $0x44] sm:$0xff]
  %v28 = vld [vmem:[%s1 + $0x4c] sm:$0xff]
  %v29 = vld [vmem:[%s1 + $0x54] sm:$0xff]
  %v30 = vld [vmem:[%s1 + $0x5c] sm:$0xff]
  %v31 = vld [vmem:[%s1 + $0x64] sm:$0xff]
  %v32 = vld [vmem:[%s1 + $0x6c] sm:$0xff]
  %v33 = vld [vmem:[%s1 + $0x74] sm:$0xf]
  %v34 = vld [vmem:[%s1 + $0x78] sm:$0xff]
  %v35 = vld [vmem:[%s1 + $0x80] sm:$0xff]
  %v36 = vld [vmem:[%s1 + $0x88] sm:$0xff]
  %v37 = vld [vmem:[%s1 + $0x90] sm:$0xff]
  %v38 = vld [vmem:[%s1 + $0x98] sm:$0xff]
  %v39 = vld [vmem:[%s1 + $0xa0] sm:$0xff]
  %v40 = vld [vmem:[%s1 + $0xa8] sm:$0xff]
  %v41 = vld [vmem:[%s1 + $0xb0] sm:$0xf]
  %v42 = vld [vmem:[%s1 + $0xb4] sm:$0xff]
  %v43 = vld [vmem:[%s1 + $0xbc] sm:$0xff]
  %v44 = vld [vmem:[%s1 + $0xc4] sm:$0xff]
  %v45 = vld [vmem:[%s1 + $0xcc] sm:$0xff]
  %v46 = vld [vmem:[%s1 + $0xd4] sm:$0xff]
  %v47 = vld [vmem:[%s1 + $0xdc] sm:$0xff]
  %v48 = vld [vmem:[%s1 + $0xe4] sm:$0xff]
  %v49 = vld [vmem:[%s1 + $0xec] sm:$0xf]
  %v50 = vld [vmem:[%s1 + $0xf0] sm:$0xff]
  %v51 = vld [vmem:[%s1 + $0xf8] sm:$0xff]
  %v52 = vld [vmem:[%s1 + $0x100] sm:$0xff]
  %v53 = vld [vmem:[%s1 + $0x108] sm:$0xff]
  %v54 = vld [vmem:[%s1 + $0x110] sm:$0xff]
  %v55 = vld [vmem:[%s1 + $0x118] sm:$0xff]
  %v56 = vld [vmem:[%s1 + $0x120] sm:$0xff]
  %v57 = vld [vmem:[%s1 + $0x128] sm:$0xf]
  %v58 = vld [vmem:[%s1 + $0x12c] sm:$0xff]
  %v59 = vld [vmem:[%s1 + $0x134] sm:$0xff]
  %v60 = vld [vmem:[%s1 + $0x13c] sm:$0xff]
  %v61 = vld [vmem:[%s1 + $0x144] sm:$0xff]
  %v62 = vld [vmem:[%s1 + $0x14c] sm:$0xff]
  %v63 = vld [vmem:[%s1 + $0x154] sm:$0xff]
  %v64 = vld [vmem:[%s1 + $0x15c] sm:$0xff]
  %v65 = vld [vmem:[%s1 + $0x164] sm:$0xf]
  %v66 = vld [vmem:[%s1 + $0x168] sm:$0xff]
  %v67 = vld [vmem:[%s1 + $0x170] sm:$0xff]
  %v68 = vld [vmem:[%s1 + $0x178] sm:$0xff]
  %v69 = vld [vmem:[%s1 + $0x180] sm:$0xff]
  %v70 = vld [vmem:[%s1 + $0x188] sm:$0xff]
  %v71 = vld [vmem:[%s1 + $0x190] sm:$0xff]
  %v72 = vld [vmem:[%s1 + $0x198] sm:$0xff]
  %v73 = vld [vmem:[%s1 + $0x1a0] sm:$0xf]
  %v74 = vld [vmem:[%s1 + $0x1a4] sm:$0xff]
  %v75 = vld [vmem:[%s1 + $0x1ac] sm:$0xff]
  %v76 = vld [vmem:[%s1 + $0x1b4] sm:$0xff]
  %v77 = vld [vmem:[%s1 + $0x1bc] sm:$0xff]
  %v78 = vld [vmem:[%s1 + $0x1c4] sm:$0xff]
  %v79 = vld [vmem:[%s1 + $0x1cc] sm:$0xff]
  %v80 = vld [vmem:[%s1 + $0x1d4] sm:$0xff]
  %v81 = vld [vmem:[%s1 + $0x1dc] sm:$0xf]
  %v82 = vld [vmem:[%s1 + $0x1e0] sm:$0xff]
  %v83 = vld [vmem:[%s1 + $0x1e8] sm:$0xff]
  %v84 = vld [vmem:[%s1 + $0x1f0] sm:$0xff]
  %v85 = vld [vmem:[%s1 + $0x1f8] sm:$0xff]
  %v86 = vld [vmem:[%s1 + $0x200] sm:$0xff]
  %v87 = vld [vmem:[%s1 + $0x208] sm:$0xff]
  %v88 = vld [vmem:[%s1 + $0x210] sm:$0xff]
  %v89 = vld [vmem:[%s1 + $0x218] sm:$0xf]
  %v90 = vld [vmem:[%s1 + $0x21c] sm:$0xff]
  %v91 = vld [vmem:[%s1 + $0x224] sm:$0xff]
  %v92 = vld [vmem:[%s1 + $0x22c] sm:$0xff]
  %v93 = vld [vmem:[%s1 + $0x234] sm:$0xff]
  %v94 = vld [vmem:[%s1 + $0x23c] sm:$0xff]
  %v95 = vld [vmem:[%s1 + $0x244] sm:$0xff]
  %v96 = vld [vmem:[%s1 + $0x24c] sm:$0xff]
  %v97 = vld [vmem:[%s1 + $0x254] sm:$0xf]
  %v98 = vld [vmem:[%s1 + $0x258] sm:$0xff]
  %v99 = vld [vmem:[%s1 + $0x260] sm:$0xff]
  %v100 = vld [vmem:[%s1 + $0x268] sm:$0xff]
  %v101 = vld [vmem:[%s1 + $0x270] sm:$0xff]
  %v102 = vld [vmem:[%s1 + $0x278] sm:$0xff]
  %v103 = vld [vmem:[%s1 + $0x280] sm:$0xff]
  %v104 = vld [vmem:[%s1 + $0x288] sm:$0xff]
  %v105 = vld [vmem:[%s1 + $0x290] sm:$0xf]
  %v106 = vld [vmem:[%s1 + $0x294] sm:$0x11]
  %v107 = vld [vmem:[%s1 + $0x29c] sm:$0x11]
  %v108 = vld [vmem:[%s1 + $0x2a4] sm:$0x11]
  %v109 = vld [vmem:[%s1 + $0x2ac] sm:$0x11]
  %v110 = vld [vmem:[%s1 + $0x2b4] sm:$0x11]
  %v111 = vld [vmem:[%s1 + $0x2bc] sm:$0x11]
  %v112 = vld [vmem:[%s1 + $0x2c4] sm:$0x11]
  %v113 = vld [vmem:[%s1 + $0x2cc] sm:$0x1]
  %v114 = vld [vmem:[%s2] sm:$0xff]
  %v115 = vld [vmem:[%s2 + $0x8] sm:$0xff]
  %v116 = vld [vmem:[%s2 + $0x10] sm:$0xf]
  %118 = vset.pattern.permute.xlu0 0
  %119 = vperm.xlu0 %118, %v114
  %v120 = vpop.permute.xlu0 %119
  %123 = vset.pattern.permute.xlu0 0
  %124 = vperm.xlu0 %123, %v115
  %v125 = vpop.permute.xlu0 %124
  %128 = vset.pattern.permute.xlu0 0
  %129 = vperm.xlu0 %128, %v116
  %v130 = vpop.permute.xlu0 %129
  %v135 = vunpack.c.l.b16 %v15
  %v136 = vunpack.c.l.b16 %v16
  %v137 = vunpack.c.l.b16 %v17
  %v138 = vpack.c.b16 %v136, %v135
  %v139 = vpack.c.b16 %v137, %v137
  %v236 = vunpack.c.l.b16 %v18
  %v237 = vunpack.c.h.b16 %v18
  %v238 = vunpack.c.l.b16 %v19
  %v239 = vunpack.c.h.b16 %v19
  %v240 = vunpack.c.l.b16 %v20
  %v241 = vunpack.c.h.b16 %v20
  %v242 = vunpack.c.l.b16 %v21
  %v243 = vunpack.c.h.b16 %v21
  %v244 = vunpack.c.l.b16 %v22
  %v245 = vunpack.c.h.b16 %v22
  %v246 = vunpack.c.l.b16 %v23
  %v247 = vunpack.c.h.b16 %v23
  %v248 = vunpack.c.l.b16 %v24
  %v249 = vunpack.c.h.b16 %v24
  %v250 = vunpack.c.l.b16 %v25
  %v251 = vunpack.c.l.b16 %v26
  %v252 = vunpack.c.h.b16 %v26
  %v253 = vunpack.c.l.b16 %v27
  %v254 = vunpack.c.h.b16 %v27
  %v255 = vunpack.c.l.b16 %v28
  %v256 = vunpack.c.h.b16 %v28
  %v257 = vunpack.c.l.b16 %v29
  %v258 = vunpack.c.h.b16 %v29
  %v259 = vunpack.c.l.b16 %v30
  %v260 = vunpack.c.h.b16 %v30
  %v261 = vunpack.c.l.b16 %v31
  %v262 = vunpack.c.h.b16 %v31
  %v263 = vunpack.c.l.b16 %v32
  %v264 = vunpack.c.h.b16 %v32
  %v265 = vunpack.c.l.b16 %v33
  %v266 = vunpack.c.l.b16 %v34
  %v267 = vunpack.c.h.b16 %v34
  %v268 = vunpack.c.l.b16 %v35
  %v269 = vunpack.c.h.b16 %v35
  %v270 = vunpack.c.l.b16 %v36
  %v271 = vunpack.c.h.b16 %v36
  %v272 = vunpack.c.l.b16 %v37
  %v273 = vunpack.c.h.b16 %v37
  %v274 = vunpack.c.l.b16 %v38
  %v275 = vunpack.c.h.b16 %v38
  %v276 = vunpack.c.l.b16 %v39
  %v277 = vunpack.c.h.b16 %v39
  %v278 = vunpack.c.l.b16 %v40
  %v279 = vunpack.c.h.b16 %v40
  %v280 = vunpack.c.l.b16 %v41
  %v281 = vunpack.c.l.b16 %v42
  %v282 = vunpack.c.h.b16 %v42
  %v283 = vunpack.c.l.b16 %v43
  %v284 = vunpack.c.h.b16 %v43
  %v285 = vunpack.c.l.b16 %v44
  %v286 = vunpack.c.h.b16 %v44
  %v287 = vunpack.c.l.b16 %v45
  %v288 = vunpack.c.h.b16 %v45
  %v289 = vunpack.c.l.b16 %v46
  %v290 = vunpack.c.h.b16 %v46
  %v291 = vunpack.c.l.b16 %v47
  %v292 = vunpack.c.h.b16 %v47
  %v293 = vunpack.c.l.b16 %v48
  %v294 = vunpack.c.h.b16 %v48
  %v295 = vunpack.c.l.b16 %v49
  %v296 = vunpack.c.l.b16 %v50
  %v297 = vunpack.c.h.b16 %v50
  %v298 = vunpack.c.l.b16 %v51
  %v299 = vunpack.c.h.b16 %v51
  %v300 = vunpack.c.l.b16 %v52
  %v301 = vunpack.c.h.b16 %v52
  %v302 = vunpack.c.l.b16 %v53
  %v303 = vunpack.c.h.b16 %v53
  %v304 = vunpack.c.l.b16 %v54
  %v305 = vunpack.c.h.b16 %v54
  %v306 = vunpack.c.l.b16 %v55
  %v307 = vunpack.c.h.b16 %v55
  %v308 = vunpack.c.l.b16 %v56
  %v309 = vunpack.c.h.b16 %v56
  %v310 = vunpack.c.l.b16 %v57
  %v311 = vunpack.c.l.b16 %v58
  %v312 = vunpack.c.h.b16 %v58
  %v313 = vunpack.c.l.b16 %v59
  %v314 = vunpack.c.h.b16 %v59
  %v315 = vunpack.c.l.b16 %v60
  %v316 = vunpack.c.h.b16 %v60
  %v317 = vunpack.c.l.b16 %v61
  %v318 = vunpack.c.h.b16 %v61
  %v319 = vunpack.c.l.b16 %v62
  %v320 = vunpack.c.h.b16 %v62
  %v321 = vunpack.c.l.b16 %v63
  %v322 = vunpack.c.h.b16 %v63
  %v323 = vunpack.c.l.b16 %v64
  %v324 = vunpack.c.h.b16 %v64
  %v325 = vunpack.c.l.b16 %v65
  %v326 = vunpack.c.l.b16 %v66
  %v327 = vunpack.c.h.b16 %v66
  %v328 = vunpack.c.l.b16 %v67
  %v329 = vunpack.c.h.b16 %v67
  %v330 = vunpack.c.l.b16 %v68
  %v331 = vunpack.c.h.b16 %v68
  %v332 = vunpack.c.l.b16 %v69
  %v333 = vunpack.c.h.b16 %v69
  %v334 = vunpack.c.l.b16 %v70
  %v335 = vunpack.c.h.b16 %v70
  %v336 = vunpack.c.l.b16 %v71
  %v337 = vunpack.c.h.b16 %v71
  %v338 = vunpack.c.l.b16 %v72
  %v339 = vunpack.c.h.b16 %v72
  %v340 = vunpack.c.l.b16 %v73
  %v341 = vunpack.c.l.b16 %v74
  %v342 = vunpack.c.h.b16 %v74
  %v343 = vunpack.c.l.b16 %v75
  %v344 = vunpack.c.h.b16 %v75
  %v345 = vunpack.c.l.b16 %v76
  %v346 = vunpack.c.h.b16 %v76
  %v347 = vunpack.c.l.b16 %v77
  %v348 = vunpack.c.h.b16 %v77
  %v349 = vunpack.c.l.b16 %v78
  %v350 = vunpack.c.h.b16 %v78
  %v351 = vunpack.c.l.b16 %v79
  %v352 = vunpack.c.h.b16 %v79
  %v353 = vunpack.c.l.b16 %v80
  %v354 = vunpack.c.h.b16 %v80
  %v355 = vunpack.c.l.b16 %v81
  %v356 = vunpack.c.l.b16 %v82
  %v357 = vunpack.c.h.b16 %v82
  %v358 = vunpack.c.l.b16 %v83
  %v359 = vunpack.c.h.b16 %v83
  %v360 = vunpack.c.l.b16 %v84
  %v361 = vunpack.c.h.b16 %v84
  %v362 = vunpack.c.l.b16 %v85
  %v363 = vunpack.c.h.b16 %v85
  %v364 = vunpack.c.l.b16 %v86
  %v365 = vunpack.c.h.b16 %v86
  %v366 = vunpack.c.l.b16 %v87
  %v367 = vunpack.c.h.b16 %v87
  %v368 = vunpack.c.l.b16 %v88
  %v369 = vunpack.c.h.b16 %v88
  %v370 = vunpack.c.l.b16 %v89
  %v371 = vunpack.c.l.b16 %v90
  %v372 = vunpack.c.h.b16 %v90
  %v373 = vunpack.c.l.b16 %v91
  %v374 = vunpack.c.h.b16 %v91
  %v375 = vunpack.c.l.b16 %v92
  %v376 = vunpack.c.h.b16 %v92
  %v377 = vunpack.c.l.b16 %v93
  %v378 = vunpack.c.h.b16 %v93
  %v379 = vunpack.c.l.b16 %v94
  %v380 = vunpack.c.h.b16 %v94
  %v381 = vunpack.c.l.b16 %v95
  %v382 = vunpack.c.h.b16 %v95
  %v383 = vunpack.c.l.b16 %v96
  %v384 = vunpack.c.h.b16 %v96
  %v385 = vunpack.c.l.b16 %v97
  %v386 = vunpack.c.l.b16 %v98
  %v387 = vunpack.c.h.b16 %v98
  %v388 = vunpack.c.l.b16 %v99
  %v389 = vunpack.c.h.b16 %v99
  %v390 = vunpack.c.l.b16 %v100
  %v391 = vunpack.c.h.b16 %v100
  %v392 = vunpack.c.l.b16 %v101
  %v393 = vunpack.c.h.b16 %v101
  %v394 = vunpack.c.l.b16 %v102
  %v395 = vunpack.c.h.b16 %v102
  %v396 = vunpack.c.l.b16 %v103
  %v397 = vunpack.c.h.b16 %v103
  %v398 = vunpack.c.l.b16 %v104
  %v399 = vunpack.c.h.b16 %v104
  %v400 = vunpack.c.l.b16 %v105
  %v401 = vunpack.c.l.b16 %v106
  %v402 = vunpack.c.h.b16 %v106
  %v403 = vunpack.c.l.b16 %v107
  %v404 = vunpack.c.h.b16 %v107
  %v405 = vunpack.c.l.b16 %v108
  %v406 = vunpack.c.h.b16 %v108
  %v407 = vunpack.c.l.b16 %v109
  %v408 = vunpack.c.h.b16 %v109
  %v409 = vunpack.c.l.b16 %v110
  %v410 = vunpack.c.h.b16 %v110
  %v411 = vunpack.c.l.b16 %v111
  %v412 = vunpack.c.h.b16 %v111
  %v413 = vunpack.c.l.b16 %v112
  %v414 = vunpack.c.h.b16 %v112
  %v415 = vunpack.c.l.b16 %v113
  %v416 = vpack.c.b16 %v251, %v236
  %v417 = vpack.c.b16 %v252, %v237
  %v418 = vpack.c.b16 %v253, %v238
  %v419 = vpack.c.b16 %v254, %v239
  %v420 = vpack.c.b16 %v255, %v240
  %v421 = vpack.c.b16 %v256, %v241
  %v422 = vpack.c.b16 %v257, %v242
  %v423 = vpack.c.b16 %v258, %v243
  %v424 = vpack.c.b16 %v259, %v244
  %v425 = vpack.c.b16 %v260, %v245
  %v426 = vpack.c.b16 %v261, %v246
  %v427 = vpack.c.b16 %v262, %v247
  %v428 = vpack.c.b16 %v263, %v248
  %v429 = vpack.c.b16 %v264, %v249
  %v430 = vpack.c.b16 %v265, %v250
  %v431 = vpack.c.b16 %v281, %v266
  %v432 = vpack.c.b16 %v282, %v267
  %v433 = vpack.c.b16 %v283, %v268
  %v434 = vpack.c.b16 %v284, %v269
  %v435 = vpack.c.b16 %v285, %v270
  %v436 = vpack.c.b16 %v286, %v271
  %v437 = vpack.c.b16 %v287, %v272
  %v438 = vpack.c.b16 %v288, %v273
  %v439 = vpack.c.b16 %v289, %v274
  %v440 = vpack.c.b16 %v290, %v275
  %v441 = vpack.c.b16 %v291, %v276
  %v442 = vpack.c.b16 %v292, %v277
  %v443 = vpack.c.b16 %v293, %v278
  %v444 = vpack.c.b16 %v294, %v279
  %v445 = vpack.c.b16 %v295, %v280
  %v446 = vpack.c.b16 %v311, %v296
  %v447 = vpack.c.b16 %v312, %v297
  %v448 = vpack.c.b16 %v313, %v298
  %v449 = vpack.c.b16 %v314, %v299
  %v450 = vpack.c.b16 %v315, %v300
  %v451 = vpack.c.b16 %v316, %v301
  %v452 = vpack.c.b16 %v317, %v302
  %v453 = vpack.c.b16 %v318, %v303
  %v454 = vpack.c.b16 %v319, %v304
  %v455 = vpack.c.b16 %v320, %v305
  %v456 = vpack.c.b16 %v321, %v306
  %v457 = vpack.c.b16 %v322, %v307
  %v458 = vpack.c.b16 %v323, %v308
  %v459 = vpack.c.b16 %v324, %v309
  %v460 = vpack.c.b16 %v325, %v310
  %v461 = vpack.c.b16 %v341, %v326
  %v462 = vpack.c.b16 %v342, %v327
  %v463 = vpack.c.b16 %v343, %v328
  %v464 = vpack.c.b16 %v344, %v329
  %v465 = vpack.c.b16 %v345, %v330
  %v466 = vpack.c.b16 %v346, %v331
  %v467 = vpack.c.b16 %v347, %v332
  %v468 = vpack.c.b16 %v348, %v333
  %v469 = vpack.c.b16 %v349, %v334
  %v470 = vpack.c.b16 %v350, %v335
  %v471 = vpack.c.b16 %v351, %v336
  %v472 = vpack.c.b16 %v352, %v337
  %v473 = vpack.c.b16 %v353, %v338
  %v474 = vpack.c.b16 %v354, %v339
  %v475 = vpack.c.b16 %v355, %v340
  %v476 = vpack.c.b16 %v371, %v356
  %v477 = vpack.c.b16 %v372, %v357
  %v478 = vpack.c.b16 %v373, %v358
  %v479 = vpack.c.b16 %v374, %v359
  %v480 = vpack.c.b16 %v375, %v360
  %v481 = vpack.c.b16 %v376, %v361
  %v482 = vpack.c.b16 %v377, %v362
  %v483 = vpack.c.b16 %v378, %v363
  %v484 = vpack.c.b16 %v379, %v364
  %v485 = vpack.c.b16 %v380, %v365
  %v486 = vpack.c.b16 %v381, %v366
  %v487 = vpack.c.b16 %v382, %v367
  %v488 = vpack.c.b16 %v383, %v368
  %v489 = vpack.c.b16 %v384, %v369
  %v490 = vpack.c.b16 %v385, %v370
  %v491 = vpack.c.b16 %v401, %v386
  %v492 = vpack.c.b16 %v402, %v387
  %v493 = vpack.c.b16 %v403, %v388
  %v494 = vpack.c.b16 %v404, %v389
  %v495 = vpack.c.b16 %v405, %v390
  %v496 = vpack.c.b16 %v406, %v391
  %v497 = vpack.c.b16 %v407, %v392
  %v498 = vpack.c.b16 %v408, %v393
  %v499 = vpack.c.b16 %v409, %v394
  %v500 = vpack.c.b16 %v410, %v395
  %v501 = vpack.c.b16 %v411, %v396
  %v502 = vpack.c.b16 %v412, %v397
  %v503 = vpack.c.b16 %v413, %v398
  %v504 = vpack.c.b16 %v414, %v399
  %v505 = vpack.c.b16 %v415, %v400
  %vm581 = vcmask 736256
  %v583 = vsel %vm581, %v138, 0
  %v586 = vsel %vm581, %v139, 0
  %vm588 = vcmask 1044480
  %v590 = vsel %vm588, %v491, 0
  %v593 = vsel %vm588, %v492, 0
  %v596 = vsel %vm588, %v493, 0
  %v599 = vsel %vm588, %v494, 0
  %v602 = vsel %vm588, %v495, 0
  %v605 = vsel %vm588, %v496, 0
  %v608 = vsel %vm588, %v497, 0
  %v611 = vsel %vm588, %v498, 0
  %v614 = vsel %vm588, %v499, 0
  %v617 = vsel %vm588, %v500, 0
  %v620 = vsel %vm588, %v501, 0
  %v623 = vsel %vm588, %v502, 0
  %v626 = vsel %vm588, %v503, 0
  %v629 = vsel %vm588, %v504, 0
  %v632 = vsel %vm588, %v505, 0
  %634 = vmatprep.subr.bf16.mxu0 %v417
  %635 = vmatpush1.bf16.msra.mxu0 %v416
  %636 = vmatprep.subr.bf16.mxu0 %v432
  %637 = vmatpush1.bf16.msra.mxu0 %v431
  %638 = vmatprep.subr.bf16.mxu0 %v447
  %639 = vmatpush1.bf16.msra.mxu0 %v446
  %640 = vmatprep.subr.bf16.mxu0 %v462
  %641 = vmatpush1.bf16.msra.mxu0 %v461
  %642 = vmatprep.subr.bf16.mxu0 %v477
  %643 = vmatpush1.bf16.msra.mxu0 %v476
  %644 = vmatprep.subr.bf16.mxu0 %v593
  %645 = vmatpush1.bf16.msra.mxu0 %v590
  %646 = vmatprep.subr.bf16.mxu0 0
  %647 = vmatpush1.bf16.msra.mxu0 0
  %648 = vmatprep.subr.bf16.mxu0 0
  %649 = vmatpush1.bf16.msra.mxu0 0
  %650 = vmatprep.subr.bf16.mxu0 0
  %651 = vmatpush1.bf16.msra.mxu0 0
  %652 = vmatprep.subr.bf16.mxu0 0
  %653 = vmatpush1.bf16.msra.mxu0 0
  %654 = vmatprep.subr.bf16.mxu0 0
  %655 = vmatpush1.bf16.msra.mxu0 0
  %656 = vmatprep.subr.bf16.mxu0 0
  %657 = vmatpush1.bf16.msra.mxu0 0
  %658 = vmatprep.subr.bf16.mxu0 0
  %659 = vmatpush1.bf16.msra.mxu0 0
  %660 = vmatprep.subr.bf16.mxu0 0
  %661 = vmatpush1.bf16.msra.mxu0 0
  %662 = vmatprep.subr.bf16.mxu0 0
  %663 = vmatpush1.bf16.msra.mxu0 0
  %664 = vmatprep.subr.bf16.mxu0 0
  %665 = vmatpush1.bf16.msra.mxu0 0
  %666 = vmatprep.mubr.bf16.mxu0 0
  %667 = vmatmul.mubr.bf16.gmra.mrb[0].mxu0 %v583
  %v668 = vpop.f32.mrb[0].mxu0
  %v669 = vadd.f32 %v120, %v668
  %v670 = vpop.f32.mrb[0].mxu0
  %v671 = vadd.f32 %v120, %v670
  %v672 = vpop.f32.mrb[0].mxu0
  %v673 = vadd.f32 %v125, %v672
  %v674 = vpop.f32.mrb[0].mxu0
  %v675 = vadd.f32 %v125, %v674
  %676 = vmatprep.mubr.bf16.mxu0 0
  %677 = vmatmul.mubr.bf16.gmra.mrb[0].mxu0 %v586
  %v678 = vpop.f32.mrb[0].mxu0
  %v679 = vadd.f32 %v130, %v678
  %v680 = vpop.f32.mrb[0].mxu0
  %v681 = vadd.f32 %v130, %v680
  %v682 = vpop.f32.mrb[0].mxu0
  %v683 = vpop.f32.mrb[0].mxu0
  %684 = vdwg.mxu0
  %685 = vmatprep.subr.bf16.mxu0 %v419
  %686 = vmatpush1.bf16.msra.mxu0 %v418
  %687 = vmatprep.subr.bf16.mxu0 %v434
  %688 = vmatpush1.bf16.msra.mxu0 %v433
  %689 = vmatprep.subr.bf16.mxu0 %v449
  %690 = vmatpush1.bf16.msra.mxu0 %v448
  %691 = vmatprep.subr.bf16.mxu0 %v464
  %692 = vmatpush1.bf16.msra.mxu0 %v463
  %693 = vmatprep.subr.bf16.mxu0 %v479
  %694 = vmatpush1.bf16.msra.mxu0 %v478
  %695 = vmatprep.subr.bf16.mxu0 %v599
  %696 = vmatpush1.bf16.msra.mxu0 %v596
  %697 = vmatprep.subr.bf16.mxu0 0
  %698 = vmatpush1.bf16.msra.mxu0 0
  %699 = vmatprep.subr.bf16.mxu0 0
  %700 = vmatpush1.bf16.msra.mxu0 0
  %701 = vmatprep.subr.bf16.mxu0 0
  %702 = vmatpush1.bf16.msra.mxu0 0
  %703 = vmatprep.subr.bf16.mxu0 0
  %704 = vmatpush1.bf16.msra.mxu0 0
  %705 = vmatprep.subr.bf16.mxu0 0
  %706 = vmatpush1.bf16.msra.mxu0 0
  %707 = vmatprep.subr.bf16.mxu0 0
  %708 = vmatpush1.bf16.msra.mxu0 0
  %709 = vmatprep.subr.bf16.mxu0 0
  %710 = vmatpush1.bf16.msra.mxu0 0
  %711 = vmatprep.subr.bf16.mxu0 0
  %712 = vmatpush1.bf16.msra.mxu0 0
  %713 = vmatprep.subr.bf16.mxu0 0
  %714 = vmatpush1.bf16.msra.mxu0 0
  %715 = vmatprep.subr.bf16.mxu0 0
  %716 = vmatpush1.bf16.msra.mxu0 0
  %717 = vmatprep.mubr.bf16.mxu0 0
  %718 = vmatmul.mubr.bf16.gmra.mrb[0].mxu0 %v583
  %v719 = vpop.f32.mrb[0].mxu0
  %v720 = vadd.f32 %v120, %v719
  %v721 = vpop.f32.mrb[0].mxu0
  %v722 = vadd.f32 %v120, %v721
  %v723 = vpop.f32.mrb[0].mxu0
  %v724 = vadd.f32 %v125, %v723
  %v725 = vpop.f32.mrb[0].mxu0
  %v726 = vadd.f32 %v125, %v725
  %727 = vmatprep.mubr.bf16.mxu0 0
  %728 = vmatmul.mubr.bf16.gmra.mrb[0].mxu0 %v586
  %v729 = vpop.f32.mrb[0].mxu0
  %v730 = vadd.f32 %v130, %v729
  %v731 = vpop.f32.mrb[0].mxu0
  %v732 = vadd.f32 %v130, %v731
  %v733 = vpop.f32.mrb[0].mxu0
  %v734 = vpop.f32.mrb[0].mxu0
  %735 = vdwg.mxu0
  %736 = vmatprep.subr.bf16.mxu0 %v421
  %737 = vmatpush1.bf16.msra.mxu0 %v420
  %738 = vmatprep.subr.bf16.mxu0 %v436
  %739 = vmatpush1.bf16.msra.mxu0 %v435
  %740 = vmatprep.subr.bf16.mxu0 %v451
  %741 = vmatpush1.bf16.msra.mxu0 %v450
  %742 = vmatprep.subr.bf16.mxu0 %v466
  %743 = vmatpush1.bf16.msra.mxu0 %v465
  %744 = vmatprep.subr.bf16.mxu0 %v481
  %745 = vmatpush1.bf16.msra.mxu0 %v480
  %746 = vmatprep.subr.bf16.mxu0 %v605
  %747 = vmatpush1.bf16.msra.mxu0 %v602
  %748 = vmatprep.subr.bf16.mxu0 0
  %749 = vmatpush1.bf16.msra.mxu0 0
  %750 = vmatprep.subr.bf16.mxu0 0
  %751 = vmatpush1.bf16.msra.mxu0 0
  %752 = vmatprep.subr.bf16.mxu0 0
  %753 = vmatpush1.bf16.msra.mxu0 0
  %754 = vmatprep.subr.bf16.mxu0 0
  %755 = vmatpush1.bf16.msra.mxu0 0
  %756 = vmatprep.subr.bf16.mxu0 0
  %757 = vmatpush1.bf16.msra.mxu0 0
  %758 = vmatprep.subr.bf16.mxu0 0
  %759 = vmatpush1.bf16.msra.mxu0 0
  %760 = vmatprep.subr.bf16.mxu0 0
  %761 = vmatpush1.bf16.msra.mxu0 0
  %762 = vmatprep.subr.bf16.mxu0 0
  %763 = vmatpush1.bf16.msra.mxu0 0
  %764 = vmatprep.subr.bf16.mxu0 0
  %765 = vmatpush1.bf16.msra.mxu0 0
  %766 = vmatprep.subr.bf16.mxu0 0
  %767 = vmatpush1.bf16.msra.mxu0 0
  %768 = vmatprep.mubr.bf16.mxu0 0
  %769 = vmatmul.mubr.bf16.gmra.mrb[0].mxu0 %v583
  %v770 = vpop.f32.mrb[0].mxu0
  %v771 = vadd.f32 %v120, %v770
  %v772 = vpop.f32.mrb[0].mxu0
  %v773 = vadd.f32 %v120, %v772
  %v774 = vpop.f32.mrb[0].mxu0
  %v775 = vadd.f32 %v125, %v774
  %v776 = vpop.f32.mrb[0].mxu0
  %v777 = vadd.f32 %v125, %v776
  %778 = vmatprep.mubr.bf16.mxu0 0
  %779 = vmatmul.mubr.bf16.gmra.mrb[0].mxu0 %v586
  %v780 = vpop.f32.mrb[0].mxu0
  %v781 = vadd.f32 %v130, %v780
  %v782 = vpop.f32.mrb[0].mxu0
  %v783 = vadd.f32 %v130, %v782
  %v784 = vpop.f32.mrb[0].mxu0
  %v785 = vpop.f32.mrb[0].mxu0
  %786 = vdwg.mxu0
  %787 = vmatprep.subr.bf16.mxu0 %v423
  %788 = vmatpush1.bf16.msra.mxu0 %v422
  %789 = vmatprep.subr.bf16.mxu0 %v438
  %790 = vmatpush1.bf16.msra.mxu0 %v437
  %791 = vmatprep.subr.bf16.mxu0 %v453
  %792 = vmatpush1.bf16.msra.mxu0 %v452
  %793 = vmatprep.subr.bf16.mxu0 %v468
  %794 = vmatpush1.bf16.msra.mxu0 %v467
  %795 = vmatprep.subr.bf16.mxu0 %v483
  %796 = vmatpush1.bf16.msra.mxu0 %v482
  %797 = vmatprep.subr.bf16.mxu0 %v611
  %798 = vmatpush1.bf16.msra.mxu0 %v608
  %799 = vmatprep.subr.bf16.mxu0 0
  %800 = vmatpush1.bf16.msra.mxu0 0
  %801 = vmatprep.subr.bf16.mxu0 0
  %802 = vmatpush1.bf16.msra.mxu0 0
  %803 = vmatprep.subr.bf16.mxu0 0
  %804 = vmatpush1.bf16.msra.mxu0 0
  %805 = vmatprep.subr.bf16.mxu0 0
  %806 = vmatpush1.bf16.msra.mxu0 0
  %807 = vmatprep.subr.bf16.mxu0 0
  %808 = vmatpush1.bf16.msra.mxu0 0
  %809 = vmatprep.subr.bf16.mxu0 0
  %810 = vmatpush1.bf16.msra.mxu0 0
  %811 = vmatprep.subr.bf16.mxu0 0
  %812 = vmatpush1.bf16.msra.mxu0 0
  %813 = vmatprep.subr.bf16.mxu0 0
  %814 = vmatpush1.bf16.msra.mxu0 0
  %815 = vmatprep.subr.bf16.mxu0 0
  %816 = vmatpush1.bf16.msra.mxu0 0
  %817 = vmatprep.subr.bf16.mxu0 0
  %818 = vmatpush1.bf16.msra.mxu0 0
  %819 = vmatprep.mubr.bf16.mxu0 0
  %820 = vmatmul.mubr.bf16.gmra.mrb[0].mxu0 %v583
  %v821 = vpop.f32.mrb[0].mxu0
  %v822 = vadd.f32 %v120, %v821
  %v823 = vpop.f32.mrb[0].mxu0
  %v824 = vadd.f32 %v120, %v823
  %v825 = vpop.f32.mrb[0].mxu0
  %v826 = vadd.f32 %v125, %v825
  %v827 = vpop.f32.mrb[0].mxu0
  %v828 = vadd.f32 %v125, %v827
  %829 = vmatprep.mubr.bf16.mxu0 0
  %830 = vmatmul.mubr.bf16.gmra.mrb[0].mxu0 %v586
  %v831 = vpop.f32.mrb[0].mxu0
  %v832 = vadd.f32 %v130, %v831
  %v833 = vpop.f32.mrb[0].mxu0
  %v834 = vadd.f32 %v130, %v833
  %v835 = vpop.f32.mrb[0].mxu0
  %v836 = vpop.f32.mrb[0].mxu0
  %837 = vdwg.mxu0
  %838 = vmatprep.subr.bf16.mxu0 %v425
  %839 = vmatpush1.bf16.msra.mxu0 %v424
  %840 = vmatprep.subr.bf16.mxu0 %v440
  %841 = vmatpush1.bf16.msra.mxu0 %v439
  %842 = vmatprep.subr.bf16.mxu0 %v455
  %843 = vmatpush1.bf16.msra.mxu0 %v454
  %844 = vmatprep.subr.bf16.mxu0 %v470
  %845 = vmatpush1.bf16.msra.mxu0 %v469
  %846 = vmatprep.subr.bf16.mxu0 %v485
  %847 = vmatpush1.bf16.msra.mxu0 %v484
  %848 = vmatprep.subr.bf16.mxu0 %v617
  %849 = vmatpush1.bf16.msra.mxu0 %v614
  %850 = vmatprep.subr.bf16.mxu0 0
  %851 = vmatpush1.bf16.msra.mxu0 0
  %852 = vmatprep.subr.bf16.mxu0 0
  %853 = vmatpush1.bf16.msra.mxu0 0
  %854 = vmatprep.subr.bf16.mxu0 0
  %855 = vmatpush1.bf16.msra.mxu0 0
  %856 = vmatprep.subr.bf16.mxu0 0
  %857 = vmatpush1.bf16.msra.mxu0 0
  %858 = vmatprep.subr.bf16.mxu0 0
  %859 = vmatpush1.bf16.msra.mxu0 0
  %860 = vmatprep.subr.bf16.mxu0 0
  %861 = vmatpush1.bf16.msra.mxu0 0
  %862 = vmatprep.subr.bf16.mxu0 0
  %863 = vmatpush1.bf16.msra.mxu0 0
  %864 = vmatprep.subr.bf16.mxu0 0
  %865 = vmatpush1.bf16.msra.mxu0 0
  %866 = vmatprep.subr.bf16.mxu0 0
  %867 = vmatpush1.bf16.msra.mxu0 0
  %868 = vmatprep.subr.bf16.mxu0 0
  %869 = vmatpush1.bf16.msra.mxu0 0
  %870 = vmatprep.mubr.bf16.mxu0 0
  %871 = vmatmul.mubr.bf16.gmra.mrb[0].mxu0 %v583
  %v872 = vpop.f32.mrb[0].mxu0
  %v873 = vadd.f32 %v120, %v872
  %v874 = vpop.f32.mrb[0].mxu0
  %v875 = vadd.f32 %v120, %v874
  %v876 = vpop.f32.mrb[0].mxu0
  %v877 = vadd.f32 %v125, %v876
  %v878 = vpop.f32.mrb[0].mxu0
  %v879 = vadd.f32 %v125, %v878
  %880 = vmatprep.mubr.bf16.mxu0 0
  %881 = vmatmul.mubr.bf16.gmra.mrb[0].mxu0 %v586
  %v882 = vpop.f32.mrb[0].mxu0
  %v883 = vadd.f32 %v130, %v882
  %v884 = vpop.f32.mrb[0].mxu0
  %v885 = vadd.f32 %v130, %v884
  %v886 = vpop.f32.mrb[0].mxu0
  %v887 = vpop.f32.mrb[0].mxu0
  %888 = vdwg.mxu0
  %889 = vmatprep.subr.bf16.mxu0 %v427
  %890 = vmatpush1.bf16.msra.mxu0 %v426
  %891 = vmatprep.subr.bf16.mxu0 %v442
  %892 = vmatpush1.bf16.msra.mxu0 %v441
  %893 = vmatprep.subr.bf16.mxu0 %v457
  %894 = vmatpush1.bf16.msra.mxu0 %v456
  %895 = vmatprep.subr.bf16.mxu0 %v472
  %896 = vmatpush1.bf16.msra.mxu0 %v471
  %897 = vmatprep.subr.bf16.mxu0 %v487
  %898 = vmatpush1.bf16.msra.mxu0 %v486
  %899 = vmatprep.subr.bf16.mxu0 %v623
  %900 = vmatpush1.bf16.msra.mxu0 %v620
  %901 = vmatprep.subr.bf16.mxu0 0
  %902 = vmatpush1.bf16.msra.mxu0 0
  %903 = vmatprep.subr.bf16.mxu0 0
  %904 = vmatpush1.bf16.msra.mxu0 0
  %905 = vmatprep.subr.bf16.mxu0 0
  %906 = vmatpush1.bf16.msra.mxu0 0
  %907 = vmatprep.subr.bf16.mxu0 0
  %908 = vmatpush1.bf16.msra.mxu0 0
  %909 = vmatprep.subr.bf16.mxu0 0
  %910 = vmatpush1.bf16.msra.mxu0 0
  %911 = vmatprep.subr.bf16.mxu0 0
  %912 = vmatpush1.bf16.msra.mxu0 0
  %913 = vmatprep.subr.bf16.mxu0 0
  %914 = vmatpush1.bf16.msra.mxu0 0
  %915 = vmatprep.subr.bf16.mxu0 0
  %916 = vmatpush1.bf16.msra.mxu0 0
  %917 = vmatprep.subr.bf16.mxu0 0
  %918 = vmatpush1.bf16.msra.mxu0 0
  %919 = vmatprep.subr.bf16.mxu0 0
  %920 = vmatpush1.bf16.msra.mxu0 0
  %921 = vmatprep.mubr.bf16.mxu0 0
  %922 = vmatmul.mubr.bf16.gmra.mrb[0].mxu0 %v583
  %v923 = vpop.f32.mrb[0].mxu0
  %v924 = vadd.f32 %v120, %v923
  %v925 = vpop.f32.mrb[0].mxu0
  %v926 = vadd.f32 %v120, %v925
  %v927 = vpop.f32.mrb[0].mxu0
  %v928 = vadd.f32 %v125, %v927
  %v929 = vpop.f32.mrb[0].mxu0
  %v930 = vadd.f32 %v125, %v929
  %931 = vmatprep.mubr.bf16.mxu0 0
  %932 = vmatmul.mubr.bf16.gmra.mrb[0].mxu0 %v586
  %v933 = vpop.f32.mrb[0].mxu0
  %v934 = vadd.f32 %v130, %v933
  %v935 = vpop.f32.mrb[0].mxu0
  %v936 = vadd.f32 %v130, %v935
  %v937 = vpop.f32.mrb[0].mxu0
  %v938 = vpop.f32.mrb[0].mxu0
  %939 = vdwg.mxu0
  %940 = vmatprep.subr.bf16.mxu0 %v429
  %941 = vmatpush1.bf16.msra.mxu0 %v428
  %942 = vmatprep.subr.bf16.mxu0 %v444
  %943 = vmatpush1.bf16.msra.mxu0 %v443
  %944 = vmatprep.subr.bf16.mxu0 %v459
  %945 = vmatpush1.bf16.msra.mxu0 %v458
  %946 = vmatprep.subr.bf16.mxu0 %v474
  %947 = vmatpush1.bf16.msra.mxu0 %v473
  %948 = vmatprep.subr.bf16.mxu0 %v489
  %949 = vmatpush1.bf16.msra.mxu0 %v488
  %950 = vmatprep.subr.bf16.mxu0 %v629
  %951 = vmatpush1.bf16.msra.mxu0 %v626
  %952 = vmatprep.subr.bf16.mxu0 0
  %953 = vmatpush1.bf16.msra.mxu0 0
  %954 = vmatprep.subr.bf16.mxu0 0
  %955 = vmatpush1.bf16.msra.mxu0 0
  %956 = vmatprep.subr.bf16.mxu0 0
  %957 = vmatpush1.bf16.msra.mxu0 0
  %958 = vmatprep.subr.bf16.mxu0 0
  %959 = vmatpush1.bf16.msra.mxu0 0
  %960 = vmatprep.subr.bf16.mxu0 0
  %961 = vmatpush1.bf16.msra.mxu0 0
  %962 = vmatprep.subr.bf16.mxu0 0
  %963 = vmatpush1.bf16.msra.mxu0 0
  %964 = vmatprep.subr.bf16.mxu0 0
  %965 = vmatpush1.bf16.msra.mxu0 0
  %966 = vmatprep.subr.bf16.mxu0 0
  %967 = vmatpush1.bf16.msra.mxu0 0
  %968 = vmatprep.subr.bf16.mxu0 0
  %969 = vmatpush1.bf16.msra.mxu0 0
  %970 = vmatprep.subr.bf16.mxu0 0
  %971 = vmatpush1.bf16.msra.mxu0 0
  %972 = vmatprep.mubr.bf16.mxu0 0
  %973 = vmatmul.mubr.bf16.gmra.mrb[0].mxu0 %v583
  %v974 = vpop.f32.mrb[0].mxu0
  %v975 = vadd.f32 %v120, %v974
  %v976 = vpop.f32.mrb[0].mxu0
  %v977 = vadd.f32 %v120, %v976
  %v978 = vpop.f32.mrb[0].mxu0
  %v979 = vadd.f32 %v125, %v978
  %v980 = vpop.f32.mrb[0].mxu0
  %v981 = vadd.f32 %v125, %v980
  %982 = vmatprep.mubr.bf16.mxu0 0
  %983 = vmatmul.mubr.bf16.gmra.mrb[0].mxu0 %v586
  %v984 = vpop.f32.mrb[0].mxu0
  %v985 = vadd.f32 %v130, %v984
  %v986 = vpop.f32.mrb[0].mxu0
  %v987 = vadd.f32 %v130, %v986
  %v988 = vpop.f32.mrb[0].mxu0
  %v989 = vpop.f32.mrb[0].mxu0
  %990 = vdwg.mxu0
  %991 = vmatprep.subr.bf16.mxu0 0
  %992 = vmatpush1.bf16.msra.mxu0 %v430
  %993 = vmatprep.subr.bf16.mxu0 0
  %994 = vmatpush1.bf16.msra.mxu0 %v445
  %995 = vmatprep.subr.bf16.mxu0 0
  %996 = vmatpush1.bf16.msra.mxu0 %v460
  %997 = vmatprep.subr.bf16.mxu0 0
  %998 = vmatpush1.bf16.msra.mxu0 %v475
  %999 = vmatprep.subr.bf16.mxu0 0
  %1000 = vmatpush1.bf16.msra.mxu0 %v490
  %1001 = vmatprep.subr.bf16.mxu0 0
  %1002 = vmatpush1.bf16.msra.mxu0 %v632
  %1003 = vmatprep.subr.bf16.mxu0 0
  %1004 = vmatpush1.bf16.msra.mxu0 0
  %1005 = vmatprep.subr.bf16.mxu0 0
  %1006 = vmatpush1.bf16.msra.mxu0 0
  %1007 = vmatprep.subr.bf16.mxu0 0
  %1008 = vmatpush1.bf16.msra.mxu0 0
  %1009 = vmatprep.subr.bf16.mxu0 0
  %1010 = vmatpush1.bf16.msra.mxu0 0
  %1011 = vmatprep.subr.bf16.mxu0 0
  %1012 = vmatpush1.bf16.msra.mxu0 0
  %1013 = vmatprep.subr.bf16.mxu0 0
  %1014 = vmatpush1.bf16.msra.mxu0 0
  %1015 = vmatprep.subr.bf16.mxu0 0
  %1016 = vmatpush1.bf16.msra.mxu0 0
  %1017 = vmatprep.subr.bf16.mxu0 0
  %1018 = vmatpush1.bf16.msra.mxu0 0
  %1019 = vmatprep.subr.bf16.mxu0 0
  %1020 = vmatpush1.bf16.msra.mxu0 0
  %1021 = vmatprep.subr.bf16.mxu0 0
  %1022 = vmatpush1.bf16.msra.mxu0 0
  %1023 = vmatprep.mubr.bf16.mxu0 0
  %1024 = vmatmul.mubr.bf16.gmra.mrb[0].mxu0 %v583
  %v1025 = vpop.f32.mrb[0].mxu0
  %v1026 = vadd.f32 %v120, %v1025
  %v1027 = vpop.f32.mrb[0].mxu0
  %v1028 = vpop.f32.mrb[0].mxu0
  %v1029 = vadd.f32 %v125, %v1028
  %v1030 = vpop.f32.mrb[0].mxu0
  %1031 = vmatprep.mubr.bf16.mxu0 0
  %1032 = vmatmul.mubr.bf16.gmra.mrb[0].mxu0 %v586
  %v1033 = vpop.f32.mrb[0].mxu0
  %v1034 = vadd.f32 %v130, %v1033
  %v1035 = vpop.f32.mrb[0].mxu0
  %v1036 = vpop.f32.mrb[0].mxu0
  %v1037 = vpop.f32.mrb[0].mxu0
  %1038 = vdwg.mxu0
  %v1039 = vmax.f32 %v669, 0.0
  %v1040 = vmax.f32 %v671, 0.0
  %v1041 = vmax.f32 %v720, 0.0
  %v1042 = vmax.f32 %v722, 0.0
  %v1043 = vmax.f32 %v771, 0.0
  %v1044 = vmax.f32 %v773, 0.0
  %v1045 = vmax.f32 %v822, 0.0
  %v1046 = vmax.f32 %v824, 0.0
  %v1047 = vmax.f32 %v873, 0.0
  %v1048 = vmax.f32 %v875, 0.0
  %v1049 = vmax.f32 %v924, 0.0
  %v1050 = vmax.f32 %v926, 0.0
  %v1051 = vmax.f32 %v975, 0.0
  %v1052 = vmax.f32 %v977, 0.0
  %v1053 = vmax.f32 %v1026, 0.0
  %v1054 = vmax.f32 %v673, 0.0
  %v1055 = vmax.f32 %v675, 0.0
  %v1056 = vmax.f32 %v724, 0.0
  %v1057 = vmax.f32 %v726, 0.0
  %v1058 = vmax.f32 %v775, 0.0
  %v1059 = vmax.f32 %v777, 0.0
  %v1060 = vmax.f32 %v826, 0.0
  %v1061 = vmax.f32 %v828, 0.0
  %v1062 = vmax.f32 %v877, 0.0
  %v1063 = vmax.f32 %v879, 0.0
  %v1064 = vmax.f32 %v928, 0.0
  %v1065 = vmax.f32 %v930, 0.0
  %v1066 = vmax.f32 %v979, 0.0
  %v1067 = vmax.f32 %v981, 0.0
  %v1068 = vmax.f32 %v1029, 0.0
  %v1069 = vmax.f32 %v679, 0.0
  %v1070 = vmax.f32 %v681, 0.0
  %v1071 = vmax.f32 %v730, 0.0
  %v1072 = vmax.f32 %v732, 0.0
  %v1073 = vmax.f32 %v781, 0.0
  %v1074 = vmax.f32 %v783, 0.0
  %v1075 = vmax.f32 %v832, 0.0
  %v1076 = vmax.f32 %v834, 0.0
  %v1077 = vmax.f32 %v883, 0.0
  %v1078 = vmax.f32 %v885, 0.0
  %v1079 = vmax.f32 %v934, 0.0
  %v1080 = vmax.f32 %v936, 0.0
  %v1081 = vmax.f32 %v985, 0.0
  %v1082 = vmax.f32 %v987, 0.0
  %v1083 = vmax.f32 %v1034, 0.0
  %1084 = vst [vmem:[%s3] sm:$0xff] %v1039
  %1085 = vst [vmem:[%s3 + $0x8] sm:$0xff] %v1040
  %1086 = vst [vmem:[%s3 + $0x10] sm:$0xff] %v1041
  %1087 = vst [vmem:[%s3 + $0x18] sm:$0xff] %v1042
  %1088 = vst [vmem:[%s3 + $0x20] sm:$0xff] %v1043
  %1089 = vst [vmem:[%s3 + $0x28] sm:$0xff] %v1044
  %1090 = vst [vmem:[%s3 + $0x30] sm:$0xff] %v1045
  %1091 = vst [vmem:[%s3 + $0x38] sm:$0xff] %v1046
  %1092 = vst [vmem:[%s3 + $0x40] sm:$0xff] %v1047
  %1093 = vst [vmem:[%s3 + $0x48] sm:$0xff] %v1048
  %1094 = vst [vmem:[%s3 + $0x50] sm:$0xff] %v1049
  %1095 = vst [vmem:[%s3 + $0x58] sm:$0xff] %v1050
  %1096 = vst [vmem:[%s3 + $0x60] sm:$0xff] %v1051
  %1097 = vst [vmem:[%s3 + $0x68] sm:$0xff] %v1052
  %vm1098 = vcmask 64512
  %1099 = vst.msk [vmem:[%s3 + $0x70] sm:$0xff] %vm1098, %v1053
  %1100 = vst [vmem:[%s3 + $0x78] sm:$0xff] %v1054
  %1101 = vst [vmem:[%s3 + $0x80] sm:$0xff] %v1055
  %1102 = vst [vmem:[%s3 + $0x88] sm:$0xff] %v1056
  %1103 = vst [vmem:[%s3 + $0x90] sm:$0xff] %v1057
  %1104 = vst [vmem:[%s3 + $0x98] sm:$0xff] %v1058
  %1105 = vst [vmem:[%s3 + $0xa0] sm:$0xff] %v1059
  %1106 = vst [vmem:[%s3 + $0xa8] sm:$0xff] %v1060
  %1107 = vst [vmem:[%s3 + $0xb0] sm:$0xff] %v1061
  %1108 = vst [vmem:[%s3 + $0xb8] sm:$0xff] %v1062
  %1109 = vst [vmem:[%s3 + $0xc0] sm:$0xff] %v1063
  %1110 = vst [vmem:[%s3 + $0xc8] sm:$0xff] %v1064
  %1111 = vst [vmem:[%s3 + $0xd0] sm:$0xff] %v1065
  %1112 = vst [vmem:[%s3 + $0xd8] sm:$0xff] %v1066
  %1113 = vst [vmem:[%s3 + $0xe0] sm:$0xff] %v1067
  %1114 = vst.msk [vmem:[%s3 + $0xe8] sm:$0xff] %vm1098, %v1068
  %1115 = vst [vmem:[%s3 + $0xf0] sm:$0xf] %v1069
  %1116 = vst [vmem:[%s3 + $0xf8] sm:$0xf] %v1070
  %1117 = vst [vmem:[%s3 + $0x100] sm:$0xf] %v1071
  %1118 = vst [vmem:[%s3 + $0x108] sm:$0xf] %v1072
  %1119 = vst [vmem:[%s3 + $0x110] sm:$0xf] %v1073
  %1120 = vst [vmem:[%s3 + $0x118] sm:$0xf] %v1074
  %1121 = vst [vmem:[%s3 + $0x120] sm:$0xf] %v1075
  %1122 = vst [vmem:[%s3 + $0x128] sm:$0xf] %v1076
  %1123 = vst [vmem:[%s3 + $0x130] sm:$0xf] %v1077
  %1124 = vst [vmem:[%s3 + $0x138] sm:$0xf] %v1078
  %1125 = vst [vmem:[%s3 + $0x140] sm:$0xf] %v1079
  %1126 = vst [vmem:[%s3 + $0x148] sm:$0xf] %v1080
  %1127 = vst [vmem:[%s3 + $0x150] sm:$0xf] %v1081
  %1128 = vst [vmem:[%s3 + $0x158] sm:$0xf] %v1082
  %vm1129 = vcmask 60416
  %1130 = vst.msk [vmem:[%s3 + $0x160] sm:$0xf] %vm1129, %v1083
  // Predicated region
  $region14: #{net_forward.8} parent=0 // pred_check
    _
  $region15: #{net_forward.8} parent=0 // pred_check_branch
    %1132 = sbr.rel (0) target = $region17
  $region16: #{net_forward.8} parent=0 // pred_region
    _
  $region17: #{net_forward.8} parent=0 // pred_fallthru
    _
  // Predicated region
  $region18: #{net_forward.8} parent=0 // pred_check
    _
  $region19: #{net_forward.8} parent=0 // pred_check_branch
    %1134 = sbr.rel (0) target = $region21
  $region20: #{net_forward.8} parent=0 // pred_region
    _
  $region21: #{net_forward.8} parent=0 // pred_fallthru
    _

// kernel: net_forward.9
$region0: #{net_forward.9}
  #allocation0 [shape = 'u32[]', space=smem, size = 0x4, offset = 0x4, fixed_abs, tag = 'smem constant byte address 0x4 - core index']
  #allocation1 [shape = 'u32[144,128]{1,0:T(1,128)}', space=vmem, size = 0x12000, scoped, tag = 'internal scratch']
  %s0 = inlined_call_operand.vmem [shape: bf16[25,80], index: 0, kind: input, shape index: {}]
  %s1 = inlined_call_operand.vmem [shape: bf16[80,50], index: 1, kind: input, shape index: {}]
  %s2 = inlined_call_operand.vmem [shape: f32[25,1], index: 2, kind: input, shape index: {}]
  %s3 = inlined_call_operand.vmem [shape: f32[25,50], index: 3, kind: output, shape index: {}]
  %s4 = sld [smem:[#allocation0]]
  $region22: #{net_forward.9} parent=0
    _
  %s6 = ssub.s32 1, %s4
  %s7 = scalar_select 0, %s6, %s4
  // Predicated region
  $region2: #{net_forward.9} parent=0 // pred_check
    _
  $region3: #{net_forward.9} parent=0 // pred_check_branch
    %9 = sbr.rel (0) target = $region5
  $region4: #{net_forward.9} parent=0 // pred_region
    _
  $region5: #{net_forward.9} parent=0 // pred_fallthru
    _
  // Predicated region
  $region6: #{net_forward.9} parent=0 // pred_check
    _
  $region7: #{net_forward.9} parent=0 // pred_check_branch
    %11 = sbr.rel (0) target = $region9
  $region8: #{net_forward.9} parent=0 // pred_region
    _
  $region9: #{net_forward.9} parent=0 // pred_fallthru
    _
  // Predicated region
  $region10: #{net_forward.9} parent=0 // pred_check
    _
  $region11: #{net_forward.9} parent=0 // pred_check_branch
    %13 = sbr.rel (0) target = $region13
  $region12: #{net_forward.9} parent=0 // pred_region
    _
  $region13: #{net_forward.9} parent=0 // pred_fallthru
    _
  %v15 = vld [vmem:[%s0] sm:$0xf]
  %v16 = vld [vmem:[%s0 + $0x4] sm:$0xf]
  %v17 = vld [vmem:[%s0 + $0x8] sm:$0xf]
  %v18 = vld [vmem:[%s0 + $0xc] sm:$0x1]
  %v19 = vld [vmem:[%s1] sm:$0xf]
  %v20 = vld [vmem:[%s1 + $0x4] sm:$0xf]
  %v21 = vld [vmem:[%s1 + $0x8] sm:$0xf]
  %v22 = vld [vmem:[%s1 + $0xc] sm:$0xf]
  %v23 = vld [vmem:[%s1 + $0x10] sm:$0xf]
  %v24 = vld [vmem:[%s1 + $0x14] sm:$0xf]
  %v25 = vld [vmem:[%s1 + $0x18] sm:$0xf]
  %v26 = vld [vmem:[%s1 + $0x1c] sm:$0xf]
  %v27 = vld [vmem:[%s1 + $0x20] sm:$0xf]
  %v28 = vld [vmem:[%s1 + $0x24] sm:$0xf]
  %v29 = vld [vmem:[%s2] sm:$0xff]
  %v30 = vld [vmem:[%s2 + $0x8] sm:$0xff]
  %v31 = vld [vmem:[%s2 + $0x10] sm:$0xff]
  %v32 = vld [vmem:[%s2 + $0x18] sm:$0x1]
  %34 = vset.pattern.permute.xlu0 0
  %35 = vperm.xlu0 %34, %v29
  %v36 = vpop.permute.xlu0 %35
  %39 = vset.pattern.permute.xlu0 0
  %40 = vperm.xlu0 %39, %v30
  %v41 = vpop.permute.xlu0 %40
  %44 = vset.pattern.permute.xlu0 0
  %45 = vperm.xlu0 %44, %v31
  %v46 = vpop.permute.xlu0 %45
  %49 = vset.pattern.permute.xlu0 0
  %50 = vperm.xlu0 %49, %v32
  %v51 = vpop.permute.xlu0 %50
  %v57 = vunpack.c.l.b16 %v15
  %v58 = vunpack.c.l.b16 %v16
  %v59 = vunpack.c.l.b16 %v17
  %v60 = vunpack.c.l.b16 %v18
  %v61 = vpack.c.b16 %v58, %v57
  %v62 = vpack.c.b16 %v60, %v59
  %v73 = vunpack.c.l.b16 %v19
  %v74 = vunpack.c.l.b16 %v20
  %v75 = vunpack.c.l.b16 %v21
  %v76 = vunpack.c.l.b16 %v22
  %v77 = vunpack.c.l.b16 %v23
  %v78 = vunpack.c.l.b16 %v24
  %v79 = vunpack.c.l.b16 %v25
  %v80 = vunpack.c.l.b16 %v26
  %v81 = vunpack.c.l.b16 %v27
  %v82 = vunpack.c.l.b16 %v28
  %v83 = vpack.c.b16 %v74, %v73
  %v84 = vpack.c.b16 %v76, %v75
  %v85 = vpack.c.b16 %v78, %v77
  %v86 = vpack.c.b16 %v80, %v79
  %v87 = vpack.c.b16 %v82, %v81
  %vm93 = vcmask 654336
  %v95 = vsel %vm93, %v61, 0
  %v98 = vsel %vm93, %v62, 0
  %100 = vmatprep.subr.bf16.mxu0 0
  %101 = vmatpush1.bf16.msra.mxu0 %v83
  %102 = vmatprep.subr.bf16.mxu0 0
  %103 = vmatpush1.bf16.msra.mxu0 %v84
  %104 = vmatprep.subr.bf16.mxu0 0
  %105 = vmatpush1.bf16.msra.mxu0 %v85
  %106 = vmatprep.subr.bf16.mxu0 0
  %107 = vmatpush1.bf16.msra.mxu0 %v86
  %108 = vmatprep.subr.bf16.mxu0 0
  %109 = vmatpush1.bf16.msra.mxu0 %v87
  %110 = vmatprep.subr.bf16.mxu0 0
  %111 = vmatpush1.bf16.msra.mxu0 0
  %112 = vmatprep.subr.bf16.mxu0 0
  %113 = vmatpush1.bf16.msra.mxu0 0
  %114 = vmatprep.subr.bf16.mxu0 0
  %115 = vmatpush1.bf16.msra.mxu0 0
  %116 = vmatprep.subr.bf16.mxu0 0
  %117 = vmatpush1.bf16.msra.mxu0 0
  %118 = vmatprep.subr.bf16.mxu0 0
  %119 = vmatpush1.bf16.msra.mxu0 0
  %120 = vmatprep.subr.bf16.mxu0 0
  %121 = vmatpush1.bf16.msra.mxu0 0
  %122 = vmatprep.subr.bf16.mxu0 0
  %123 = vmatpush1.bf16.msra.mxu0 0
  %124 = vmatprep.subr.bf16.mxu0 0
  %125 = vmatpush1.bf16.msra.mxu0 0
  %126 = vmatprep.subr.bf16.mxu0 0
  %127 = vmatpush1.bf16.msra.mxu0 0
  %128 = vmatprep.subr.bf16.mxu0 0
  %129 = vmatpush1.bf16.msra.mxu0 0
  %130 = vmatprep.subr.bf16.mxu0 0
  %131 = vmatpush1.bf16.msra.mxu0 0
  %132 = vmatprep.mubr.bf16.mxu0 0
  %133 = vmatmul.mubr.bf16.gmra.mrb[0].mxu0 %v95
  %v134 = vpop.f32.mrb[0].mxu0
  %v135 = vadd.f32 %v36, %v134
  %v136 = vpop.f32.mrb[0].mxu0
  %v137 = vpop.f32.mrb[0].mxu0
  %v138 = vadd.f32 %v41, %v137
  %v139 = vpop.f32.mrb[0].mxu0
  %140 = vmatprep.mubr.bf16.mxu0 0
  %141 = vmatmul.mubr.bf16.gmra.mrb[0].mxu0 %v98
  %v142 = vpop.f32.mrb[0].mxu0
  %v143 = vadd.f32 %v46, %v142
  %v144 = vpop.f32.mrb[0].mxu0
  %v145 = vpop.f32.mrb[0].mxu0
  %v146 = vadd.f32 %v51, %v145
  %v147 = vpop.f32.mrb[0].mxu0
  %148 = vdwg.mxu0
  %v149 = vmul.f32 %v135, 0.999995
  %v150 = vmul.f32 %v138, 0.999995
  %v151 = vmul.f32 %v143, 0.999995
  %v152 = vmul.f32 %v146, 0.999995
  %v153 = vmax.f32 %v149, 0.0
  %v154 = vmax.f32 %v150, 0.0
  %v155 = vmax.f32 %v151, 0.0
  %v156 = vmax.f32 %v152, 0.0
  %vm157 = vcmask 408576
  %158 = vst.msk [vmem:[%s3] sm:$0xff] %vm157, %v153
  %159 = vst.msk [vmem:[%s3 + $0x8] sm:$0xff] %vm157, %v154
  %160 = vst.msk [vmem:[%s3 + $0x10] sm:$0xff] %vm157, %v155
  %vm161 = vcmask 401408
  %162 = vst.msk [vmem:[%s3 + $0x18] sm:$0x1] %vm161, %v156
  // Predicated region
  $region14: #{net_forward.9} parent=0 // pred_check
    _
  $region15: #{net_forward.9} parent=0 // pred_check_branch
    %164 = sbr.rel (0) target = $region17
  $region16: #{net_forward.9} parent=0 // pred_region
    _
  $region17: #{net_forward.9} parent=0 // pred_fallthru
    _
  // Predicated region
  $region18: #{net_forward.9} parent=0 // pred_check
    _
  $region19: #{net_forward.9} parent=0 // pred_check_branch
    %166 = sbr.rel (0) target = $region21
  $region20: #{net_forward.9} parent=0 // pred_region
    _
  $region21: #{net_forward.9} parent=0 // pred_fallthru
    _

// kernel: net_forward.11
$region0: #{net_forward.11}
  #allocation0 [shape = 'u32[]', space=smem, size = 0x4, offset = 0x4, fixed_abs, tag = 'smem constant byte address 0x4 - core index']
  #allocation1 [shape = 'u32[144,128]{1,0:T(1,128)}', space=vmem, size = 0x12000, scoped, tag = 'internal scratch']
  %s0 = inlined_call_operand.vmem [shape: f32[10,64], index: 0, kind: input, shape index: {}]
  %s1 = inlined_call_operand.vmem [shape: f32[2,64,128], index: 1, kind: input, shape index: {}]
  %s2 = inlined_call_operand.vmem [shape: f32[2,32,128], index: 2, kind: input, shape index: {}]
  %s3 = inlined_call_operand.vmem [shape: f32[2,1,128], index: 3, kind: input, shape index: {}]
  %s4 = inlined_call_operand.vmem [shape: f32[2,10,32], index: 4, kind: output, shape index: {}]
  %s5 = sld [smem:[#allocation0]]
  $region49: #{net_forward.11} parent=0
    _
  %s7 = ssub.s32 1, %s5
  %s8 = scalar_select 0, %s7, %s5
  loop: start=0, step=1, limit=4
  $region2: #{net_forward.11} parent=0 // loop_pre_header
    _
  $region3: #{net_forward.11} parent=0 // loop_header
    %s10 = sphi 0, %s14
    %p11 = scmp.ge.s32.totalorder %s10, 4
    %s18 = sphi 0, %s18
    %s20 = sphi 0, %s18
    %s21 = sphi 0, %s20
    %s35 = sphi 0, %s21
    %s41 = sphi 0, %s43
    %s44 = sphi 0, %s41
    %s45 = sphi 0, %s44
    %s61 = sphi 0, %s45
    %s67 = sphi 0, %s69
    %s70 = sphi 0, %s67
    %s71 = sphi 0, %s70
    %s87 = sphi 0, %s71
    %s93 = sphi 0, %s95
    %s96 = sphi 0, %s93
    %s97 = sphi 0, %s96
    %s113 = sphi 0, %s97
    %s119 = sphi 0, %s121
    %s122 = sphi 0, %s119
    %s123 = sphi 0, %s122
    %s139 = sphi 0, %s123
  $region4: #{net_forward.11} parent=0 // loop_header_branch
    %13 = sbr.rel (%p11) target = $region8
  $region5: #{net_forward.11} parent=0 // loop_body
    %s15 = ssub.s32 %s10, 1
    %s16 = ssub.s32 %s10, 2
    %s17 = sadd.s32 %s10, 1
    %s19 = sadd.s32 %s18, 1
    %p22 = scmp.eq.s32.totalorder %s10, 1
    %p23 = scmp.ne.s32.totalorder %s18, %s20
    %p24 = scmp.eq.s32.totalorder %s10, 0
    %p25 = por %p23, %p24
    %p26 = scmp.ne.s32.totalorder %s18, %s20
    %p27 = scmp.eq.s32.totalorder %s15, 1
    %p28 = por %p26, %p27
    %p29 = scmp.ne.s32.totalorder %s20, %s21
    %p30 = scmp.eq.s32.totalorder %s15, 0
    %p31 = por %p29, %p30
    %p32 = scmp.ne.s32.totalorder %s20, %s21
    %p33 = scmp.eq.s32.totalorder %s16, 1
    %p34 = por %p32, %p33
    %p36 = scmp.ne.s32.totalorder %s21, %s35
    %p37 = scmp.eq.s32.totalorder %s16, 0
    %p38 = por %p36, %p37
    %s39 = ssub.s32 %s10, %s17
    %p40 = scmp.eq.s32.totalorder %s39, 0
    %s42 = sadd.s32 %s41, 1
    %s43 = scalar_select %p40, %s41, %s42
    %p46 = pneg %p40
    %p47 = scmp.eq.s32.totalorder %s10, 1
    %p48 = por %p46, %p47
    %p49 = scmp.ne.s32.totalorder %s41, %s44
    %p50 = scmp.eq.s32.totalorder %s10, 0
    %p51 = por %p49, %p50
    %p52 = scmp.ne.s32.totalorder %s41, %s44
    %p53 = scmp.eq.s32.totalorder %s15, 1
    %p54 = por %p52, %p53
    %p55 = scmp.ne.s32.totalorder %s44, %s45
    %p56 = scmp.eq.s32.totalorder %s15, 0
    %p57 = por %p55, %p56
    %p58 = scmp.ne.s32.totalorder %s44, %s45
    %p59 = scmp.eq.s32.totalorder %s16, 1
    %p60 = por %p58, %p59
    %p62 = scmp.ne.s32.totalorder %s45, %s61
    %p63 = scmp.eq.s32.totalorder %s16, 0
    %p64 = por %p62, %p63
    %s65 = ssub.s32 %s10, %s17
    %p66 = scmp.eq.s32.totalorder %s65, 0
    %s68 = sadd.s32 %s67, 1
    %s69 = scalar_select %p66, %s67, %s68
    %p72 = pneg %p66
    %p73 = scmp.eq.s32.totalorder %s10, 1
    %p74 = por %p72, %p73
    %p75 = scmp.ne.s32.totalorder %s67, %s70
    %p76 = scmp.eq.s32.totalorder %s10, 0
    %p77 = por %p75, %p76
    %p78 = scmp.ne.s32.totalorder %s67, %s70
    %p79 = scmp.eq.s32.totalorder %s15, 1
    %p80 = por %p78, %p79
    %p81 = scmp.ne.s32.totalorder %s70, %s71
    %p82 = scmp.eq.s32.totalorder %s15, 0
    %p83 = por %p81, %p82
    %p84 = scmp.ne.s32.totalorder %s70, %s71
    %p85 = scmp.eq.s32.totalorder %s16, 1
    %p86 = por %p84, %p85
    %p88 = scmp.ne.s32.totalorder %s71, %s87
    %p89 = scmp.eq.s32.totalorder %s16, 0
    %p90 = por %p88, %p89
    %s91 = ssub.s32 %s10, %s17
    %p92 = scmp.eq.s32.totalorder %s91, 0
    %s94 = sadd.s32 %s93, 1
    %s95 = scalar_select %p92, %s93, %s94
    %p98 = pneg %p92
    %p99 = scmp.eq.s32.totalorder %s10, 1
    %p100 = por %p98, %p99
    %p101 = scmp.ne.s32.totalorder %s93, %s96
    %p102 = scmp.eq.s32.totalorder %s10, 0
    %p103 = por %p101, %p102
    %p104 = scmp.ne.s32.totalorder %s93, %s96
    %p105 = scmp.eq.s32.totalorder %s15, 1
    %p106 = por %p104, %p105
    %p107 = scmp.ne.s32.totalorder %s96, %s97
    %p108 = scmp.eq.s32.totalorder %s15, 0
    %p109 = por %p107, %p108
    %p110 = scmp.ne.s32.totalorder %s96, %s97
    %p111 = scmp.eq.s32.totalorder %s16, 1
    %p112 = por %p110, %p111
    %p114 = scmp.ne.s32.totalorder %s97, %s113
    %p115 = scmp.eq.s32.totalorder %s16, 0
    %p116 = por %p114, %p115
    %s117 = ssub.s32 %s10, %s17
    %p118 = scmp.eq.s32.totalorder %s117, 0
    %s120 = sadd.s32 %s119, 1
    %s121 = scalar_select %p118, %s119, %s120
    %p124 = pneg %p118
    %p125 = scmp.eq.s32.totalorder %s10, 1
    %p126 = por %p124, %p125
    %p127 = scmp.ne.s32.totalorder %s119, %s122
    %p128 = scmp.eq.s32.totalorder %s10, 0
    %p129 = por %p127, %p128
    %p130 = scmp.ne.s32.totalorder %s119, %s122
    %p131 = scmp.eq.s32.totalorder %s15, 1
    %p132 = por %p130, %p131
    %p133 = scmp.ne.s32.totalorder %s122, %s123
    %p134 = scmp.eq.s32.totalorder %s15, 0
    %p135 = por %p133, %p134
    %p136 = scmp.ne.s32.totalorder %s122, %s123
    %p137 = scmp.eq.s32.totalorder %s16, 1
    %p138 = por %p136, %p137
    %p140 = scmp.ne.s32.totalorder %s123, %s139
    %p141 = scmp.eq.s32.totalorder %s16, 0
    %p142 = por %p140, %p141
    %p143 = scmp.le.s32.totalorder 1, %s10
    %p144 = scmp.lt.s32.totalorder %s10, 3
    %p145 = pnand %p143, %p144
    %p146 = pneg %p145
    // Predicated region
    $region9: #{net_forward.11} parent=5 // pred_check
      _
    $region10: #{net_forward.11} parent=5 // pred_check_branch
      %148 = sbr.rel (%p145) target = $region12
    $region11: #{net_forward.11} parent=5 // pred_region
      %s149 = ssub.s32 %s10, 1
      // Predicated region
      $region13: #{net_forward.11} parent=11 // pred_check
        %p150 = pneg %p31
      $region14: #{net_forward.11} parent=11 // pred_check_branch
        %152 = sbr.rel (%p150) target = $region16
      $region15: #{net_forward.11} parent=11 // pred_region
        _
      $region16: #{net_forward.11} parent=11 // pred_fallthru
        _
    $region12: #{net_forward.11} parent=5 // pred_fallthru
      _
    %p153 = scmp.lt.s32.totalorder %s10, 2
    // Predicated region
    $region17: #{net_forward.11} parent=5 // pred_check
      %p154 = pneg %p153
    $region18: #{net_forward.11} parent=5 // pred_check_branch
      %156 = sbr.rel (%p154) target = $region20
    $region19: #{net_forward.11} parent=5 // pred_region
      // Predicated region
      $region21: #{net_forward.11} parent=19 // pred_check
        %p157 = pneg %p51
      $region22: #{net_forward.11} parent=19 // pred_check_branch
        %159 = sbr.rel (%p157) target = $region24
      $region23: #{net_forward.11} parent=19 // pred_region
        %p160 = scmp.lt.s32.totalorder %s10, 1
        %s161 = scalar_select %p160, %s10, 1
        %s162 = smul.addr %s161, 8
        %s163 = smul.addr %s162, 8
        %s164 = scalar_lea.vmem %s1, %s163
      $region24: #{net_forward.11} parent=19 // pred_fallthru
        _
      // Predicated region
      $region25: #{net_forward.11} parent=19 // pred_check
        %p165 = pneg %p77
      $region26: #{net_forward.11} parent=19 // pred_check_branch
        %167 = sbr.rel (%p165) target = $region28
      $region27: #{net_forward.11} parent=19 // pred_region
        %p168 = scmp.lt.s32.totalorder %s10, 1
        %s169 = scalar_select %p168, %s10, 1
        %s170 = smul.addr %s169, 4
        %s171 = smul.addr %s170, 8
        %s172 = scalar_lea.vmem %s2, %s171
      $region28: #{net_forward.11} parent=19 // pred_fallthru
        _
      // Predicated region
      $region29: #{net_forward.11} parent=19 // pred_check
        %p173 = pneg %p103
      $region30: #{net_forward.11} parent=19 // pred_check_branch
        %175 = sbr.rel (%p173) target = $region32
      $region31: #{net_forward.11} parent=19 // pred_region
        %p176 = scmp.lt.s32.totalorder %s10, 1
        %s177 = scalar_select %p176, %s10, 1
        %s178 = scalar_lea.vmem %s3, %s177
      $region32: #{net_forward.11} parent=19 // pred_fallthru
        _
    $region20: #{net_forward.11} parent=5 // pred_fallthru
      _
    %p179 = scmp.le.s32.totalorder 1, %s10
    %p180 = scmp.lt.s32.totalorder %s10, 3
    %p181 = pnand %p179, %p180
    %p182 = pneg %p181
    // Predicated region
    $region33: #{net_forward.11} parent=5 // pred_check
      _
    $region34: #{net_forward.11} parent=5 // pred_check_branch
      %184 = sbr.rel (%p181) target = $region36
    $region35: #{net_forward.11} parent=5 // pred_region
      %s185 = ssub.s32 %s10, 1
      %p186 = pneg %p31
      %p187 = pneg %p28
      %p188 = scmp.lt.s32.totalorder %s15, 1
      %s189 = scalar_select %p188, %s15, 1
      %s190 = smul.addr %s189, 8
      %s191 = smul.addr %s190, 8
      %s192 = scalar_lea.vmem %s1, %s191
      %p193 = pneg %p57
      %p194 = pneg %p54
      %p195 = scmp.lt.s32.totalorder %s15, 1
      %s196 = scalar_select %p195, %s15, 1
      %s197 = smul.addr %s196, 4
      %s198 = smul.addr %s197, 8
      %s199 = scalar_lea.vmem %s2, %s198
      %p200 = pneg %p83
      %p201 = pneg %p80
      %p202 = scmp.lt.s32.totalorder %s15, 1
      %s203 = scalar_select %p202, %s15, 1
      %s204 = scalar_lea.vmem %s3, %s203
      %p205 = pneg %p109
      %p206 = pneg %p106
      %p207 = pneg %p135
      %p208 = pneg %p132
      %p209 = scmp.lt.s32.totalorder %s15, 1
      %s210 = scalar_select %p209, %s15, 1
      %s211 = smul.addr %s210, 2
      %s212 = smul.addr %s211, 8
      %s213 = scalar_lea.vmem %s4, %s212
      %p214 = scmp.lt.s32.totalorder %s15, 1
      %s215 = scalar_select %p214, %s15, 1
      %s216 = smul.addr %s215, 8
      %s217 = smul.addr %s216, 8
      %s218 = scalar_lea.vmem %s1, %s217
      %p219 = scmp.lt.s32.totalorder %s15, 1
      %s220 = scalar_select %p219, %s15, 1
      %s221 = smul.addr %s220, 4
      %s222 = smul.addr %s221, 8
      %s223 = scalar_lea.vmem %s2, %s222
      %p224 = scmp.lt.s32.totalorder %s15, 1
      %s225 = scalar_select %p224, %s15, 1
      %s226 = scalar_lea.vmem %s3, %s225
      %p227 = scmp.lt.s32.totalorder %s15, 1
      %s228 = scalar_select %p227, %s15, 1
      %s229 = smul.addr %s228, 2
      %s230 = smul.addr %s229, 8
      %s231 = scalar_lea.vmem %s4, %s230
      %p232 = scmp.eq.s32.totalorder %s15, 0
      %s233 = scalar_select %p232, 1, 0
      %s234 = scvt.s32.f32 %s233
      %v235 = vld [vmem:[%s0] sm:$0xff]
      %v236 = vld [vmem:[%s0 + $0x8] sm:$0x3]
      %v238 = vrot.slane %v235, 4
      %vm240 = vcmask 1041408
      %v241 = vsel %vm240, %v236, %v238
      %vm242 = vcmask 1043456
      %v243 = vsel %vm242, %v241, %v235
      %vm244 = vcmask 1045504
      %v245 = vsel %vm244, %v243, %v238
      %v246 = vstv %s234
      %v247 = vmul.f32 %v246, %v235
      %v248 = vmul.f32 %v246, %v236
      %s249 = ssub.f32 1.0, %s234
      %v250 = vstv %s249
      %v251 = vmul.f32 %v250, %v245
      %v252 = vmul.f32 %v250, %v235
      %v253 = vadd.f32 %v247, %v251
      %v254 = vadd.f32 %v248, %v252
      %v255 = vld [vmem:[%s218] sm:$0xff]
      %v256 = vld [vmem:[%s218 + $0x8] sm:$0xff]
      %v257 = vld [vmem:[%s218 + $0x10] sm:$0xff]
      %v258 = vld [vmem:[%s218 + $0x18] sm:$0xff]
      %v259 = vld [vmem:[%s218 + $0x20] sm:$0xff]
      %v260 = vld [vmem:[%s218 + $0x28] sm:$0xff]
      %v261 = vld [vmem:[%s218 + $0x30] sm:$0xff]
      %v262 = vld [vmem:[%s218 + $0x38] sm:$0xff]
      %v263 = vld [vmem:[%s226] sm:$0x1]
      %v265 = vlaneseq
      %v266 = vshrl.u32 %v265, 7
      %v267 = vsub.s32 0, %v266
      %v268 = vrot.slane %v263, %v267
      %vm270 = vcmask 523264
      %v272 = vsel %vm270, %v253, 0
      %v275 = vsel %vm270, %v254, 0
      %277 = vmatprep.subr.mxu0 0.0
      %278 = vmatpush1.msra.mxu0 %v255
      %279 = vmatprep.subr.mxu0 0.0
      %280 = vmatpush1.msra.mxu0 %v256
      %281 = vmatprep.subr.mxu0 0.0
      %282 = vmatpush1.msra.mxu0 %v257
      %283 = vmatprep.subr.mxu0 0.0
      %284 = vmatpush1.msra.mxu0 %v258
      %285 = vmatprep.subr.mxu0 0.0
      %286 = vmatpush1.msra.mxu0 %v259
      %287 = vmatprep.subr.mxu0 0.0
      %288 = vmatpush1.msra.mxu0 %v260
      %289 = vmatprep.subr.mxu0 0.0
      %290 = vmatpush1.msra.mxu0 %v261
      %291 = vmatprep.subr.mxu0 0.0
      %292 = vmatpush1.msra.mxu0 %v262
      %293 = vmatprep.subr.mxu0 0.0
      %294 = vmatpush1.msra.mxu0 0.0
      %295 = vmatprep.subr.mxu0 0.0
      %296 = vmatpush1.msra.mxu0 0.0
      %297 = vmatprep.subr.mxu0 0.0
      %298 = vmatpush1.msra.mxu0 0.0
      %299 = vmatprep.subr.mxu0 0.0
      %300 = vmatpush1.msra.mxu0 0.0
      %301 = vmatprep.subr.mxu0 0.0
      %302 = vmatpush1.msra.mxu0 0.0
      %303 = vmatprep.subr.mxu0 0.0
      %304 = vmatpush1.msra.mxu0 0.0
      %305 = vmatprep.subr.mxu0 0.0
      %306 = vmatpush1.msra.mxu0 0.0
      %307 = vmatprep.subr.mxu0 0.0
      %308 = vmatpush1.msra.mxu0 0.0
      %309 = vmatprep.subr.mxu0 0.0
      %310 = vmatpush1.msra.mxu0 0.0
      %311 = vmatprep.subr.mxu0 0.0
      %312 = vmatpush1.msra.mxu0 0.0
      %313 = vmatprep.subr.mxu0 0.0
      %314 = vmatpush1.msra.mxu0 0.0
      %315 = vmatprep.subr.mxu0 0.0
      %316 = vmatpush1.msra.mxu0 0.0
      %317 = vmatprep.subr.mxu0 0.0
      %318 = vmatpush1.msra.mxu0 0.0
      %319 = vmatprep.subr.mxu0 0.0
      %320 = vmatpush1.msra.mxu0 0.0
      %321 = vmatprep.subr.mxu0 0.0
      %322 = vmatpush1.msra.mxu0 0.0
      %323 = vmatprep.subr.mxu0 0.0
      %324 = vmatpush1.msra.mxu0 0.0
      %325 = vmatprep.subr.mxu0 0.0
      %326 = vmatpush1.msra.mxu0 0.0
      %327 = vmatprep.subr.mxu0 0.0
      %328 = vmatpush1.msra.mxu0 0.0
      %329 = vmatprep.subr.mxu0 0.0
      %330 = vmatpush1.msra.mxu0 0.0
      %331 = vmatprep.subr.mxu0 0.0
      %332 = vmatpush1.msra.mxu0 0.0
      %333 = vmatprep.subr.mxu0 0.0
      %334 = vmatpush1.msra.mxu0 0.0
      %335 = vmatprep.subr.mxu0 0.0
      %336 = vmatpush1.msra.mxu0 0.0
      %337 = vmatprep.subr.mxu0 0.0
      %338 = vmatpush1.msra.mxu0 0.0
      %339 = vmatprep.subr.mxu0 0.0
      %340 = vmatpush1.msra.mxu0 0.0
      %341 = vmatprep.mubr.f32.mxu0 0.0
      %342 = vmatmul.mubr.f32.gmra.mrb[0].mxu0 %v272
      %v343 = vpop.f32.mrb[0].mxu0
      %v344 = vadd.f32 %v268, %v343
      %v345 = vpop.f32.mrb[0].mxu0
      %346 = vmatprep.mubr.f32.mxu0 0.0
      %347 = vmatmul.mubr.f32.gmra.mrb[0].mxu0 %v275
      %v348 = vpop.f32.mrb[0].mxu0
      %v349 = vadd.f32 %v268, %v348
      %v350 = vpop.f32.mrb[0].mxu0
      %351 = vdwg.mxu0
      %v352 = vld [vmem:[%s223] sm:$0xff]
      %v353 = vld [vmem:[%s223 + $0x8] sm:$0xff]
      %v354 = vld [vmem:[%s223 + $0x10] sm:$0xff]
      %v355 = vld [vmem:[%s223 + $0x18] sm:$0xff]
      %vm356 = vcmask 261120
      %v358 = vsel %vm356, 0.0, 0
      %360 = vmatprep.subr.mxu0 0.0
      %361 = vmatpush1.msra.mxu0 %v352
      %362 = vmatprep.subr.mxu0 0.0
      %363 = vmatpush1.msra.mxu0 %v353
      %364 = vmatprep.subr.mxu0 0.0
      %365 = vmatpush1.msra.mxu0 %v354
      %366 = vmatprep.subr.mxu0 0.0
      %367 = vmatpush1.msra.mxu0 %v355
      %368 = vmatprep.subr.mxu0 0.0
      %369 = vmatpush1.msra.mxu0 0.0
      %370 = vmatprep.subr.mxu0 0.0
      %371 = vmatpush1.msra.mxu0 0.0
      %372 = vmatprep.subr.mxu0 0.0
      %373 = vmatpush1.msra.mxu0 0.0
      %374 = vmatprep.subr.mxu0 0.0
      %375 = vmatpush1.msra.mxu0 0.0
      %376 = vmatprep.subr.mxu0 0.0
      %377 = vmatpush1.msra.mxu0 0.0
      %378 = vmatprep.subr.mxu0 0.0
      %379 = vmatpush1.msra.mxu0 0.0
      %380 = vmatprep.subr.mxu0 0.0
      %381 = vmatpush1.msra.mxu0 0.0
      %382 = vmatprep.subr.mxu0 0.0
      %383 = vmatpush1.msra.mxu0 0.0
      %384 = vmatprep.subr.mxu0 0.0
      %385 = vmatpush1.msra.mxu0 0.0
      %386 = vmatprep.subr.mxu0 0.0
      %387 = vmatpush1.msra.mxu0 0.0
      %388 = vmatprep.subr.mxu0 0.0
      %389 = vmatpush1.msra.mxu0 0.0
      %390 = vmatprep.subr.mxu0 0.0
      %391 = vmatpush1.msra.mxu0 0.0
      %392 = vmatprep.subr.mxu0 0.0
      %393 = vmatpush1.msra.mxu0 0.0
      %394 = vmatprep.subr.mxu0 0.0
      %395 = vmatpush1.msra.mxu0 0.0
      %396 = vmatprep.subr.mxu0 0.0
      %397 = vmatpush1.msra.mxu0 0.0
      %398 = vmatprep.subr.mxu0 0.0
      %399 = vmatpush1.msra.mxu0 0.0
      %400 = vmatprep.subr.mxu0 0.0
      %401 = vmatpush1.msra.mxu0 0.0
      %402 = vmatprep.subr.mxu0 0.0
      %403 = vmatpush1.msra.mxu0 0.0
      %404 = vmatprep.subr.mxu0 0.0
      %405 = vmatpush1.msra.mxu0 0.0
      %406 = vmatprep.subr.mxu0 0.0
      %407 = vmatpush1.msra.mxu0 0.0
      %408 = vmatprep.subr.mxu0 0.0
      %409 = vmatpush1.msra.mxu0 0.0
      %410 = vmatprep.subr.mxu0 0.0
      %411 = vmatpush1.msra.mxu0 0.0
      %412 = vmatprep.subr.mxu0 0.0
      %413 = vmatpush1.msra.mxu0 0.0
      %414 = vmatprep.subr.mxu0 0.0
      %415 = vmatpush1.msra.mxu0 0.0
      %416 = vmatprep.subr.mxu0 0.0
      %417 = vmatpush1.msra.mxu0 0.0
      %418 = vmatprep.subr.mxu0 0.0
      %419 = vmatpush1.msra.mxu0 0.0
      %420 = vmatprep.subr.mxu0 0.0
      %421 = vmatpush1.msra.mxu0 0.0
      %422 = vmatprep.subr.mxu0 0.0
      %423 = vmatpush1.msra.mxu0 0.0
      %424 = vmatprep.mubr.f32.mxu0 0.0
      %425 = vmatmul.mubr.f32.gmra.mrb[0].mxu0 %v358
      %v426 = vpop.f32.mrb[0].mxu0
      %v427 = vadd.f32 0.0, %v426
      %v428 = vpop.f32.mrb[0].mxu0
      %429 = vdwg.mxu0
      %v430 = vadd.f32 %v344, %v427
      %v431 = vxor.u32 %v430, 2147483648
      %v432 = vmul.f32 %v431, 1.442695
      %v433 = vpow.pop %v432
      %v434 = vadd.f32 %v433, 1.0
      %v435 = vrcp.pop %v434
      %v436 = vmul.f32 1.0, %v435
      %v437 = vtanh.pop %v430
      %v438 = vmul.f32 %v436, 0.0
      %440 = vrot.lane.b32.xlu0 %v437, 64
      %v441 = vpop.permute.xlu0 %440
      %v443 = vmul.f32 %v436, %v441
      %445 = vrot.lane.b32.xlu0 %v443, 32
      %v446 = vpop.permute.xlu0 %445
      %v448 = vadd.f32 %v438, %v446
      %v449 = vtanh.pop %v448
      %451 = vrot.lane.b32.xlu0 %v449, 64
      %v452 = vpop.permute.xlu0 %451
      %v454 = vmul.f32 %v436, %v452
      %456 = vrot.lane.b32.xlu0 %v454, 32
      %v457 = vpop.permute.xlu0 %456
      %v458 = vsel %vm356, %v457, 0
      %460 = vmatprep.subr.mxu0 0.0
      %461 = vmatpush1.msra.mxu0 %v352
      %462 = vmatprep.subr.mxu0 0.0
      %463 = vmatpush1.msra.mxu0 %v353
      %464 = vmatprep.subr.mxu0 0.0
      %465 = vmatpush1.msra.mxu0 %v354
      %466 = vmatprep.subr.mxu0 0.0
      %467 = vmatpush1.msra.mxu0 %v355
      %468 = vmatprep.subr.mxu0 0.0
      %469 = vmatpush1.msra.mxu0 0.0
      %470 = vmatprep.subr.mxu0 0.0
      %471 = vmatpush1.msra.mxu0 0.0
      %472 = vmatprep.subr.mxu0 0.0
      %473 = vmatpush1.msra.mxu0 0.0
      %474 = vmatprep.subr.mxu0 0.0
      %475 = vmatpush1.msra.mxu0 0.0
      %476 = vmatprep.subr.mxu0 0.0
      %477 = vmatpush1.msra.mxu0 0.0
      %478 = vmatprep.subr.mxu0 0.0
      %479 = vmatpush1.msra.mxu0 0.0
      %480 = vmatprep.subr.mxu0 0.0
      %481 = vmatpush1.msra.mxu0 0.0
      %482 = vmatprep.subr.mxu0 0.0
      %483 = vmatpush1.msra.mxu0 0.0
      %484 = vmatprep.subr.mxu0 0.0
      %485 = vmatpush1.msra.mxu0 0.0
      %486 = vmatprep.subr.mxu0 0.0
      %487 = vmatpush1.msra.mxu0 0.0
      %488 = vmatprep.subr.mxu0 0.0
      %489 = vmatpush1.msra.mxu0 0.0
      %490 = vmatprep.subr.mxu0 0.0
      %491 = vmatpush1.msra.mxu0 0.0
      %492 = vmatprep.subr.mxu0 0.0
      %493 = vmatpush1.msra.mxu0 0.0
      %494 = vmatprep.subr.mxu0 0.0
      %495 = vmatpush1.msra.mxu0 0.0
      %496 = vmatprep.subr.mxu0 0.0
      %497 = vmatpush1.msra.mxu0 0.0
      %498 = vmatprep.subr.mxu0 0.0
      %499 = vmatpush1.msra.mxu0 0.0
      %500 = vmatprep.subr.mxu0 0.0
      %501 = vmatpush1.msra.mxu0 0.0
      %502 = vmatprep.subr.mxu0 0.0
      %503 = vmatpush1.msra.mxu0 0.0
      %504 = vmatprep.subr.mxu0 0.0
      %505 = vmatpush1.msra.mxu0 0.0
      %506 = vmatprep.subr.mxu0 0.0
      %507 = vmatpush1.msra.mxu0 0.0
      %508 = vmatprep.subr.mxu0 0.0
      %509 = vmatpush1.msra.mxu0 0.0
      %510 = vmatprep.subr.mxu0 0.0
      %511 = vmatpush1.msra.mxu0 0.0
      %512 = vmatprep.subr.mxu0 0.0
      %513 = vmatpush1.msra.mxu0 0.0
      %514 = vmatprep.subr.mxu0 0.0
      %515 = vmatpush1.msra.mxu0 0.0
      %516 = vmatprep.subr.mxu0 0.0
      %517 = vmatpush1.msra.mxu0 0.0
      %518 = vmatprep.subr.mxu0 0.0
      %519 = vmatpush1.msra.mxu0 0.0
      %520 = vmatprep.subr.mxu0 0.0
      %521 = vmatpush1.msra.mxu0 0.0
      %522 = vmatprep.subr.mxu0 0.0
      %523 = vmatpush1.msra.mxu0 0.0
      %524 = vmatprep.mubr.f32.mxu0 0.0
      %525 = vmatmul.mubr.f32.gmra.mrb[0].mxu0 %v458
      %v526 = vpop.f32.mrb[0].mxu0
      %v527 = vadd.f32 0.0, %v526
      %v528 = vpop.f32.mrb[0].mxu0
      %529 = vdwg.mxu0
      %v531 = vrot.slane %v527, 6
      %v533 = vadd.f32 %v344, %v531
      %v534 = vxor.u32 %v533, 2147483648
      %v535 = vmul.f32 %v534, 1.442695
      %v536 = vpow.pop %v535
      %v537 = vadd.f32 %v536, 1.0
      %v538 = vrcp.pop %v537
      %v539 = vmul.f32 1.0, %v538
      %v540 = vtanh.pop %v533
      %v542 = vrot.slane %v448, 6
      %v544 = vmul.f32 %v539, %v542
      %546 = vrot.lane.b32.xlu0 %v540, 64
      %v547 = vpop.permute.xlu0 %546
      %v549 = vmul.f32 %v539, %v547
      %551 = vrot.lane.b32.xlu0 %v549, 32
      %v552 = vpop.permute.xlu0 %551
      %v554 = vadd.f32 %v544, %v552
      %v555 = vtanh.pop %v554
      %557 = vrot.lane.b32.xlu0 %v555, 64
      %v558 = vpop.permute.xlu0 %557
      %v560 = vmul.f32 %v539, %v558
      %v562 = vrot.slane %v560, 2
      %563 = vrot.lane.b32.xlu0 %v562, 32
      %v564 = vpop.permute.xlu0 %563
      %v565 = vsel %vm356, %v564, 0
      %567 = vmatprep.subr.mxu0 0.0
      %568 = vmatpush1.msra.mxu0 %v352
      %569 = vmatprep.subr.mxu0 0.0
      %570 = vmatpush1.msra.mxu0 %v353
      %571 = vmatprep.subr.mxu0 0.0
      %572 = vmatpush1.msra.mxu0 %v354
      %573 = vmatprep.subr.mxu0 0.0
      %574 = vmatpush1.msra.mxu0 %v355
      %575 = vmatprep.subr.mxu0 0.0
      %576 = vmatpush1.msra.mxu0 0.0
      %577 = vmatprep.subr.mxu0 0.0
      %578 = vmatpush1.msra.mxu0 0.0
      %579 = vmatprep.subr.mxu0 0.0
      %580 = vmatpush1.msra.mxu0 0.0
      %581 = vmatprep.subr.mxu0 0.0
      %582 = vmatpush1.msra.mxu0 0.0
      %583 = vmatprep.subr.mxu0 0.0
      %584 = vmatpush1.msra.mxu0 0.0
      %585 = vmatprep.subr.mxu0 0.0
      %586 = vmatpush1.msra.mxu0 0.0
      %587 = vmatprep.subr.mxu0 0.0
      %588 = vmatpush1.msra.mxu0 0.0
      %589 = vmatprep.subr.mxu0 0.0
      %590 = vmatpush1.msra.mxu0 0.0
      %591 = vmatprep.subr.mxu0 0.0
      %592 = vmatpush1.msra.mxu0 0.0
      %593 = vmatprep.subr.mxu0 0.0
      %594 = vmatpush1.msra.mxu0 0.0
      %595 = vmatprep.subr.mxu0 0.0
      %596 = vmatpush1.msra.mxu0 0.0
      %597 = vmatprep.subr.mxu0 0.0
      %598 = vmatpush1.msra.mxu0 0.0
      %599 = vmatprep.subr.mxu0 0.0
      %600 = vmatpush1.msra.mxu0 0.0
      %601 = vmatprep.subr.mxu0 0.0
      %602 = vmatpush1.msra.mxu0 0.0
      %603 = vmatprep.subr.mxu0 0.0
      %604 = vmatpush1.msra.mxu0 0.0
      %605 = vmatprep.subr.mxu0 0.0
      %606 = vmatpush1.msra.mxu0 0.0
      %607 = vmatprep.subr.mxu0 0.0
      %608 = vmatpush1.msra.mxu0 0.0
      %609 = vmatprep.subr.mxu0 0.0
      %610 = vmatpush1.msra.mxu0 0.0
      %611 = vmatprep.subr.mxu0 0.0
      %612 = vmatpush1.msra.mxu0 0.0
      %613 = vmatprep.subr.mxu0 0.0
      %614 = vmatpush1.msra.mxu0 0.0
      %615 = vmatprep.subr.mxu0 0.0
      %616 = vmatpush1.msra.mxu0 0.0
      %617 = vmatprep.subr.mxu0 0.0
      %618 = vmatpush1.msra.mxu0 0.0
      %619 = vmatprep.subr.mxu0 0.0
      %620 = vmatpush1.msra.mxu0 0.0
      %621 = vmatprep.subr.mxu0 0.0
      %622 = vmatpush1.msra.mxu0 0.0
      %623 = vmatprep.subr.mxu0 0.0
      %624 = vmatpush1.msra.mxu0 0.0
      %625 = vmatprep.subr.mxu0 0.0
      %626 = vmatpush1.msra.mxu0 0.0
      %627 = vmatprep.subr.mxu0 0.0
      %628 = vmatpush1.msra.mxu0 0.0
      %629 = vmatprep.subr.mxu0 0.0
      %630 = vmatpush1.msra.mxu0 0.0
      %631 = vmatprep.mubr.f32.mxu0 0.0
      %632 = vmatmul.mubr.f32.gmra.mrb[0].mxu0 %v565
      %v633 = vpop.f32.mrb[0].mxu0
      %v634 = vadd.f32 0.0, %v633
      %v635 = vpop.f32.mrb[0].mxu0
      %636 = vdwg.mxu0
      %v638 = vrot.slane %v634, 4
      %v640 = vadd.f32 %v344, %v638
      %v641 = vxor.u32 %v640, 2147483648
      %v642 = vmul.f32 %v641, 1.442695
      %v643 = vpow.pop %v642
      %v644 = vadd.f32 %v643, 1.0
      %v645 = vrcp.pop %v644
      %v646 = vmul.f32 1.0, %v645
      %v647 = vtanh.pop %v640
      %v649 = vrot.slane %v554, 6
      %v651 = vmul.f32 %v646, %v649
      %653 = vrot.lane.b32.xlu0 %v647, 64
      %v654 = vpop.permute.xlu0 %653
      %v656 = vmul.f32 %v646, %v654
      %658 = vrot.lane.b32.xlu0 %v656, 32
      %v659 = vpop.permute.xlu0 %658
      %v661 = vadd.f32 %v651, %v659
      %v662 = vtanh.pop %v661
      %664 = vrot.lane.b32.xlu0 %v662, 64
      %v665 = vpop.permute.xlu0 %664
      %v667 = vmul.f32 %v646, %v665
      %v669 = vrot.slane %v667, 4
      %670 = vrot.lane.b32.xlu0 %v669, 32
      %v671 = vpop.permute.xlu0 %670
      %v672 = vsel %vm356, %v671, 0
      %674 = vmatprep.subr.mxu0 0.0
      %675 = vmatpush1.msra.mxu0 %v352
      %676 = vmatprep.subr.mxu0 0.0
      %677 = vmatpush1.msra.mxu0 %v353
      %678 = vmatprep.subr.mxu0 0.0
      %679 = vmatpush1.msra.mxu0 %v354
      %680 = vmatprep.subr.mxu0 0.0
      %681 = vmatpush1.msra.mxu0 %v355
      %682 = vmatprep.subr.mxu0 0.0
      %683 = vmatpush1.msra.mxu0 0.0
      %684 = vmatprep.subr.mxu0 0.0
      %685 = vmatpush1.msra.mxu0 0.0
      %686 = vmatprep.subr.mxu0 0.0
      %687 = vmatpush1.msra.mxu0 0.0
      %688 = vmatprep.subr.mxu0 0.0
      %689 = vmatpush1.msra.mxu0 0.0
      %690 = vmatprep.subr.mxu0 0.0
      %691 = vmatpush1.msra.mxu0 0.0
      %692 = vmatprep.subr.mxu0 0.0
      %693 = vmatpush1.msra.mxu0 0.0
      %694 = vmatprep.subr.mxu0 0.0
      %695 = vmatpush1.msra.mxu0 0.0
      %696 = vmatprep.subr.mxu0 0.0
      %697 = vmatpush1.msra.mxu0 0.0
      %698 = vmatprep.subr.mxu0 0.0
      %699 = vmatpush1.msra.mxu0 0.0
      %700 = vmatprep.subr.mxu0 0.0
      %701 = vmatpush1.msra.mxu0 0.0
      %702 = vmatprep.subr.mxu0 0.0
      %703 = vmatpush1.msra.mxu0 0.0
      %704 = vmatprep.subr.mxu0 0.0
      %705 = vmatpush1.msra.mxu0 0.0
      %706 = vmatprep.subr.mxu0 0.0
      %707 = vmatpush1.msra.mxu0 0.0
      %708 = vmatprep.subr.mxu0 0.0
      %709 = vmatpush1.msra.mxu0 0.0
      %710 = vmatprep.subr.mxu0 0.0
      %711 = vmatpush1.msra.mxu0 0.0
      %712 = vmatprep.subr.mxu0 0.0
      %713 = vmatpush1.msra.mxu0 0.0
      %714 = vmatprep.subr.mxu0 0.0
      %715 = vmatpush1.msra.mxu0 0.0
      %716 = vmatprep.subr.mxu0 0.0
      %717 = vmatpush1.msra.mxu0 0.0
      %718 = vmatprep.subr.mxu0 0.0
      %719 = vmatpush1.msra.mxu0 0.0
      %720 = vmatprep.subr.mxu0 0.0
      %721 = vmatpush1.msra.mxu0 0.0
      %722 = vmatprep.subr.mxu0 0.0
      %723 = vmatpush1.msra.mxu0 0.0
      %724 = vmatprep.subr.mxu0 0.0
      %725 = vmatpush1.msra.mxu0 0.0
      %726 = vmatprep.subr.mxu0 0.0
      %727 = vmatpush1.msra.mxu0 0.0
      %728 = vmatprep.subr.mxu0 0.0
      %729 = vmatpush1.msra.mxu0 0.0
      %730 = vmatprep.subr.mxu0 0.0
      %731 = vmatpush1.msra.mxu0 0.0
      %732 = vmatprep.subr.mxu0 0.0
      %733 = vmatpush1.msra.mxu0 0.0
      %734 = vmatprep.subr.mxu0 0.0
      %735 = vmatpush1.msra.mxu0 0.0
      %736 = vmatprep.subr.mxu0 0.0
      %737 = vmatpush1.msra.mxu0 0.0
      %738 = vmatprep.mubr.f32.mxu0 0.0
      %739 = vmatmul.mubr.f32.gmra.mrb[0].mxu0 %v672
      %v740 = vpop.f32.mrb[0].mxu0
      %v741 = vadd.f32 0.0, %v740
      %v742 = vpop.f32.mrb[0].mxu0
      %743 = vdwg.mxu0
      %v745 = vrot.slane %v741, 2
      %v747 = vadd.f32 %v344, %v745
      %v748 = vxor.u32 %v747, 2147483648
      %v749 = vmul.f32 %v748, 1.442695
      %v750 = vpow.pop %v749
      %v751 = vadd.f32 %v750, 1.0
      %v752 = vrcp.pop %v751
      %v753 = vmul.f32 1.0, %v752
      %v754 = vtanh.pop %v747
      %v756 = vrot.slane %v661, 6
      %v758 = vmul.f32 %v753, %v756
      %760 = vrot.lane.b32.xlu0 %v754, 64
      %v761 = vpop.permute.xlu0 %760
      %v763 = vmul.f32 %v753, %v761
      %765 = vrot.lane.b32.xlu0 %v763, 32
      %v766 = vpop.permute.xlu0 %765
      %v768 = vadd.f32 %v758, %v766
      %v769 = vtanh.pop %v768
      %771 = vrot.lane.b32.xlu0 %v769, 64
      %v772 = vpop.permute.xlu0 %771
      %v774 = vmul.f32 %v753, %v772
      %v776 = vrot.slane %v774, 6
      %777 = vrot.lane.b32.xlu0 %v776, 32
      %v778 = vpop.permute.xlu0 %777
      %v779 = vsel %vm356, %v778, 0
      %781 = vmatprep.subr.mxu0 0.0
      %782 = vmatpush1.msra.mxu0 %v352
      %783 = vmatprep.subr.mxu0 0.0
      %784 = vmatpush1.msra.mxu0 %v353
      %785 = vmatprep.subr.mxu0 0.0
      %786 = vmatpush1.msra.mxu0 %v354
      %787 = vmatprep.subr.mxu0 0.0
      %788 = vmatpush1.msra.mxu0 %v355
      %789 = vmatprep.subr.mxu0 0.0
      %790 = vmatpush1.msra.mxu0 0.0
      %791 = vmatprep.subr.mxu0 0.0
      %792 = vmatpush1.msra.mxu0 0.0
      %793 = vmatprep.subr.mxu0 0.0
      %794 = vmatpush1.msra.mxu0 0.0
      %795 = vmatprep.subr.mxu0 0.0
      %796 = vmatpush1.msra.mxu0 0.0
      %797 = vmatprep.subr.mxu0 0.0
      %798 = vmatpush1.msra.mxu0 0.0
      %799 = vmatprep.subr.mxu0 0.0
      %800 = vmatpush1.msra.mxu0 0.0
      %801 = vmatprep.subr.mxu0 0.0
      %802 = vmatpush1.msra.mxu0 0.0
      %803 = vmatprep.subr.mxu0 0.0
      %804 = vmatpush1.msra.mxu0 0.0
      %805 = vmatprep.subr.mxu0 0.0
      %806 = vmatpush1.msra.mxu0 0.0
      %807 = vmatprep.subr.mxu0 0.0
      %808 = vmatpush1.msra.mxu0 0.0
      %809 = vmatprep.subr.mxu0 0.0
      %810 = vmatpush1.msra.mxu0 0.0
      %811 = vmatprep.subr.mxu0 0.0
      %812 = vmatpush1.msra.mxu0 0.0
      %813 = vmatprep.subr.mxu0 0.0
      %814 = vmatpush1.msra.mxu0 0.0
      %815 = vmatprep.subr.mxu0 0.0
      %816 = vmatpush1.msra.mxu0 0.0
      %817 = vmatprep.subr.mxu0 0.0
      %818 = vmatpush1.msra.mxu0 0.0
      %819 = vmatprep.subr.mxu0 0.0
      %820 = vmatpush1.msra.mxu0 0.0
      %821 = vmatprep.subr.mxu0 0.0
      %822 = vmatpush1.msra.mxu0 0.0
      %823 = vmatprep.subr.mxu0 0.0
      %824 = vmatpush1.msra.mxu0 0.0
      %825 = vmatprep.subr.mxu0 0.0
      %826 = vmatpush1.msra.mxu0 0.0
      %827 = vmatprep.subr.mxu0 0.0
      %828 = vmatpush1.msra.mxu0 0.0
      %829 = vmatprep.subr.mxu0 0.0
      %830 = vmatpush1.msra.mxu0 0.0
      %831 = vmatprep.subr.mxu0 0.0
      %832 = vmatpush1.msra.mxu0 0.0
      %833 = vmatprep.subr.mxu0 0.0
      %834 = vmatpush1.msra.mxu0 0.0
      %835 = vmatprep.subr.mxu0 0.0
      %836 = vmatpush1.msra.mxu0 0.0
      %837 = vmatprep.subr.mxu0 0.0
      %838 = vmatpush1.msra.mxu0 0.0
      %839 = vmatprep.subr.mxu0 0.0
      %840 = vmatpush1.msra.mxu0 0.0
      %841 = vmatprep.subr.mxu0 0.0
      %842 = vmatpush1.msra.mxu0 0.0
      %843 = vmatprep.subr.mxu0 0.0
      %844 = vmatpush1.msra.mxu0 0.0
      %845 = vmatprep.mubr.f32.mxu0 0.0
      %846 = vmatmul.mubr.f32.gmra.mrb[0].mxu0 %v779
      %v847 = vpop.f32.mrb[0].mxu0
      %v848 = vadd.f32 0.0, %v847
      %v849 = vpop.f32.mrb[0].mxu0
      %850 = vdwg.mxu0
      %v851 = vadd.f32 %v349, %v848
      %v852 = vxor.u32 %v851, 2147483648
      %v853 = vmul.f32 %v852, 1.442695
      %v854 = vpow.pop %v853
      %v855 = vadd.f32 %v854, 1.0
      %v856 = vrcp.pop %v855
      %v857 = vmul.f32 1.0, %v856
      %v858 = vtanh.pop %v851
      %v860 = vrot.slane %v768, 6
      %v862 = vmul.f32 %v857, %v860
      %864 = vrot.lane.b32.xlu0 %v858, 64
      %v865 = vpop.permute.xlu0 %864
      %v867 = vmul.f32 %v857, %v865
      %869 = vrot.lane.b32.xlu0 %v867, 32
      %v870 = vpop.permute.xlu0 %869
      %v872 = vadd.f32 %v862, %v870
      %v873 = vtanh.pop %v872
      %875 = vrot.lane.b32.xlu0 %v873, 64
      %v876 = vpop.permute.xlu0 %875
      %v878 = vmul.f32 %v857, %v876
      %v879 = vsel %vm240, %v454, %v560
      %v880 = vsel %vm242, %v879, %v667
      %v881 = vsel %vm244, %v880, %v774
      %v882 = vrot.slane %v774, 4
      %v884 = vrot.slane %v560, 4
      %v886 = vsel %vm240, %v878, %v882
      %v887 = vsel %vm242, %v886, %v667
      %v888 = vsel %vm244, %v887, %v884
      %v889 = vmul.f32 %v246, %v881
      %v890 = vmul.f32 %v246, %v878
      %v891 = vmul.f32 %v250, %v888
      %v892 = vmul.f32 %v250, %v454
      %v893 = vadd.f32 %v889, %v891
      %v894 = vadd.f32 %v890, %v892
      %897 = vrot.lane.b32.xlu0 %v893, 32
      %v898 = vpop.permute.xlu0 %897
      %899 = vrot.lane.b32.xlu0 %v894, 32
      %v900 = vpop.permute.xlu0 %899
      %903 = vst.msk [vmem:[%s231] sm:$0xff] %vm356, %v898
      %vm904 = vcmask 254976
      %905 = vst.msk [vmem:[%s231 + $0x8] sm:$0x3] %vm904, %v900
      %p906 = scmp.lt.s32.totalorder %s15, 1
      %s907 = scalar_select %p906, %s15, 1
      %s908 = smul.addr %s907, 2
      %s909 = smul.addr %s908, 8
      %s910 = scalar_lea.vmem %s4, %s909
      // Predicated region
      $region37: #{net_forward.11} parent=35 // pred_check
        %p911 = pneg %p132
      $region38: #{net_forward.11} parent=35 // pred_check_branch
        %913 = sbr.rel (%p911) target = $region40
      $region39: #{net_forward.11} parent=35 // pred_region
        _
      $region40: #{net_forward.11} parent=35 // pred_fallthru
        _
    $region36: #{net_forward.11} parent=5 // pred_fallthru
      _
    %p914 = scmp.le.s32.totalorder 2, %s10
    // Predicated region
    $region41: #{net_forward.11} parent=5 // pred_check
      %p915 = pneg %p914
    $region42: #{net_forward.11} parent=5 // pred_check_branch
      %917 = sbr.rel (%p915) target = $region44
    $region43: #{net_forward.11} parent=5 // pred_region
      %s918 = ssub.s32 %s10, 2
      // Predicated region
      $region45: #{net_forward.11} parent=43 // pred_check
        %p919 = pneg %p138
      $region46: #{net_forward.11} parent=43 // pred_check_branch
        %921 = sbr.rel (%p919) target = $region48
      $region47: #{net_forward.11} parent=43 // pred_region
        %p922 = scmp.lt.s32.totalorder %s16, 1
        %s923 = scalar_select %p922, %s16, 1
        %s924 = smul.addr %s923, 2
        %s925 = smul.addr %s924, 8
        %s926 = scalar_lea.vmem %s4, %s925
      $region48: #{net_forward.11} parent=43 // pred_fallthru
        _
    $region44: #{net_forward.11} parent=5 // pred_fallthru
      _
  $region6: #{net_forward.11} parent=0 // loop_footer
    %s14 = sadd.s32 1, %s10
  $region7: #{net_forward.11} parent=0 // loop_footer_branch
    %9 = sbr.rel target = $region3
  $region8: #{net_forward.11} parent=0 // loop_exit
    _

// kernel: net_forward.13
$region0: #{net_forward.13}
  #allocation0 [shape = 'u32[]', space=smem, size = 0x4, offset = 0x4, fixed_abs, tag = 'smem constant byte address 0x4 - core index']
  #allocation1 [shape = 'u32[144,128]{1,0:T(1,128)}', space=vmem, size = 0x12000, scoped, tag = 'internal scratch']
  %s0 = inlined_call_operand.vmem [shape: f32[10,64], index: 0, kind: input, shape index: {}]
  %s1 = inlined_call_operand.vmem [shape: f32[64,11], index: 1, kind: input, shape index: {}]
  %s2 = inlined_call_operand.vmem [shape: f32[1,11], index: 2, kind: input, shape index: {}]
  %s3 = inlined_call_operand.hbm [shape: f32[10,11], index: 3, kind: output, shape index: {0}]
  %s4 = inlined_call_operand.hbm [shape: f32[10,11], index: 4, kind: output, shape index: {1}]
  %5 = xla_tuple %s3, %s4
  %s6 = sld [smem:[#allocation0]]
  $region30: #{net_forward.13} parent=0
    _
  %s8 = ssub.s32 1, %s6
  %s9 = scalar_select 0, %s8, %s6
  $region1: #{net_forward.13} parent=0
    #allocation2 [shape = 'u8[8192]{0}', space=vmem, size = 0x2000, scoped, tag = 'output window, operand 0, single buffered']
    #allocation3 [shape = 's32[1]{0}', space=sflag, size = 0x4, scoped, tag = 'scoped memory for net_forward.13']
    #allocation4 [shape = 'u8[8192]{0}', space=vmem, size = 0x2000, scoped, tag = 'output window, operand 1, single buffered']
    #allocation5 [shape = 's32[1]{0}', space=sflag, size = 0x4, scoped, tag = 'scoped memory for net_forward.13']
    %10 = vsyncpa [#allocation3], 0
    %11 = vsyncpa [#allocation5], 0
    // Predicated region
    $region2: #{net_forward.13} parent=1 // pred_check
      _
    $region3: #{net_forward.13} parent=1 // pred_check_branch
      %13 = sbr.rel (0) target = $region5
    $region4: #{net_forward.13} parent=1 // pred_region
      _
    $region5: #{net_forward.13} parent=1 // pred_fallthru
      _
    // Predicated region
    $region6: #{net_forward.13} parent=1 // pred_check
      _
    $region7: #{net_forward.13} parent=1 // pred_check_branch
      %15 = sbr.rel (0) target = $region9
    $region8: #{net_forward.13} parent=1 // pred_region
      _
    $region9: #{net_forward.13} parent=1 // pred_fallthru
      _
    // Predicated region
    $region10: #{net_forward.13} parent=1 // pred_check
      _
    $region11: #{net_forward.13} parent=1 // pred_check_branch
      %17 = sbr.rel (0) target = $region13
    $region12: #{net_forward.13} parent=1 // pred_region
      _
    $region13: #{net_forward.13} parent=1 // pred_fallthru
      _
    %v18 = vld [vmem:[%s0] sm:$0xff]
    %v19 = vld [vmem:[%s0 + $0x8] sm:$0x3]
    %v20 = vld [vmem:[%s1] sm:$0xff]
    %v21 = vld [vmem:[%s1 + $0x8] sm:$0xff]
    %v22 = vld [vmem:[%s1 + $0x10] sm:$0xff]
    %v23 = vld [vmem:[%s1 + $0x18] sm:$0xff]
    %v24 = vld [vmem:[%s1 + $0x20] sm:$0xff]
    %v25 = vld [vmem:[%s1 + $0x28] sm:$0xff]
    %v26 = vld [vmem:[%s1 + $0x30] sm:$0xff]
    %v27 = vld [vmem:[%s1 + $0x38] sm:$0xff]
    %v28 = vld [vmem:[%s2] sm:$0x1]
    %v30 = vlaneseq
    %v31 = vshrl.u32 %v30, 7
    %v32 = vsub.s32 0, %v31
    %v33 = vrot.slane %v28, %v32
    %vm35 = vcmask 523264
    %v37 = vsel %vm35, %v18, 0
    %v40 = vsel %vm35, %v19, 0
    %42 = vmatprep.subr.mxu0 0.0
    %43 = vmatpush1.msra.mxu0 %v20
    %44 = vmatprep.subr.mxu0 0.0
    %45 = vmatpush1.msra.mxu0 %v21
    %46 = vmatprep.subr.mxu0 0.0
    %47 = vmatpush1.msra.mxu0 %v22
    %48 = vmatprep.subr.mxu0 0.0
    %49 = vmatpush1.msra.mxu0 %v23
    %50 = vmatprep.subr.mxu0 0.0
    %51 = vmatpush1.msra.mxu0 %v24
    %52 = vmatprep.subr.mxu0 0.0
    %53 = vmatpush1.msra.mxu0 %v25
    %54 = vmatprep.subr.mxu0 0.0
    %55 = vmatpush1.msra.mxu0 %v26
    %56 = vmatprep.subr.mxu0 0.0
    %57 = vmatpush1.msra.mxu0 %v27
    %58 = vmatprep.subr.mxu0 0.0
    %59 = vmatpush1.msra.mxu0 0.0
    %60 = vmatprep.subr.mxu0 0.0
    %61 = vmatpush1.msra.mxu0 0.0
    %62 = vmatprep.subr.mxu0 0.0
    %63 = vmatpush1.msra.mxu0 0.0
    %64 = vmatprep.subr.mxu0 0.0
    %65 = vmatpush1.msra.mxu0 0.0
    %66 = vmatprep.subr.mxu0 0.0
    %67 = vmatpush1.msra.mxu0 0.0
    %68 = vmatprep.subr.mxu0 0.0
    %69 = vmatpush1.msra.mxu0 0.0
    %70 = vmatprep.subr.mxu0 0.0
    %71 = vmatpush1.msra.mxu0 0.0
    %72 = vmatprep.subr.mxu0 0.0
    %73 = vmatpush1.msra.mxu0 0.0
    %74 = vmatprep.subr.mxu0 0.0
    %75 = vmatpush1.msra.mxu0 0.0
    %76 = vmatprep.subr.mxu0 0.0
    %77 = vmatpush1.msra.mxu0 0.0
    %78 = vmatprep.subr.mxu0 0.0
    %79 = vmatpush1.msra.mxu0 0.0
    %80 = vmatprep.subr.mxu0 0.0
    %81 = vmatpush1.msra.mxu0 0.0
    %82 = vmatprep.subr.mxu0 0.0
    %83 = vmatpush1.msra.mxu0 0.0
    %84 = vmatprep.subr.mxu0 0.0
    %85 = vmatpush1.msra.mxu0 0.0
    %86 = vmatprep.subr.mxu0 0.0
    %87 = vmatpush1.msra.mxu0 0.0
    %88 = vmatprep.subr.mxu0 0.0
    %89 = vmatpush1.msra.mxu0 0.0
    %90 = vmatprep.subr.mxu0 0.0
    %91 = vmatpush1.msra.mxu0 0.0
    %92 = vmatprep.subr.mxu0 0.0
    %93 = vmatpush1.msra.mxu0 0.0
    %94 = vmatprep.subr.mxu0 0.0
    %95 = vmatpush1.msra.mxu0 0.0
    %96 = vmatprep.subr.mxu0 0.0
    %97 = vmatpush1.msra.mxu0 0.0
    %98 = vmatprep.subr.mxu0 0.0
    %99 = vmatpush1.msra.mxu0 0.0
    %100 = vmatprep.subr.mxu0 0.0
    %101 = vmatpush1.msra.mxu0 0.0
    %102 = vmatprep.subr.mxu0 0.0
    %103 = vmatpush1.msra.mxu0 0.0
    %104 = vmatprep.subr.mxu0 0.0
    %105 = vmatpush1.msra.mxu0 0.0
    %106 = vmatprep.mubr.f32.mxu0 0.0
    %107 = vmatmul.mubr.f32.gmra.mrb[0].mxu0 %v37
    %v108 = vpop.f32.mrb[0].mxu0
    %v109 = vadd.f32 %v33, %v108
    %v110 = vpop.f32.mrb[0].mxu0
    %111 = vmatprep.mubr.f32.mxu0 0.0
    %112 = vmatmul.mubr.f32.gmra.mrb[0].mxu0 %v40
    %v113 = vpop.f32.mrb[0].mxu0
    %v114 = vadd.f32 %v33, %v113
    %v115 = vpop.f32.mrb[0].mxu0
    %116 = vdwg.mxu0
    %vm117 = vcmask 89088
    %v118 = vsel %vm117, %v109, -inf
    %119 = vmax.xlane.f32.xlu0 %v118
    %v120 = vpop.xlane.xlu0 %119
    %vm121 = vcmask 82944
    %v122 = vsel %vm121, %v114, -inf
    %123 = vmax.xlane.f32.xlu0 %v122
    %v124 = vpop.xlane.xlu0 %123
    %v125 = vsub.f32 %v109, %v120
    %v126 = vsub.f32 %v114, %v124
    %v127 = vmul.f32 %v125, 1.442695
    %v128 = vpow.pop %v127
    %v129 = vmul.f32 %v126, 1.442695
    %v130 = vpow.pop %v129
    %v131 = vsel %vm117, %v128, 0.0
    %132 = vadd.xlane.f32.xlu0 %v131
    %v133 = vpop.xlane.xlu0 %132
    %v134 = vsel %vm121, %v130, 0.0
    %135 = vadd.xlane.f32.xlu0 %v134
    %v136 = vpop.xlane.xlu0 %135
    %v137 = vrcp.pop %v133
    %v138 = vmul.f32 %v128, %v137
    %v139 = vrcp.pop %v136
    %v140 = vmul.f32 %v130, %v139
    %141 = vst.msk [vmem:[#allocation2] sm:$0xff] %vm117, %v138
    %142 = vst.msk [vmem:[#allocation2 + $0x8] sm:$0x3] %vm121, %v140
    %v143 = vlog2.pop %v133
    %v144 = vmul.f32 %v143, 0.6931472
    %v145 = vlog2.pop %v136
    %v146 = vmul.f32 %v145, 0.6931472
    %v147 = vsub.f32 %v125, %v144
    %v148 = vsub.f32 %v126, %v146
    %149 = vst.msk [vmem:[#allocation4] sm:$0xff] %vm117, %v147
    %150 = vst.msk [vmem:[#allocation4 + $0x8] sm:$0x3] %vm121, %v148
    // Predicated region
    $region14: #{net_forward.13} parent=1 // pred_check
      _
    $region15: #{net_forward.13} parent=1 // pred_check_branch
      %152 = sbr.rel (0) target = $region17
    $region16: #{net_forward.13} parent=1 // pred_region
      %s154 = ssub.s32 256, 256
      %155 = vsyncadd [#allocation3], %s154
      %s156 = sshll.u32 [#allocation2], 4
      %s157 = int_to_ptr.vmem [resolvable:$true] %s156
      %162 = dma.vmem_to_hbm [thread:$0]  %s157, 256, %s3, [#allocation3], 128, 128, 8
    $region17: #{net_forward.13} parent=1 // pred_fallthru
      _
    // Predicated region
    $region18: #{net_forward.13} parent=1 // pred_check
      _
    $region19: #{net_forward.13} parent=1 // pred_check_branch
      %164 = sbr.rel (0) target = $region21
    $region20: #{net_forward.13} parent=1 // pred_region
      %s166 = ssub.s32 256, 256
      %167 = vsyncadd [#allocation5], %s166
      %s168 = sshll.u32 [#allocation4], 4
      %s169 = int_to_ptr.vmem [resolvable:$true] %s168
      %174 = dma.vmem_to_hbm [thread:$0]  %s169, 256, %s4, [#allocation5], 128, 128, 8
    $region21: #{net_forward.13} parent=1 // pred_fallthru
      _
    // Predicated region
    $region22: #{net_forward.13} parent=1 // pred_check
      _
    $region23: #{net_forward.13} parent=1 // pred_check_branch
      %176 = sbr.rel (0) target = $region25
    $region24: #{net_forward.13} parent=1 // pred_region
      %177 = dma.done [#allocation3], 256
    $region25: #{net_forward.13} parent=1 // pred_fallthru
      _
    // Predicated region
    $region26: #{net_forward.13} parent=1 // pred_check
      _
    $region27: #{net_forward.13} parent=1 // pred_check_branch
      %179 = sbr.rel (0) target = $region29
    $region28: #{net_forward.13} parent=1 // pred_region
      %180 = dma.done [#allocation5], 256
    $region29: #{net_forward.13} parent=1 // pred_fallthru
      _
    %181 = vsyncpa [#allocation3], 1
    %182 = vsyncpa [#allocation5], 1

// kernel: net_forward.10
$region0: #{net_forward.10}
  #allocation0 [shape = 'u32[]', space=smem, size = 0x4, offset = 0x4, fixed_abs, tag = 'smem constant byte address 0x4 - core index']
  #allocation1 [shape = 'u32[144,128]{1,0:T(1,128)}', space=vmem, size = 0x12000, scoped, tag = 'internal scratch']
  %s0 = inlined_call_operand.vmem [shape: f32[10,125], index: 0, kind: input, shape index: {}]
  %s1 = inlined_call_operand.vmem [shape: f32[2,125,128], index: 1, kind: input, shape index: {}]
  %s2 = inlined_call_operand.vmem [shape: f32[2,32,128], index: 2, kind: input, shape index: {}]
  %s3 = inlined_call_operand.vmem [shape: f32[2,1,128], index: 3, kind: input, shape index: {}]
  %s4 = inlined_call_operand.vmem [shape: f32[2,10,32], index: 4, kind: output, shape index: {}]
  %s5 = sld [smem:[#allocation0]]
  $region49: #{net_forward.10} parent=0
    _
  %s7 = ssub.s32 1, %s5
  %s8 = scalar_select 0, %s7, %s5
  loop: start=0, step=1, limit=4
  $region2: #{net_forward.10} parent=0 // loop_pre_header
    _
  $region3: #{net_forward.10} parent=0 // loop_header
    %s10 = sphi 0, %s14
    %p11 = scmp.ge.s32.totalorder %s10, 4
    %s18 = sphi 0, %s18
    %s20 = sphi 0, %s18
    %s21 = sphi 0, %s20
    %s35 = sphi 0, %s21
    %s41 = sphi 0, %s43
    %s44 = sphi 0, %s41
    %s45 = sphi 0, %s44
    %s61 = sphi 0, %s45
    %s67 = sphi 0, %s69
    %s70 = sphi 0, %s67
    %s71 = sphi 0, %s70
    %s87 = sphi 0, %s71
    %s93 = sphi 0, %s95
    %s96 = sphi 0, %s93
    %s97 = sphi 0, %s96
    %s113 = sphi 0, %s97
    %s119 = sphi 0, %s121
    %s122 = sphi 0, %s119
    %s123 = sphi 0, %s122
    %s139 = sphi 0, %s123
  $region4: #{net_forward.10} parent=0 // loop_header_branch
    %13 = sbr.rel (%p11) target = $region8
  $region5: #{net_forward.10} parent=0 // loop_body
    %s15 = ssub.s32 %s10, 1
    %s16 = ssub.s32 %s10, 2
    %s17 = sadd.s32 %s10, 1
    %s19 = sadd.s32 %s18, 1
    %p22 = scmp.eq.s32.totalorder %s10, 1
    %p23 = scmp.ne.s32.totalorder %s18, %s20
    %p24 = scmp.eq.s32.totalorder %s10, 0
    %p25 = por %p23, %p24
    %p26 = scmp.ne.s32.totalorder %s18, %s20
    %p27 = scmp.eq.s32.totalorder %s15, 1
    %p28 = por %p26, %p27
    %p29 = scmp.ne.s32.totalorder %s20, %s21
    %p30 = scmp.eq.s32.totalorder %s15, 0
    %p31 = por %p29, %p30
    %p32 = scmp.ne.s32.totalorder %s20, %s21
    %p33 = scmp.eq.s32.totalorder %s16, 1
    %p34 = por %p32, %p33
    %p36 = scmp.ne.s32.totalorder %s21, %s35
    %p37 = scmp.eq.s32.totalorder %s16, 0
    %p38 = por %p36, %p37
    %s39 = ssub.s32 %s10, %s17
    %p40 = scmp.eq.s32.totalorder %s39, 0
    %s42 = sadd.s32 %s41, 1
    %s43 = scalar_select %p40, %s41, %s42
    %p46 = pneg %p40
    %p47 = scmp.eq.s32.totalorder %s10, 1
    %p48 = por %p46, %p47
    %p49 = scmp.ne.s32.totalorder %s41, %s44
    %p50 = scmp.eq.s32.totalorder %s10, 0
    %p51 = por %p49, %p50
    %p52 = scmp.ne.s32.totalorder %s41, %s44
    %p53 = scmp.eq.s32.totalorder %s15, 1
    %p54 = por %p52, %p53
    %p55 = scmp.ne.s32.totalorder %s44, %s45
    %p56 = scmp.eq.s32.totalorder %s15, 0
    %p57 = por %p55, %p56
    %p58 = scmp.ne.s32.totalorder %s44, %s45
    %p59 = scmp.eq.s32.totalorder %s16, 1
    %p60 = por %p58, %p59
    %p62 = scmp.ne.s32.totalorder %s45, %s61
    %p63 = scmp.eq.s32.totalorder %s16, 0
    %p64 = por %p62, %p63
    %s65 = ssub.s32 %s10, %s17
    %p66 = scmp.eq.s32.totalorder %s65, 0
    %s68 = sadd.s32 %s67, 1
    %s69 = scalar_select %p66, %s67, %s68
    %p72 = pneg %p66
    %p73 = scmp.eq.s32.totalorder %s10, 1
    %p74 = por %p72, %p73
    %p75 = scmp.ne.s32.totalorder %s67, %s70
    %p76 = scmp.eq.s32.totalorder %s10, 0
    %p77 = por %p75, %p76
    %p78 = scmp.ne.s32.totalorder %s67, %s70
    %p79 = scmp.eq.s32.totalorder %s15, 1
    %p80 = por %p78, %p79
    %p81 = scmp.ne.s32.totalorder %s70, %s71
    %p82 = scmp.eq.s32.totalorder %s15, 0
    %p83 = por %p81, %p82
    %p84 = scmp.ne.s32.totalorder %s70, %s71
    %p85 = scmp.eq.s32.totalorder %s16, 1
    %p86 = por %p84, %p85
    %p88 = scmp.ne.s32.totalorder %s71, %s87
    %p89 = scmp.eq.s32.totalorder %s16, 0
    %p90 = por %p88, %p89
    %s91 = ssub.s32 %s10, %s17
    %p92 = scmp.eq.s32.totalorder %s91, 0
    %s94 = sadd.s32 %s93, 1
    %s95 = scalar_select %p92, %s93, %s94
    %p98 = pneg %p92
    %p99 = scmp.eq.s32.totalorder %s10, 1
    %p100 = por %p98, %p99
    %p101 = scmp.ne.s32.totalorder %s93, %s96
    %p102 = scmp.eq.s32.totalorder %s10, 0
    %p103 = por %p101, %p102
    %p104 = scmp.ne.s32.totalorder %s93, %s96
    %p105 = scmp.eq.s32.totalorder %s15, 1
    %p106 = por %p104, %p105
    %p107 = scmp.ne.s32.totalorder %s96, %s97
    %p108 = scmp.eq.s32.totalorder %s15, 0
    %p109 = por %p107, %p108
    %p110 = scmp.ne.s32.totalorder %s96, %s97
    %p111 = scmp.eq.s32.totalorder %s16, 1
    %p112 = por %p110, %p111
    %p114 = scmp.ne.s32.totalorder %s97, %s113
    %p115 = scmp.eq.s32.totalorder %s16, 0
    %p116 = por %p114, %p115
    %s117 = ssub.s32 %s10, %s17
    %p118 = scmp.eq.s32.totalorder %s117, 0
    %s120 = sadd.s32 %s119, 1
    %s121 = scalar_select %p118, %s119, %s120
    %p124 = pneg %p118
    %p125 = scmp.eq.s32.totalorder %s10, 1
    %p126 = por %p124, %p125
    %p127 = scmp.ne.s32.totalorder %s119, %s122
    %p128 = scmp.eq.s32.totalorder %s10, 0
    %p129 = por %p127, %p128
    %p130 = scmp.ne.s32.totalorder %s119, %s122
    %p131 = scmp.eq.s32.totalorder %s15, 1
    %p132 = por %p130, %p131
    %p133 = scmp.ne.s32.totalorder %s122, %s123
    %p134 = scmp.eq.s32.totalorder %s15, 0
    %p135 = por %p133, %p134
    %p136 = scmp.ne.s32.totalorder %s122, %s123
    %p137 = scmp.eq.s32.totalorder %s16, 1
    %p138 = por %p136, %p137
    %p140 = scmp.ne.s32.totalorder %s123, %s139
    %p141 = scmp.eq.s32.totalorder %s16, 0
    %p142 = por %p140, %p141
    %p143 = scmp.le.s32.totalorder 1, %s10
    %p144 = scmp.lt.s32.totalorder %s10, 3
    %p145 = pnand %p143, %p144
    %p146 = pneg %p145
    // Predicated region
    $region9: #{net_forward.10} parent=5 // pred_check
      _
    $region10: #{net_forward.10} parent=5 // pred_check_branch
      %148 = sbr.rel (%p145) target = $region12
    $region11: #{net_forward.10} parent=5 // pred_region
      %s149 = ssub.s32 %s10, 1
      // Predicated region
      $region13: #{net_forward.10} parent=11 // pred_check
        %p150 = pneg %p31
      $region14: #{net_forward.10} parent=11 // pred_check_branch
        %152 = sbr.rel (%p150) target = $region16
      $region15: #{net_forward.10} parent=11 // pred_region
        _
      $region16: #{net_forward.10} parent=11 // pred_fallthru
        _
    $region12: #{net_forward.10} parent=5 // pred_fallthru
      _
    %p153 = scmp.lt.s32.totalorder %s10, 2
    // Predicated region
    $region17: #{net_forward.10} parent=5 // pred_check
      %p154 = pneg %p153
    $region18: #{net_forward.10} parent=5 // pred_check_branch
      %156 = sbr.rel (%p154) target = $region20
    $region19: #{net_forward.10} parent=5 // pred_region
      // Predicated region
      $region21: #{net_forward.10} parent=19 // pred_check
        %p157 = pneg %p51
      $region22: #{net_forward.10} parent=19 // pred_check_branch
        %159 = sbr.rel (%p157) target = $region24
      $region23: #{net_forward.10} parent=19 // pred_region
        %p160 = scmp.lt.s32.totalorder %s10, 1
        %s161 = scalar_select %p160, %s10, 1
        %s162 = smul.addr %s161, 16
        %s163 = smul.addr %s162, 8
        %s164 = scalar_lea.vmem %s1, %s163
      $region24: #{net_forward.10} parent=19 // pred_fallthru
        _
      // Predicated region
      $region25: #{net_forward.10} parent=19 // pred_check
        %p165 = pneg %p77
      $region26: #{net_forward.10} parent=19 // pred_check_branch
        %167 = sbr.rel (%p165) target = $region28
      $region27: #{net_forward.10} parent=19 // pred_region
        %p168 = scmp.lt.s32.totalorder %s10, 1
        %s169 = scalar_select %p168, %s10, 1
        %s170 = smul.addr %s169, 4
        %s171 = smul.addr %s170, 8
        %s172 = scalar_lea.vmem %s2, %s171
      $region28: #{net_forward.10} parent=19 // pred_fallthru
        _
      // Predicated region
      $region29: #{net_forward.10} parent=19 // pred_check
        %p173 = pneg %p103
      $region30: #{net_forward.10} parent=19 // pred_check_branch
        %175 = sbr.rel (%p173) target = $region32
      $region31: #{net_forward.10} parent=19 // pred_region
        %p176 = scmp.lt.s32.totalorder %s10, 1
        %s177 = scalar_select %p176, %s10, 1
        %s178 = scalar_lea.vmem %s3, %s177
      $region32: #{net_forward.10} parent=19 // pred_fallthru
        _
    $region20: #{net_forward.10} parent=5 // pred_fallthru
      _
    %p179 = scmp.le.s32.totalorder 1, %s10
    %p180 = scmp.lt.s32.totalorder %s10, 3
    %p181 = pnand %p179, %p180
    %p182 = pneg %p181
    // Predicated region
    $region33: #{net_forward.10} parent=5 // pred_check
      _
    $region34: #{net_forward.10} parent=5 // pred_check_branch
      %184 = sbr.rel (%p181) target = $region36
    $region35: #{net_forward.10} parent=5 // pred_region
      %s185 = ssub.s32 %s10, 1
      %p186 = pneg %p31
      %p187 = pneg %p28
      %p188 = scmp.lt.s32.totalorder %s15, 1
      %s189 = scalar_select %p188, %s15, 1
      %s190 = smul.addr %s189, 16
      %s191 = smul.addr %s190, 8
      %s192 = scalar_lea.vmem %s1, %s191
      %p193 = pneg %p57
      %p194 = pneg %p54
      %p195 = scmp.lt.s32.totalorder %s15, 1
      %s196 = scalar_select %p195, %s15, 1
      %s197 = smul.addr %s196, 4
      %s198 = smul.addr %s197, 8
      %s199 = scalar_lea.vmem %s2, %s198
      %p200 = pneg %p83
      %p201 = pneg %p80
      %p202 = scmp.lt.s32.totalorder %s15, 1
      %s203 = scalar_select %p202, %s15, 1
      %s204 = scalar_lea.vmem %s3, %s203
      %p205 = pneg %p109
      %p206 = pneg %p106
      %p207 = pneg %p135
      %p208 = pneg %p132
      %p209 = scmp.lt.s32.totalorder %s15, 1
      %s210 = scalar_select %p209, %s15, 1
      %s211 = smul.addr %s210, 2
      %s212 = smul.addr %s211, 8
      %s213 = scalar_lea.vmem %s4, %s212
      %p214 = scmp.lt.s32.totalorder %s15, 1
      %s215 = scalar_select %p214, %s15, 1
      %s216 = smul.addr %s215, 16
      %s217 = smul.addr %s216, 8
      %s218 = scalar_lea.vmem %s1, %s217
      %p219 = scmp.lt.s32.totalorder %s15, 1
      %s220 = scalar_select %p219, %s15, 1
      %s221 = smul.addr %s220, 4
      %s222 = smul.addr %s221, 8
      %s223 = scalar_lea.vmem %s2, %s222
      %p224 = scmp.lt.s32.totalorder %s15, 1
      %s225 = scalar_select %p224, %s15, 1
      %s226 = scalar_lea.vmem %s3, %s225
      %p227 = scmp.lt.s32.totalorder %s15, 1
      %s228 = scalar_select %p227, %s15, 1
      %s229 = smul.addr %s228, 2
      %s230 = smul.addr %s229, 8
      %s231 = scalar_lea.vmem %s4, %s230
      %p232 = scmp.eq.s32.totalorder %s15, 0
      %s233 = scalar_select %p232, 1, 0
      %s234 = scvt.s32.f32 %s233
      %v235 = vld [vmem:[%s0] sm:$0xff]
      %v236 = vld [vmem:[%s0 + $0x8] sm:$0x3]
      %v238 = vrot.slane %v235, 4
      %vm240 = vcmask 1041408
      %v241 = vsel %vm240, %v236, %v238
      %vm242 = vcmask 1043456
      %v243 = vsel %vm242, %v241, %v235
      %vm244 = vcmask 1045504
      %v245 = vsel %vm244, %v243, %v238
      %v246 = vstv %s234
      %v247 = vmul.f32 %v246, %v235
      %v248 = vmul.f32 %v246, %v236
      %s249 = ssub.f32 1.0, %s234
      %v250 = vstv %s249
      %v251 = vmul.f32 %v250, %v245
      %v252 = vmul.f32 %v250, %v235
      %v253 = vadd.f32 %v247, %v251
      %v254 = vadd.f32 %v248, %v252
      %v255 = vld [vmem:[%s218] sm:$0xff]
      %v256 = vld [vmem:[%s218 + $0x8] sm:$0xff]
      %v257 = vld [vmem:[%s218 + $0x10] sm:$0xff]
      %v258 = vld [vmem:[%s218 + $0x18] sm:$0xff]
      %v259 = vld [vmem:[%s218 + $0x20] sm:$0xff]
      %v260 = vld [vmem:[%s218 + $0x28] sm:$0xff]
      %v261 = vld [vmem:[%s218 + $0x30] sm:$0xff]
      %v262 = vld [vmem:[%s218 + $0x38] sm:$0xff]
      %v263 = vld [vmem:[%s218 + $0x40] sm:$0xff]
      %v264 = vld [vmem:[%s218 + $0x48] sm:$0xff]
      %v265 = vld [vmem:[%s218 + $0x50] sm:$0xff]
      %v266 = vld [vmem:[%s218 + $0x58] sm:$0xff]
      %v267 = vld [vmem:[%s218 + $0x60] sm:$0xff]
      %v268 = vld [vmem:[%s218 + $0x68] sm:$0xff]
      %v269 = vld [vmem:[%s218 + $0x70] sm:$0xff]
      %v270 = vld [vmem:[%s218 + $0x78] sm:$0x1f]
      %v271 = vld [vmem:[%s226] sm:$0x1]
      %v273 = vlaneseq
      %v274 = vshrl.u32 %v273, 7
      %v275 = vsub.s32 0, %v274
      %v276 = vrot.slane %v271, %v275
      %vm278 = vcmask 1022976
      %v280 = vsel %vm278, %v253, 0
      %v283 = vsel %vm278, %v254, 0
      %vm285 = vcmask 1044480
      %v287 = vsel %vm285, %v270, 0
      %289 = vmatprep.subr.mxu0 0.0
      %290 = vmatpush1.msra.mxu0 %v255
      %291 = vmatprep.subr.mxu0 0.0
      %292 = vmatpush1.msra.mxu0 %v256
      %293 = vmatprep.subr.mxu0 0.0
      %294 = vmatpush1.msra.mxu0 %v257
      %295 = vmatprep.subr.mxu0 0.0
      %296 = vmatpush1.msra.mxu0 %v258
      %297 = vmatprep.subr.mxu0 0.0
      %298 = vmatpush1.msra.mxu0 %v259
      %299 = vmatprep.subr.mxu0 0.0
      %300 = vmatpush1.msra.mxu0 %v260
      %301 = vmatprep.subr.mxu0 0.0
      %302 = vmatpush1.msra.mxu0 %v261
      %303 = vmatprep.subr.mxu0 0.0
      %304 = vmatpush1.msra.mxu0 %v262
      %305 = vmatprep.subr.mxu0 0.0
      %306 = vmatpush1.msra.mxu0 %v263
      %307 = vmatprep.subr.mxu0 0.0
      %308 = vmatpush1.msra.mxu0 %v264
      %309 = vmatprep.subr.mxu0 0.0
      %310 = vmatpush1.msra.mxu0 %v265
      %311 = vmatprep.subr.mxu0 0.0
      %312 = vmatpush1.msra.mxu0 %v266
      %313 = vmatprep.subr.mxu0 0.0
      %314 = vmatpush1.msra.mxu0 %v267
      %315 = vmatprep.subr.mxu0 0.0
      %316 = vmatpush1.msra.mxu0 %v268
      %317 = vmatprep.subr.mxu0 0.0
      %318 = vmatpush1.msra.mxu0 %v269
      %319 = vmatprep.subr.mxu0 0.0
      %320 = vmatpush1.msra.mxu0 %v287
      %321 = vmatprep.subr.mxu0 0.0
      %322 = vmatpush1.msra.mxu0 0.0
      %323 = vmatprep.subr.mxu0 0.0
      %324 = vmatpush1.msra.mxu0 0.0
      %325 = vmatprep.subr.mxu0 0.0
      %326 = vmatpush1.msra.mxu0 0.0
      %327 = vmatprep.subr.mxu0 0.0
      %328 = vmatpush1.msra.mxu0 0.0
      %329 = vmatprep.subr.mxu0 0.0
      %330 = vmatpush1.msra.mxu0 0.0
      %331 = vmatprep.subr.mxu0 0.0
      %332 = vmatpush1.msra.mxu0 0.0
      %333 = vmatprep.subr.mxu0 0.0
      %334 = vmatpush1.msra.mxu0 0.0
      %335 = vmatprep.subr.mxu0 0.0
      %336 = vmatpush1.msra.mxu0 0.0
      %337 = vmatprep.subr.mxu0 0.0
      %338 = vmatpush1.msra.mxu0 0.0
      %339 = vmatprep.subr.mxu0 0.0
      %340 = vmatpush1.msra.mxu0 0.0
      %341 = vmatprep.subr.mxu0 0.0
      %342 = vmatpush1.msra.mxu0 0.0
      %343 = vmatprep.subr.mxu0 0.0
      %344 = vmatpush1.msra.mxu0 0.0
      %345 = vmatprep.subr.mxu0 0.0
      %346 = vmatpush1.msra.mxu0 0.0
      %347 = vmatprep.subr.mxu0 0.0
      %348 = vmatpush1.msra.mxu0 0.0
      %349 = vmatprep.subr.mxu0 0.0
      %350 = vmatpush1.msra.mxu0 0.0
      %351 = vmatprep.subr.mxu0 0.0
      %352 = vmatpush1.msra.mxu0 0.0
      %353 = vmatprep.mubr.f32.mxu0 0.0
      %354 = vmatmul.mubr.f32.gmra.mrb[0].mxu0 %v280
      %v355 = vpop.f32.mrb[0].mxu0
      %v356 = vadd.f32 %v276, %v355
      %v357 = vpop.f32.mrb[0].mxu0
      %358 = vmatprep.mubr.f32.mxu0 0.0
      %359 = vmatmul.mubr.f32.gmra.mrb[0].mxu0 %v283
      %v360 = vpop.f32.mrb[0].mxu0
      %v361 = vadd.f32 %v276, %v360
      %v362 = vpop.f32.mrb[0].mxu0
      %363 = vdwg.mxu0
      %v364 = vld [vmem:[%s223] sm:$0xff]
      %v365 = vld [vmem:[%s223 + $0x8] sm:$0xff]
      %v366 = vld [vmem:[%s223 + $0x10] sm:$0xff]
      %v367 = vld [vmem:[%s223 + $0x18] sm:$0xff]
      %vm368 = vcmask 261120
      %v370 = vsel %vm368, 0.0, 0
      %372 = vmatprep.subr.mxu0 0.0
      %373 = vmatpush1.msra.mxu0 %v364
      %374 = vmatprep.subr.mxu0 0.0
      %375 = vmatpush1.msra.mxu0 %v365
      %376 = vmatprep.subr.mxu0 0.0
      %377 = vmatpush1.msra.mxu0 %v366
      %378 = vmatprep.subr.mxu0 0.0
      %379 = vmatpush1.msra.mxu0 %v367
      %380 = vmatprep.subr.mxu0 0.0
      %381 = vmatpush1.msra.mxu0 0.0
      %382 = vmatprep.subr.mxu0 0.0
      %383 = vmatpush1.msra.mxu0 0.0
      %384 = vmatprep.subr.mxu0 0.0
      %385 = vmatpush1.msra.mxu0 0.0
      %386 = vmatprep.subr.mxu0 0.0
      %387 = vmatpush1.msra.mxu0 0.0
      %388 = vmatprep.subr.mxu0 0.0
      %389 = vmatpush1.msra.mxu0 0.0
      %390 = vmatprep.subr.mxu0 0.0
      %391 = vmatpush1.msra.mxu0 0.0
      %392 = vmatprep.subr.mxu0 0.0
      %393 = vmatpush1.msra.mxu0 0.0
      %394 = vmatprep.subr.mxu0 0.0
      %395 = vmatpush1.msra.mxu0 0.0
      %396 = vmatprep.subr.mxu0 0.0
      %397 = vmatpush1.msra.mxu0 0.0
      %398 = vmatprep.subr.mxu0 0.0
      %399 = vmatpush1.msra.mxu0 0.0
      %400 = vmatprep.subr.mxu0 0.0
      %401 = vmatpush1.msra.mxu0 0.0
      %402 = vmatprep.subr.mxu0 0.0
      %403 = vmatpush1.msra.mxu0 0.0
      %404 = vmatprep.subr.mxu0 0.0
      %405 = vmatpush1.msra.mxu0 0.0
      %406 = vmatprep.subr.mxu0 0.0
      %407 = vmatpush1.msra.mxu0 0.0
      %408 = vmatprep.subr.mxu0 0.0
      %409 = vmatpush1.msra.mxu0 0.0
      %410 = vmatprep.subr.mxu0 0.0
      %411 = vmatpush1.msra.mxu0 0.0
      %412 = vmatprep.subr.mxu0 0.0
      %413 = vmatpush1.msra.mxu0 0.0
      %414 = vmatprep.subr.mxu0 0.0
      %415 = vmatpush1.msra.mxu0 0.0
      %416 = vmatprep.subr.mxu0 0.0
      %417 = vmatpush1.msra.mxu0 0.0
      %418 = vmatprep.subr.mxu0 0.0
      %419 = vmatpush1.msra.mxu0 0.0
      %420 = vmatprep.subr.mxu0 0.0
      %421 = vmatpush1.msra.mxu0 0.0
      %422 = vmatprep.subr.mxu0 0.0
      %423 = vmatpush1.msra.mxu0 0.0
      %424 = vmatprep.subr.mxu0 0.0
      %425 = vmatpush1.msra.mxu0 0.0
      %426 = vmatprep.subr.mxu0 0.0
      %427 = vmatpush1.msra.mxu0 0.0
      %428 = vmatprep.subr.mxu0 0.0
      %429 = vmatpush1.msra.mxu0 0.0
      %430 = vmatprep.subr.mxu0 0.0
      %431 = vmatpush1.msra.mxu0 0.0
      %432 = vmatprep.subr.mxu0 0.0
      %433 = vmatpush1.msra.mxu0 0.0
      %434 = vmatprep.subr.mxu0 0.0
      %435 = vmatpush1.msra.mxu0 0.0
      %436 = vmatprep.mubr.f32.mxu0 0.0
      %437 = vmatmul.mubr.f32.gmra.mrb[0].mxu0 %v370
      %v438 = vpop.f32.mrb[0].mxu0
      %v439 = vadd.f32 0.0, %v438
      %v440 = vpop.f32.mrb[0].mxu0
      %441 = vdwg.mxu0
      %v442 = vadd.f32 %v356, %v439
      %v443 = vxor.u32 %v442, 2147483648
      %v444 = vmul.f32 %v443, 1.442695
      %v445 = vpow.pop %v444
      %v446 = vadd.f32 %v445, 1.0
      %v447 = vrcp.pop %v446
      %v448 = vmul.f32 1.0, %v447
      %v449 = vtanh.pop %v442
      %v450 = vmul.f32 %v448, 0.0
      %452 = vrot.lane.b32.xlu0 %v449, 64
      %v453 = vpop.permute.xlu0 %452
      %v455 = vmul.f32 %v448, %v453
      %457 = vrot.lane.b32.xlu0 %v455, 32
      %v458 = vpop.permute.xlu0 %457
      %v460 = vadd.f32 %v450, %v458
      %v461 = vtanh.pop %v460
      %463 = vrot.lane.b32.xlu0 %v461, 64
      %v464 = vpop.permute.xlu0 %463
      %v466 = vmul.f32 %v448, %v464
      %468 = vrot.lane.b32.xlu0 %v466, 32
      %v469 = vpop.permute.xlu0 %468
      %v470 = vsel %vm368, %v469, 0
      %472 = vmatprep.subr.mxu0 0.0
      %473 = vmatpush1.msra.mxu0 %v364
      %474 = vmatprep.subr.mxu0 0.0
      %475 = vmatpush1.msra.mxu0 %v365
      %476 = vmatprep.subr.mxu0 0.0
      %477 = vmatpush1.msra.mxu0 %v366
      %478 = vmatprep.subr.mxu0 0.0
      %479 = vmatpush1.msra.mxu0 %v367
      %480 = vmatprep.subr.mxu0 0.0
      %481 = vmatpush1.msra.mxu0 0.0
      %482 = vmatprep.subr.mxu0 0.0
      %483 = vmatpush1.msra.mxu0 0.0
      %484 = vmatprep.subr.mxu0 0.0
      %485 = vmatpush1.msra.mxu0 0.0
      %486 = vmatprep.subr.mxu0 0.0
      %487 = vmatpush1.msra.mxu0 0.0
      %488 = vmatprep.subr.mxu0 0.0
      %489 = vmatpush1.msra.mxu0 0.0
      %490 = vmatprep.subr.mxu0 0.0
      %491 = vmatpush1.msra.mxu0 0.0
      %492 = vmatprep.subr.mxu0 0.0
      %493 = vmatpush1.msra.mxu0 0.0
      %494 = vmatprep.subr.mxu0 0.0
      %495 = vmatpush1.msra.mxu0 0.0
      %496 = vmatprep.subr.mxu0 0.0
      %497 = vmatpush1.msra.mxu0 0.0
      %498 = vmatprep.subr.mxu0 0.0
      %499 = vmatpush1.msra.mxu0 0.0
      %500 = vmatprep.subr.mxu0 0.0
      %501 = vmatpush1.msra.mxu0 0.0
      %502 = vmatprep.subr.mxu0 0.0
      %503 = vmatpush1.msra.mxu0 0.0
      %504 = vmatprep.subr.mxu0 0.0
      %505 = vmatpush1.msra.mxu0 0.0
      %506 = vmatprep.subr.mxu0 0.0
      %507 = vmatpush1.msra.mxu0 0.0
      %508 = vmatprep.subr.mxu0 0.0
      %509 = vmatpush1.msra.mxu0 0.0
      %510 = vmatprep.subr.mxu0 0.0
      %511 = vmatpush1.msra.mxu0 0.0
      %512 = vmatprep.subr.mxu0 0.0
      %513 = vmatpush1.msra.mxu0 0.0
      %514 = vmatprep.subr.mxu0 0.0
      %515 = vmatpush1.msra.mxu0 0.0
      %516 = vmatprep.subr.mxu0 0.0
      %517 = vmatpush1.msra.mxu0 0.0
      %518 = vmatprep.subr.mxu0 0.0
      %519 = vmatpush1.msra.mxu0 0.0
      %520 = vmatprep.subr.mxu0 0.0
      %521 = vmatpush1.msra.mxu0 0.0
      %522 = vmatprep.subr.mxu0 0.0
      %523 = vmatpush1.msra.mxu0 0.0
      %524 = vmatprep.subr.mxu0 0.0
      %525 = vmatpush1.msra.mxu0 0.0
      %526 = vmatprep.subr.mxu0 0.0
      %527 = vmatpush1.msra.mxu0 0.0
      %528 = vmatprep.subr.mxu0 0.0
      %529 = vmatpush1.msra.mxu0 0.0
      %530 = vmatprep.subr.mxu0 0.0
      %531 = vmatpush1.msra.mxu0 0.0
      %532 = vmatprep.subr.mxu0 0.0
      %533 = vmatpush1.msra.mxu0 0.0
      %534 = vmatprep.subr.mxu0 0.0
      %535 = vmatpush1.msra.mxu0 0.0
      %536 = vmatprep.mubr.f32.mxu0 0.0
      %537 = vmatmul.mubr.f32.gmra.mrb[0].mxu0 %v470
      %v538 = vpop.f32.mrb[0].mxu0
      %v539 = vadd.f32 0.0, %v538
      %v540 = vpop.f32.mrb[0].mxu0
      %541 = vdwg.mxu0
      %v543 = vrot.slane %v539, 6
      %v545 = vadd.f32 %v356, %v543
      %v546 = vxor.u32 %v545, 2147483648
      %v547 = vmul.f32 %v546, 1.442695
      %v548 = vpow.pop %v547
      %v549 = vadd.f32 %v548, 1.0
      %v550 = vrcp.pop %v549
      %v551 = vmul.f32 1.0, %v550
      %v552 = vtanh.pop %v545
      %v554 = vrot.slane %v460, 6
      %v556 = vmul.f32 %v551, %v554
      %558 = vrot.lane.b32.xlu0 %v552, 64
      %v559 = vpop.permute.xlu0 %558
      %v561 = vmul.f32 %v551, %v559
      %563 = vrot.lane.b32.xlu0 %v561, 32
      %v564 = vpop.permute.xlu0 %563
      %v566 = vadd.f32 %v556, %v564
      %v567 = vtanh.pop %v566
      %569 = vrot.lane.b32.xlu0 %v567, 64
      %v570 = vpop.permute.xlu0 %569
      %v572 = vmul.f32 %v551, %v570
      %v574 = vrot.slane %v572, 2
      %575 = vrot.lane.b32.xlu0 %v574, 32
      %v576 = vpop.permute.xlu0 %575
      %v577 = vsel %vm368, %v576, 0
      %579 = vmatprep.subr.mxu0 0.0
      %580 = vmatpush1.msra.mxu0 %v364
      %581 = vmatprep.subr.mxu0 0.0
      %582 = vmatpush1.msra.mxu0 %v365
      %583 = vmatprep.subr.mxu0 0.0
      %584 = vmatpush1.msra.mxu0 %v366
      %585 = vmatprep.subr.mxu0 0.0
      %586 = vmatpush1.msra.mxu0 %v367
      %587 = vmatprep.subr.mxu0 0.0
      %588 = vmatpush1.msra.mxu0 0.0
      %589 = vmatprep.subr.mxu0 0.0
      %590 = vmatpush1.msra.mxu0 0.0
      %591 = vmatprep.subr.mxu0 0.0
      %592 = vmatpush1.msra.mxu0 0.0
      %593 = vmatprep.subr.mxu0 0.0
      %594 = vmatpush1.msra.mxu0 0.0
      %595 = vmatprep.subr.mxu0 0.0
      %596 = vmatpush1.msra.mxu0 0.0
      %597 = vmatprep.subr.mxu0 0.0
      %598 = vmatpush1.msra.mxu0 0.0
      %599 = vmatprep.subr.mxu0 0.0
      %600 = vmatpush1.msra.mxu0 0.0
      %601 = vmatprep.subr.mxu0 0.0
      %602 = vmatpush1.msra.mxu0 0.0
      %603 = vmatprep.subr.mxu0 0.0
      %604 = vmatpush1.msra.mxu0 0.0
      %605 = vmatprep.subr.mxu0 0.0
      %606 = vmatpush1.msra.mxu0 0.0
      %607 = vmatprep.subr.mxu0 0.0
      %608 = vmatpush1.msra.mxu0 0.0
      %609 = vmatprep.subr.mxu0 0.0
      %610 = vmatpush1.msra.mxu0 0.0
      %611 = vmatprep.subr.mxu0 0.0
      %612 = vmatpush1.msra.mxu0 0.0
      %613 = vmatprep.subr.mxu0 0.0
      %614 = vmatpush1.msra.mxu0 0.0
      %615 = vmatprep.subr.mxu0 0.0
      %616 = vmatpush1.msra.mxu0 0.0
      %617 = vmatprep.subr.mxu0 0.0
      %618 = vmatpush1.msra.mxu0 0.0
      %619 = vmatprep.subr.mxu0 0.0
      %620 = vmatpush1.msra.mxu0 0.0
      %621 = vmatprep.subr.mxu0 0.0
      %622 = vmatpush1.msra.mxu0 0.0
      %623 = vmatprep.subr.mxu0 0.0
      %624 = vmatpush1.msra.mxu0 0.0
      %625 = vmatprep.subr.mxu0 0.0
      %626 = vmatpush1.msra.mxu0 0.0
      %627 = vmatprep.subr.mxu0 0.0
      %628 = vmatpush1.msra.mxu0 0.0
      %629 = vmatprep.subr.mxu0 0.0
      %630 = vmatpush1.msra.mxu0 0.0
      %631 = vmatprep.subr.mxu0 0.0
      %632 = vmatpush1.msra.mxu0 0.0
      %633 = vmatprep.subr.mxu0 0.0
      %634 = vmatpush1.msra.mxu0 0.0
      %635 = vmatprep.subr.mxu0 0.0
      %636 = vmatpush1.msra.mxu0 0.0
      %637 = vmatprep.subr.mxu0 0.0
      %638 = vmatpush1.msra.mxu0 0.0
      %639 = vmatprep.subr.mxu0 0.0
      %640 = vmatpush1.msra.mxu0 0.0
      %641 = vmatprep.subr.mxu0 0.0
      %642 = vmatpush1.msra.mxu0 0.0
      %643 = vmatprep.mubr.f32.mxu0 0.0
      %644 = vmatmul.mubr.f32.gmra.mrb[0].mxu0 %v577
      %v645 = vpop.f32.mrb[0].mxu0
      %v646 = vadd.f32 0.0, %v645
      %v647 = vpop.f32.mrb[0].mxu0
      %648 = vdwg.mxu0
      %v650 = vrot.slane %v646, 4
      %v652 = vadd.f32 %v356, %v650
      %v653 = vxor.u32 %v652, 2147483648
      %v654 = vmul.f32 %v653, 1.442695
      %v655 = vpow.pop %v654
      %v656 = vadd.f32 %v655, 1.0
      %v657 = vrcp.pop %v656
      %v658 = vmul.f32 1.0, %v657
      %v659 = vtanh.pop %v652
      %v661 = vrot.slane %v566, 6
      %v663 = vmul.f32 %v658, %v661
      %665 = vrot.lane.b32.xlu0 %v659, 64
      %v666 = vpop.permute.xlu0 %665
      %v668 = vmul.f32 %v658, %v666
      %670 = vrot.lane.b32.xlu0 %v668, 32
      %v671 = vpop.permute.xlu0 %670
      %v673 = vadd.f32 %v663, %v671
      %v674 = vtanh.pop %v673
      %676 = vrot.lane.b32.xlu0 %v674, 64
      %v677 = vpop.permute.xlu0 %676
      %v679 = vmul.f32 %v658, %v677
      %v681 = vrot.slane %v679, 4
      %682 = vrot.lane.b32.xlu0 %v681, 32
      %v683 = vpop.permute.xlu0 %682
      %v684 = vsel %vm368, %v683, 0
      %686 = vmatprep.subr.mxu0 0.0
      %687 = vmatpush1.msra.mxu0 %v364
      %688 = vmatprep.subr.mxu0 0.0
      %689 = vmatpush1.msra.mxu0 %v365
      %690 = vmatprep.subr.mxu0 0.0
      %691 = vmatpush1.msra.mxu0 %v366
      %692 = vmatprep.subr.mxu0 0.0
      %693 = vmatpush1.msra.mxu0 %v367
      %694 = vmatprep.subr.mxu0 0.0
      %695 = vmatpush1.msra.mxu0 0.0
      %696 = vmatprep.subr.mxu0 0.0
      %697 = vmatpush1.msra.mxu0 0.0
      %698 = vmatprep.subr.mxu0 0.0
      %699 = vmatpush1.msra.mxu0 0.0
      %700 = vmatprep.subr.mxu0 0.0
      %701 = vmatpush1.msra.mxu0 0.0
      %702 = vmatprep.subr.mxu0 0.0
      %703 = vmatpush1.msra.mxu0 0.0
      %704 = vmatprep.subr.mxu0 0.0
      %705 = vmatpush1.msra.mxu0 0.0
      %706 = vmatprep.subr.mxu0 0.0
      %707 = vmatpush1.msra.mxu0 0.0
      %708 = vmatprep.subr.mxu0 0.0
      %709 = vmatpush1.msra.mxu0 0.0
      %710 = vmatprep.subr.mxu0 0.0
      %711 = vmatpush1.msra.mxu0 0.0
      %712 = vmatprep.subr.mxu0 0.0
      %713 = vmatpush1.msra.mxu0 0.0
      %714 = vmatprep.subr.mxu0 0.0
      %715 = vmatpush1.msra.mxu0 0.0
      %716 = vmatprep.subr.mxu0 0.0
      %717 = vmatpush1.msra.mxu0 0.0
      %718 = vmatprep.subr.mxu0 0.0
      %719 = vmatpush1.msra.mxu0 0.0
      %720 = vmatprep.subr.mxu0 0.0
      %721 = vmatpush1.msra.mxu0 0.0
      %722 = vmatprep.subr.mxu0 0.0
      %723 = vmatpush1.msra.mxu0 0.0
      %724 = vmatprep.subr.mxu0 0.0
      %725 = vmatpush1.msra.mxu0 0.0
      %726 = vmatprep.subr.mxu0 0.0
      %727 = vmatpush1.msra.mxu0 0.0
      %728 = vmatprep.subr.mxu0 0.0
      %729 = vmatpush1.msra.mxu0 0.0
      %730 = vmatprep.subr.mxu0 0.0
      %731 = vmatpush1.msra.mxu0 0.0
      %732 = vmatprep.subr.mxu0 0.0
      %733 = vmatpush1.msra.mxu0 0.0
      %734 = vmatprep.subr.mxu0 0.0
      %735 = vmatpush1.msra.mxu0 0.0
      %736 = vmatprep.subr.mxu0 0.0
      %737 = vmatpush1.msra.mxu0 0.0
      %738 = vmatprep.subr.mxu0 0.0
      %739 = vmatpush1.msra.mxu0 0.0
      %740 = vmatprep.subr.mxu0 0.0
      %741 = vmatpush1.msra.mxu0 0.0
      %742 = vmatprep.subr.mxu0 0.0
      %743 = vmatpush1.msra.mxu0 0.0
      %744 = vmatprep.subr.mxu0 0.0
      %745 = vmatpush1.msra.mxu0 0.0
      %746 = vmatprep.subr.mxu0 0.0
      %747 = vmatpush1.msra.mxu0 0.0
      %748 = vmatprep.subr.mxu0 0.0
      %749 = vmatpush1.msra.mxu0 0.0
      %750 = vmatprep.mubr.f32.mxu0 0.0
      %751 = vmatmul.mubr.f32.gmra.mrb[0].mxu0 %v684
      %v752 = vpop.f32.mrb[0].mxu0
      %v753 = vadd.f32 0.0, %v752
      %v754 = vpop.f32.mrb[0].mxu0
      %755 = vdwg.mxu0
      %v757 = vrot.slane %v753, 2
      %v759 = vadd.f32 %v356, %v757
      %v760 = vxor.u32 %v759, 2147483648
      %v761 = vmul.f32 %v760, 1.442695
      %v762 = vpow.pop %v761
      %v763 = vadd.f32 %v762, 1.0
      %v764 = vrcp.pop %v763
      %v765 = vmul.f32 1.0, %v764
      %v766 = vtanh.pop %v759
      %v768 = vrot.slane %v673, 6
      %v770 = vmul.f32 %v765, %v768
      %772 = vrot.lane.b32.xlu0 %v766, 64
      %v773 = vpop.permute.xlu0 %772
      %v775 = vmul.f32 %v765, %v773
      %777 = vrot.lane.b32.xlu0 %v775, 32
      %v778 = vpop.permute.xlu0 %777
      %v780 = vadd.f32 %v770, %v778
      %v781 = vtanh.pop %v780
      %783 = vrot.lane.b32.xlu0 %v781, 64
      %v784 = vpop.permute.xlu0 %783
      %v786 = vmul.f32 %v765, %v784
      %v788 = vrot.slane %v786, 6
      %789 = vrot.lane.b32.xlu0 %v788, 32
      %v790 = vpop.permute.xlu0 %789
      %v791 = vsel %vm368, %v790, 0
      %793 = vmatprep.subr.mxu0 0.0
      %794 = vmatpush1.msra.mxu0 %v364
      %795 = vmatprep.subr.mxu0 0.0
      %796 = vmatpush1.msra.mxu0 %v365
      %797 = vmatprep.subr.mxu0 0.0
      %798 = vmatpush1.msra.mxu0 %v366
      %799 = vmatprep.subr.mxu0 0.0
      %800 = vmatpush1.msra.mxu0 %v367
      %801 = vmatprep.subr.mxu0 0.0
      %802 = vmatpush1.msra.mxu0 0.0
      %803 = vmatprep.subr.mxu0 0.0
      %804 = vmatpush1.msra.mxu0 0.0
      %805 = vmatprep.subr.mxu0 0.0
      %806 = vmatpush1.msra.mxu0 0.0
      %807 = vmatprep.subr.mxu0 0.0
      %808 = vmatpush1.msra.mxu0 0.0
      %809 = vmatprep.subr.mxu0 0.0
      %810 = vmatpush1.msra.mxu0 0.0
      %811 = vmatprep.subr.mxu0 0.0
      %812 = vmatpush1.msra.mxu0 0.0
      %813 = vmatprep.subr.mxu0 0.0
      %814 = vmatpush1.msra.mxu0 0.0
      %815 = vmatprep.subr.mxu0 0.0
      %816 = vmatpush1.msra.mxu0 0.0
      %817 = vmatprep.subr.mxu0 0.0
      %818 = vmatpush1.msra.mxu0 0.0
      %819 = vmatprep.subr.mxu0 0.0
      %820 = vmatpush1.msra.mxu0 0.0
      %821 = vmatprep.subr.mxu0 0.0
      %822 = vmatpush1.msra.mxu0 0.0
      %823 = vmatprep.subr.mxu0 0.0
      %824 = vmatpush1.msra.mxu0 0.0
      %825 = vmatprep.subr.mxu0 0.0
      %826 = vmatpush1.msra.mxu0 0.0
      %827 = vmatprep.subr.mxu0 0.0
      %828 = vmatpush1.msra.mxu0 0.0
      %829 = vmatprep.subr.mxu0 0.0
      %830 = vmatpush1.msra.mxu0 0.0
      %831 = vmatprep.subr.mxu0 0.0
      %832 = vmatpush1.msra.mxu0 0.0
      %833 = vmatprep.subr.mxu0 0.0
      %834 = vmatpush1.msra.mxu0 0.0
      %835 = vmatprep.subr.mxu0 0.0
      %836 = vmatpush1.msra.mxu0 0.0
      %837 = vmatprep.subr.mxu0 0.0
      %838 = vmatpush1.msra.mxu0 0.0
      %839 = vmatprep.subr.mxu0 0.0
      %840 = vmatpush1.msra.mxu0 0.0
      %841 = vmatprep.subr.mxu0 0.0
      %842 = vmatpush1.msra.mxu0 0.0
      %843 = vmatprep.subr.mxu0 0.0
      %844 = vmatpush1.msra.mxu0 0.0
      %845 = vmatprep.subr.mxu0 0.0
      %846 = vmatpush1.msra.mxu0 0.0
      %847 = vmatprep.subr.mxu0 0.0
      %848 = vmatpush1.msra.mxu0 0.0
      %849 = vmatprep.subr.mxu0 0.0
      %850 = vmatpush1.msra.mxu0 0.0
      %851 = vmatprep.subr.mxu0 0.0
      %852 = vmatpush1.msra.mxu0 0.0
      %853 = vmatprep.subr.mxu0 0.0
      %854 = vmatpush1.msra.mxu0 0.0
      %855 = vmatprep.subr.mxu0 0.0
      %856 = vmatpush1.msra.mxu0 0.0
      %857 = vmatprep.mubr.f32.mxu0 0.0
      %858 = vmatmul.mubr.f32.gmra.mrb[0].mxu0 %v791
      %v859 = vpop.f32.mrb[0].mxu0
      %v860 = vadd.f32 0.0, %v859
      %v861 = vpop.f32.mrb[0].mxu0
      %862 = vdwg.mxu0
      %v863 = vadd.f32 %v361, %v860
      %v864 = vxor.u32 %v863, 2147483648
      %v865 = vmul.f32 %v864, 1.442695
      %v866 = vpow.pop %v865
      %v867 = vadd.f32 %v866, 1.0
      %v868 = vrcp.pop %v867
      %v869 = vmul.f32 1.0, %v868
      %v870 = vtanh.pop %v863
      %v872 = vrot.slane %v780, 6
      %v874 = vmul.f32 %v869, %v872
      %876 = vrot.lane.b32.xlu0 %v870, 64
      %v877 = vpop.permute.xlu0 %876
      %v879 = vmul.f32 %v869, %v877
      %881 = vrot.lane.b32.xlu0 %v879, 32
      %v882 = vpop.permute.xlu0 %881
      %v884 = vadd.f32 %v874, %v882
      %v885 = vtanh.pop %v884
      %887 = vrot.lane.b32.xlu0 %v885, 64
      %v888 = vpop.permute.xlu0 %887
      %v890 = vmul.f32 %v869, %v888
      %v891 = vsel %vm240, %v466, %v572
      %v892 = vsel %vm242, %v891, %v679
      %v893 = vsel %vm244, %v892, %v786
      %v894 = vrot.slane %v786, 4
      %v896 = vrot.slane %v572, 4
      %v898 = vsel %vm240, %v890, %v894
      %v899 = vsel %vm242, %v898, %v679
      %v900 = vsel %vm244, %v899, %v896
      %v901 = vmul.f32 %v246, %v893
      %v902 = vmul.f32 %v246, %v890
      %v903 = vmul.f32 %v250, %v900
      %v904 = vmul.f32 %v250, %v466
      %v905 = vadd.f32 %v901, %v903
      %v906 = vadd.f32 %v902, %v904
      %909 = vrot.lane.b32.xlu0 %v905, 32
      %v910 = vpop.permute.xlu0 %909
      %911 = vrot.lane.b32.xlu0 %v906, 32
      %v912 = vpop.permute.xlu0 %911
      %915 = vst.msk [vmem:[%s231] sm:$0xff] %vm368, %v910
      %vm916 = vcmask 254976
      %917 = vst.msk [vmem:[%s231 + $0x8] sm:$0x3] %vm916, %v912
      %p918 = scmp.lt.s32.totalorder %s15, 1
      %s919 = scalar_select %p918, %s15, 1
      %s920 = smul.addr %s919, 2
      %s921 = smul.addr %s920, 8
      %s922 = scalar_lea.vmem %s4, %s921
      // Predicated region
      $region37: #{net_forward.10} parent=35 // pred_check
        %p923 = pneg %p132
      $region38: #{net_forward.10} parent=35 // pred_check_branch
        %925 = sbr.rel (%p923) target = $region40
      $region39: #{net_forward.10} parent=35 // pred_region
        _
      $region40: #{net_forward.10} parent=35 // pred_fallthru
        _
    $region36: #{net_forward.10} parent=5 // pred_fallthru
      _
    %p926 = scmp.le.s32.totalorder 2, %s10
    // Predicated region
    $region41: #{net_forward.10} parent=5 // pred_check
      %p927 = pneg %p926
    $region42: #{net_forward.10} parent=5 // pred_check_branch
      %929 = sbr.rel (%p927) target = $region44
    $region43: #{net_forward.10} parent=5 // pred_region
      %s930 = ssub.s32 %s10, 2
      // Predicated region
      $region45: #{net_forward.10} parent=43 // pred_check
        %p931 = pneg %p138
      $region46: #{net_forward.10} parent=43 // pred_check_branch
        %933 = sbr.rel (%p931) target = $region48
      $region47: #{net_forward.10} parent=43 // pred_region
        %p934 = scmp.lt.s32.totalorder %s16, 1
        %s935 = scalar_select %p934, %s16, 1
        %s936 = smul.addr %s935, 2
        %s937 = smul.addr %s936, 8
        %s938 = scalar_lea.vmem %s4, %s937
      $region48: #{net_forward.10} parent=43 // pred_fallthru
        _
    $region44: #{net_forward.10} parent=5 // pred_fallthru
      _
  $region6: #{net_forward.10} parent=0 // loop_footer
    %s14 = sadd.s32 1, %s10
  $region7: #{net_forward.10} parent=0 // loop_footer_branch
    %9 = sbr.rel target = $region3
  $region8: #{net_forward.10} parent=0 // loop_exit
    _

</llo_original>
